<compile_context>
chip_gen: v6e
topology: v6e:2x2x1
jax: 0.10.0
libtpu: 0.0.40
codegen_flags: <defaults>
</compile_context>

<pallas_src>
import functools

import jax
import jax.numpy as jnp
from jax.experimental import pallas as pl
from jax.experimental.pallas import tpu as pltpu

# ----------------------------- small config -----------------------------------
VOCAB = 100
MAX_POS = 32
HIDDEN = 128          # stands in for 768 (kept a multiple of 128 => lane-dense)
NUM_HEADS = 4
HEAD_DIM = HIDDEN // NUM_HEADS
INTERMEDIATE = 256    # stands in for 3072
NUM_LAYERS = 2        # stands in for 12
NUM_CLASSES = 10
CLS_PAD = 128         # classifier output padded to a lane-dense width
BATCH = 2
SEQ = 8
LN_EPS = 1e-5
NEG_INF = -1e9


# ----------------------------- in-kernel helpers --------------------------------
def _layernorm(x, g, b):
    # f32 statistics, rsqrt on the EUP
    x = x.astype(jnp.float32)
    mu = jnp.mean(x, axis=-1, keepdims=True)
    var = jnp.mean((x - mu) ** 2, axis=-1, keepdims=True)
    return (x - mu) * jax.lax.rsqrt(var + LN_EPS) * g + b


def _gelu(x):
    # TODO(synk): Longformer uses exact erf-GELU; tanh approximation used here.
    return 0.5 * x * (1.0 + jnp.tanh(0.7978845608028654 * (x + 0.044715 * x * x * x)))


# ----------------------------- fused kernel -------------------------------------
def fused_roberta_kernel(
        x0_ref, kbias_ref,
        wq_ref, bq_ref, wk_ref, bk_ref, wv_ref, bv_ref, wo_ref, bo_ref,
        ln1g_ref, ln1b_ref, wi_ref, bi_ref, wf_ref, bf_ref, ln2g_ref, ln2b_ref,
        prew_ref, preb_ref, clsw_ref, clsb_ref,
        logits_ref,                       # output (B, CLS_PAD), lane-dense
        x_scr,                            # VMEM scratch: bf16 residual stream (B*S, H)
        *, num_heads, batch, seq):
    layer = pl.program_id(0)
    bs, hidden = x_scr.shape
    hd = hidden // num_heads
    scale = 1.0 / (hd ** 0.5)

    # ---- iteration 0: seed the bf16 VMEM-resident residual from the wrapper's
    #      (already LayerNorm'ed) embeddings ----
    @pl.when(layer == 0)
    def _():
        x_scr[...] = x0_ref[...]

    xb = x_scr[...]                             # (B*S, H) bf16 residual stream
    x_f32 = xb.astype(jnp.float32)

    # ---- Q/K/V projections: bf16 MXU, f32 accumulation; scale folded into q
    #      (an (B*S, H)-sized mul, NOT the scores tensor). One cast per tensor. ----
    q = (jnp.dot(xb, wq_ref[...], preferred_element_type=jnp.float32)
         + bq_ref[...]) * scale
    k = jnp.dot(xb, wk_ref[...], preferred_element_type=jnp.float32) + bk_ref[...]
    v = jnp.dot(xb, wv_ref[...], preferred_element_type=jnp.float32) + bv_ref[...]
    qb = q.astype(jnp.bfloat16)
    kb = k.astype(jnp.bfloat16)
    vb = v.astype(jnp.bfloat16)

    kbias = kbias_ref[...]                      # (B, 1, S) key-padding additive bias

    # ---- per-head attention: exact per-head contraction, no NHx wasted FLOPs ----
    ctx_heads = []
    for h in range(num_heads):                  # static unroll (NUM_HEADS small)
        lo, hi = h * hd, (h + 1) * hd
        qh = qb[:, lo:hi].reshape(batch, seq, hd)
        kh = kb[:, lo:hi].reshape(batch, seq, hd)
        vh = vb[:, lo:hi].reshape(batch, seq, hd)
        s = jnp.einsum('bqd,bkd->bqk', qh, kh,
                       preferred_element_type=jnp.float32) + kbias   # (B, S, S)
        m = jnp.max(s, axis=-1, keepdims=True)
        e = jnp.exp(s - m)
        p = e * pl.reciprocal(jnp.sum(e, axis=-1, keepdims=True), approx=True)
        ctx_heads.append(jnp.einsum('bqk,bkd->bqd', p.astype(jnp.bfloat16), vh,
                                    preferred_element_type=jnp.float32))
    ctx = jnp.concatenate(ctx_heads, axis=-1)            # (B, S, H)
    ctx2 = ctx.reshape(bs, hidden).astype(jnp.bfloat16)
    attn = jnp.dot(ctx2, wo_ref[...], preferred_element_type=jnp.float32) + bo_ref[...]

    # ---- add & layernorm 1 ----
    h1 = _layernorm(x_f32 + attn, ln1g_ref[...], ln1b_ref[...])

    # ---- feed-forward ----
    ff = jnp.dot(h1.astype(jnp.bfloat16), wi_ref[...],
                 preferred_element_type=jnp.float32) + bi_ref[...]
    ff = _gelu(ff)
    ff = jnp.dot(ff.astype(jnp.bfloat16), wf_ref[...],
                 preferred_element_type=jnp.float32) + bf_ref[...]

    # ---- add & layernorm 2 -> stays resident (bf16) in VMEM for the next layer ----
    y = _layernorm(h1 + ff, ln2g_ref[...], ln2b_ref[...])
    x_scr[...] = y.astype(jnp.bfloat16)

    # ---- last iteration: CLS pooling + pre_classifier -> ReLU -> classifier ----
    @pl.when(layer == pl.num_programs(0) - 1)
    def _():
        pooled = y.reshape(batch, seq, hidden)[:, 0, :]          # hidden_state[:, 0]
        hcls = jnp.dot(pooled.astype(jnp.bfloat16), prew_ref[...],
                       preferred_element_type=jnp.float32) + preb_ref[...]
        hcls = jnp.maximum(hcls, 0.0)
        # dropout(p=0.3) is identity at inference time
        logits_ref[...] = (jnp.dot(hcls.astype(jnp.bfloat16), clsw_ref[...],
                                   preferred_element_type=jnp.float32)
                           + clsb_ref[...]).astype(logits_ref.dtype)


# ----------------------------- pallas_call wrapper -------------------------------
def _fused_forward_call(x0, key_bias, params, batch, seq):
    bs = batch * seq
    H, I, L = HIDDEN, INTERMEDIATE, NUM_LAYERS

    const2 = lambda shape: pl.BlockSpec(shape, lambda l: (0, 0))
    const3 = lambda shape: pl.BlockSpec(shape, lambda l: (0, 0, 0))
    # Per-layer stacked weights streamed (double-buffered) via index_map.
    perlayer = lambda *tail: pl.BlockSpec((None,) + tail, lambda l: (l, 0, 0))

    in_specs = [
        const2((bs, H)),                           # LN'ed embeddings (bf16), read at l == 0
        const3((batch, 1, seq)),                   # key-padding bias, O(B*S)
        perlayer(H, H), perlayer(1, H),            # wq, bq
        perlayer(H, H), perlayer(1, H),            # wk, bk
        perlayer(H, H), perlayer(1, H),            # wv, bv
        perlayer(H, H), perlayer(1, H),            # wo, bo
        perlayer(1, H), perlayer(1, H),            # ln1 gamma / beta
        perlayer(H, I), perlayer(1, I),            # wi, bi
        perlayer(I, H), perlayer(1, H),            # wf, bf
        perlayer(1, H), perlayer(1, H),            # ln2 gamma / beta
        const2((H, H)), const2((1, H)),            # pre_classifier
        const2((H, CLS_PAD)), const2((1, CLS_PAD)),  # classifier (lane-padded)
    ]

    args = (x0, key_bias,
            params['wq'], params['bq'], params['wk'], params['bk'],
            params['wv'], params['bv'], params['wo'], params['bo'],
            params['ln1g'], params['ln1b'], params['wi'], params['bi'],
            params['wf'], params['bf'], params['ln2g'], params['ln2b'],
            params['pre_w'], params['pre_b'], params['cls_w'], params['cls_b'])

    grid_spec = pltpu.PrefetchScalarGridSpec(
        num_scalar_prefetch=0,
        grid=(L,),
        in_specs=in_specs,
        out_specs=pl.BlockSpec((batch, CLS_PAD), lambda l: (0, 0)),
        scratch_shapes=[pltpu.VMEM((bs, H), jnp.bfloat16)],   # bf16 residual stream
    )

    kernel = functools.partial(fused_roberta_kernel,
                               num_heads=NUM_HEADS, batch=batch, seq=seq)

    return pl.pallas_call(
        kernel,
        out_shape=jax.ShapeDtypeStruct((batch, CLS_PAD), jnp.float32),
        grid_spec=grid_spec,
        compiler_params=pltpu.CompilerParams(
            dimension_semantics=("arbitrary",),     # layers are sequential
            # Ample at toy scale; at real H=768/I=3072 compute this explicitly
            # (2x layer weights + residual + attention scratch) per chip generation.
            vmem_limit_bytes=32 * 1024 * 1024,
        ),
    )(*args)


# ----------------------------- parameters ----------------------------------------
def _w(key, shape):
    return jax.random.normal(key, shape, jnp.float32) * 0.02


def init_params(key):
    ks = jax.random.split(key, 12)
    L, H, I = NUM_LAYERS, HIDDEN, INTERMEDIATE
    p = {
        'word_emb': _w(ks[0], (VOCAB, H)),
        'pos_emb': _w(ks[1], (MAX_POS, H)),
        'type_emb': _w(ks[2], (1, H)),
        'emb_ln_g': jnp.ones((1, H), jnp.float32),
        'emb_ln_b': jnp.zeros((1, H), jnp.float32),
        # stacked per-layer weights (leading dim = layer); bf16 for the MXU
        'wq': _w(ks[3], (L, H, H)).astype(jnp.bfloat16),
        'wk': _w(ks[4], (L, H, H)).astype(jnp.bfloat16),
        'wv': _w(ks[5], (L, H, H)).astype(jnp.bfloat16),
        'wo': _w(ks[6], (L, H, H)).astype(jnp.bfloat16),
        'wi': _w(ks[7], (L, H, I)).astype(jnp.bfloat16),
        'wf': _w(ks[8], (L, I, H)).astype(jnp.bfloat16),
        'bq': jnp.zeros((L, 1, H), jnp.float32),
        'bk': jnp.zeros((L, 1, H), jnp.float32),
        'bv': jnp.zeros((L, 1, H), jnp.float32),
        'bo': jnp.zeros((L, 1, H), jnp.float32),
        'bi': jnp.zeros((L, 1, I), jnp.float32),
        'bf': jnp.zeros((L, 1, H), jnp.float32),
        'ln1g': jnp.ones((L, 1, H), jnp.float32),
        'ln1b': jnp.zeros((L, 1, H), jnp.float32),
        'ln2g': jnp.ones((L, 1, H), jnp.float32),
        'ln2b': jnp.zeros((L, 1, H), jnp.float32),
        # classification head (768->768 / 768->10 analog)
        'pre_w': _w(ks[9], (H, H)).astype(jnp.bfloat16),
        'pre_b': jnp.zeros((1, H), jnp.float32),
        'cls_b': jnp.zeros((1, CLS_PAD), jnp.float32),
    }
    cls_w = jnp.zeros((H, CLS_PAD), jnp.float32).at[:, :NUM_CLASSES].set(
        _w(ks[10], (H, NUM_CLASSES)))
    p['cls_w'] = cls_w.astype(jnp.bfloat16)          # lane-padded classifier weight
    return p


# ----------------------------- forward -------------------------------------------
def roberta_class_forward(params, input_ids, attention_mask):
    B, S = input_ids.shape
    H = HIDDEN

    # Embedding gather + sum + embedding LayerNorm in plain JAX (one-off, cheap);
    # the kernel's bf16 residual stream is seeded from this at layer 0.
    # TODO(synk): RoBERTa padding_idx+1 position offset omitted (positions 0..S-1).
    emb = (params['word_emb'][input_ids]
           + params['pos_emb'][:S][None, :, :]
           + params['type_emb'][0][None, None, :])          # (B, S, H) f32
    mu = jnp.mean(emb, axis=-1, keepdims=True)
    var = jnp.mean((emb - mu) ** 2, axis=-1, keepdims=True)
    emb = ((emb - mu) * jax.lax.rsqrt(var + LN_EPS)
           * params['emb_ln_g'][0] + params['emb_ln_b'][0])
    x0 = emb.reshape(B * S, H).astype(jnp.bfloat16)

    # Key-padding additive bias (HF extended-attention-mask convention), O(B*S);
    # broadcast over query positions and heads happens inside the kernel.
    key_bias = ((1.0 - attention_mask.astype(jnp.float32)) * NEG_INF).reshape(B, 1, S)

    logits_padded = _fused_forward_call(x0, key_bias, params, B, S)
    return logits_padded[:, :NUM_CLASSES]


# ----------------------------- main ----------------------------------------------
if __name__ == "__main__":
    key = jax.random.PRNGKey(0)
    k_param, k_ids = jax.random.split(key)
    params = init_params(k_param)

    input_ids = jax.random.randint(k_ids, (BATCH, SEQ), 0, VOCAB, dtype=jnp.int32)
    attention_mask = jnp.ones((BATCH, SEQ), jnp.int32)
    attention_mask = attention_mask.at[1, SEQ - 2:].set(0)   # some padding in row 1

    fwd = jax.jit(roberta_class_forward)
    logits = jax.block_until_ready(fwd(params, input_ids, attention_mask))

    assert logits.shape == (BATCH, NUM_CLASSES)
    assert bool(jnp.all(jnp.isfinite(logits)))
    print("KERNEL_OK")
</pallas_src>

<mosaic_0001>
module attributes {stable_mosaic.version = 11 : i64} {
  func.func @fused_roberta_kernel(%arg0: i32, %arg1: memref<16x128xbf16, #tpu.memory_space<vmem>>, %arg2: memref<2x1x8xf32, #tpu.memory_space<vmem>>, %arg3: memref<1x128x128xbf16, #tpu.memory_space<vmem>>, %arg4: memref<1x1x128xf32, #tpu.memory_space<vmem>>, %arg5: memref<1x128x128xbf16, #tpu.memory_space<vmem>>, %arg6: memref<1x1x128xf32, #tpu.memory_space<vmem>>, %arg7: memref<1x128x128xbf16, #tpu.memory_space<vmem>>, %arg8: memref<1x1x128xf32, #tpu.memory_space<vmem>>, %arg9: memref<1x128x128xbf16, #tpu.memory_space<vmem>>, %arg10: memref<1x1x128xf32, #tpu.memory_space<vmem>>, %arg11: memref<1x1x128xf32, #tpu.memory_space<vmem>>, %arg12: memref<1x1x128xf32, #tpu.memory_space<vmem>>, %arg13: memref<1x128x256xbf16, #tpu.memory_space<vmem>>, %arg14: memref<1x1x256xf32, #tpu.memory_space<vmem>>, %arg15: memref<1x256x128xbf16, #tpu.memory_space<vmem>>, %arg16: memref<1x1x128xf32, #tpu.memory_space<vmem>>, %arg17: memref<1x1x128xf32, #tpu.memory_space<vmem>>, %arg18: memref<1x1x128xf32, #tpu.memory_space<vmem>>, %arg19: memref<128x128xbf16, #tpu.memory_space<vmem>>, %arg20: memref<1x128xf32, #tpu.memory_space<vmem>>, %arg21: memref<128x128xbf16, #tpu.memory_space<vmem>>, %arg22: memref<1x128xf32, #tpu.memory_space<vmem>>, %arg23: memref<2x128xf32, #tpu.memory_space<vmem>>, %arg24: memref<16x128xbf16, #tpu.memory_space<vmem>>) attributes {dimension_semantics = [#tpu.dimension_semantics<arbitrary>], iteration_bounds = array<i64: 2>, scalar_prefetch = 0 : i64, scratch_operands = 1 : i64, tpu.core_type = #tpu.core_type<tc>, window_params = [{pipeline_mode = #tpu.pipeline_mode<synchronous>, transform_indices = @transform_0, window_bounds = array<i64: 16, 128>}, {pipeline_mode = #tpu.pipeline_mode<synchronous>, transform_indices = @transform_1, window_bounds = array<i64: 2, 1, 8>}, {transform_indices = @transform_2, window_bounds = array<i64: 1, 128, 128>}, {transform_indices = @transform_3, window_bounds = array<i64: 1, 1, 128>}, {transform_indices = @transform_4, window_bounds = array<i64: 1, 128, 128>}, {transform_indices = @transform_5, window_bounds = array<i64: 1, 1, 128>}, {transform_indices = @transform_6, window_bounds = array<i64: 1, 128, 128>}, {transform_indices = @transform_7, window_bounds = array<i64: 1, 1, 128>}, {transform_indices = @transform_8, window_bounds = array<i64: 1, 128, 128>}, {transform_indices = @transform_9, window_bounds = array<i64: 1, 1, 128>}, {transform_indices = @transform_10, window_bounds = array<i64: 1, 1, 128>}, {transform_indices = @transform_11, window_bounds = array<i64: 1, 1, 128>}, {transform_indices = @transform_12, window_bounds = array<i64: 1, 128, 256>}, {transform_indices = @transform_13, window_bounds = array<i64: 1, 1, 256>}, {transform_indices = @transform_14, window_bounds = array<i64: 1, 256, 128>}, {transform_indices = @transform_15, window_bounds = array<i64: 1, 1, 128>}, {transform_indices = @transform_16, window_bounds = array<i64: 1, 1, 128>}, {transform_indices = @transform_17, window_bounds = array<i64: 1, 1, 128>}, {pipeline_mode = #tpu.pipeline_mode<synchronous>, transform_indices = @transform_18, window_bounds = array<i64: 128, 128>}, {pipeline_mode = #tpu.pipeline_mode<synchronous>, transform_indices = @transform_19, window_bounds = array<i64: 1, 128>}, {pipeline_mode = #tpu.pipeline_mode<synchronous>, transform_indices = @transform_20, window_bounds = array<i64: 128, 128>}, {pipeline_mode = #tpu.pipeline_mode<synchronous>, transform_indices = @transform_21, window_bounds = array<i64: 1, 128>}, {pipeline_mode = #tpu.pipeline_mode<synchronous>, transform_indices = @transform_22, window_bounds = array<i64: 2, 128>}]} {
    %c0_i32 = arith.constant 0 : i32
    %0 = arith.cmpi eq, %arg0, %c0_i32 : i32
    %1 = arith.extui %0 : i1 to i32
    %c0_i32_0 = arith.constant 0 : i32
    %2 = arith.cmpi ne, %1, %c0_i32_0 : i32
    scf.if %2 {
      %c0_92 = arith.constant 0 : index
      %c0_93 = arith.constant 0 : index
      %214 = vector.load %arg1[%c0_92, %c0_93] : memref<16x128xbf16, #tpu.memory_space<vmem>>, vector<16x128xbf16>
      %c0_94 = arith.constant 0 : index
      %c0_95 = arith.constant 0 : index
      %215 = vector.load %arg24[%c0_94, %c0_95] : memref<16x128xbf16, #tpu.memory_space<vmem>>, vector<16x128xbf16>
      tpu.vector_store %arg24[%c0_94, %c0_95], %214 {strides = array<i32>} : memref<16x128xbf16, #tpu.memory_space<vmem>>, vector<16x128xbf16>,
    } else {
    }
    %c0 = arith.constant 0 : index
    %c0_1 = arith.constant 0 : index
    %3 = vector.load %arg24[%c0, %c0_1] : memref<16x128xbf16, #tpu.memory_space<vmem>>, vector<16x128xbf16>
    %4 = arith.extf %3 : vector<16x128xbf16> to vector<16x128xf32>
    %c0_2 = arith.constant 0 : index
    %c0_3 = arith.constant 0 : index
    %c0_4 = arith.constant 0 : index
    %5 = vector.load %arg3[%c0_2, %c0_3, %c0_4] : memref<1x128x128xbf16, #tpu.memory_space<vmem>>, vector<1x128x128xbf16>
    %6 = vector.shape_cast %5 : vector<1x128x128xbf16> to vector<128x128xbf16>
    %cst = arith.constant dense<0.000000e+00> : vector<16x128xf32>
    %7 = tpu.matmul %3, %6, %cst {dimension_numbers = #tpu.dot_dimension_numbers<[1], [0], [0], [1], [0, 0, 1, 1], [], []>} : vector<16x128xbf16>, vector<128x128xbf16>, vector<16x128xf32> -> vector<16x128xf32>
    %c0_5 = arith.constant 0 : index
    %c0_6 = arith.constant 0 : index
    %c0_7 = arith.constant 0 : index
    %8 = vector.load %arg4[%c0_5, %c0_6, %c0_7] : memref<1x1x128xf32, #tpu.memory_space<vmem>>, vector<1x1x128xf32>
    %9 = vector.shape_cast %8 : vector<1x1x128xf32> to vector<1x128xf32>
    %10 = vector.broadcast %9 : vector<1x128xf32> to vector<16x128xf32>
    %11 = arith.addf %7, %10 : vector<16x128xf32>
    %cst_8 = arith.constant 0.176776692 : f32
    %12 = vector.broadcast %cst_8 : f32 to vector<16x128xf32>
    %13 = arith.mulf %11, %12 : vector<16x128xf32>
    %c0_9 = arith.constant 0 : index
    %c0_10 = arith.constant 0 : index
    %c0_11 = arith.constant 0 : index
    %14 = vector.load %arg5[%c0_9, %c0_10, %c0_11] : memref<1x128x128xbf16, #tpu.memory_space<vmem>>, vector<1x128x128xbf16>
    %15 = vector.shape_cast %14 : vector<1x128x128xbf16> to vector<128x128xbf16>
    %cst_12 = arith.constant dense<0.000000e+00> : vector<16x128xf32>
    %16 = tpu.matmul %3, %15, %cst_12 {dimension_numbers = #tpu.dot_dimension_numbers<[1], [0], [0], [1], [0, 0, 1, 1], [], []>} : vector<16x128xbf16>, vector<128x128xbf16>, vector<16x128xf32> -> vector<16x128xf32>
    %c0_13 = arith.constant 0 : index
    %c0_14 = arith.constant 0 : index
    %c0_15 = arith.constant 0 : index
    %17 = vector.load %arg6[%c0_13, %c0_14, %c0_15] : memref<1x1x128xf32, #tpu.memory_space<vmem>>, vector<1x1x128xf32>
    %18 = vector.shape_cast %17 : vector<1x1x128xf32> to vector<1x128xf32>
    %19 = vector.broadcast %18 : vector<1x128xf32> to vector<16x128xf32>
    %20 = arith.addf %16, %19 : vector<16x128xf32>
    %c0_16 = arith.constant 0 : index
    %c0_17 = arith.constant 0 : index
    %c0_18 = arith.constant 0 : index
    %21 = vector.load %arg7[%c0_16, %c0_17, %c0_18] : memref<1x128x128xbf16, #tpu.memory_space<vmem>>, vector<1x128x128xbf16>
    %22 = vector.shape_cast %21 : vector<1x128x128xbf16> to vector<128x128xbf16>
    %cst_19 = arith.constant dense<0.000000e+00> : vector<16x128xf32>
    %23 = tpu.matmul %3, %22, %cst_19 {dimension_numbers = #tpu.dot_dimension_numbers<[1], [0], [0], [1], [0, 0, 1, 1], [], []>} : vector<16x128xbf16>, vector<128x128xbf16>, vector<16x128xf32> -> vector<16x128xf32>
    %c0_20 = arith.constant 0 : index
    %c0_21 = arith.constant 0 : index
    %c0_22 = arith.constant 0 : index
    %24 = vector.load %arg8[%c0_20, %c0_21, %c0_22] : memref<1x1x128xf32, #tpu.memory_space<vmem>>, vector<1x1x128xf32>
    %25 = vector.shape_cast %24 : vector<1x1x128xf32> to vector<1x128xf32>
    %26 = vector.broadcast %25 : vector<1x128xf32> to vector<16x128xf32>
    %27 = arith.addf %23, %26 : vector<16x128xf32>
    %28 = arith.truncf %13 : vector<16x128xf32> to vector<16x128xbf16>
    %29 = arith.truncf %20 : vector<16x128xf32> to vector<16x128xbf16>
    %30 = arith.truncf %27 : vector<16x128xf32> to vector<16x128xbf16>
    %c0_23 = arith.constant 0 : index
    %c0_24 = arith.constant 0 : index
    %c0_25 = arith.constant 0 : index
    %31 = vector.load %arg2[%c0_23, %c0_24, %c0_25] : memref<2x1x8xf32, #tpu.memory_space<vmem>>, vector<2x1x8xf32>
    %32 = vector.extract_strided_slice %28 {offsets = [0, 0], sizes = [16, 32], strides = [1, 1]} : vector<16x128xbf16> to vector<16x32xbf16>
    %33 = vector.shape_cast %32 : vector<16x32xbf16> to vector<2x8x32xbf16>
    %34 = vector.extract_strided_slice %29 {offsets = [0, 0], sizes = [16, 32], strides = [1, 1]} : vector<16x128xbf16> to vector<16x32xbf16>
    %35 = vector.shape_cast %34 : vector<16x32xbf16> to vector<2x8x32xbf16>
    %36 = vector.extract_strided_slice %30 {offsets = [0, 0], sizes = [16, 32], strides = [1, 1]} : vector<16x128xbf16> to vector<16x32xbf16>
    %37 = vector.shape_cast %36 : vector<16x32xbf16> to vector<2x8x32xbf16>
    "tpu.trace_start"() <{level = 10 : i32, message = "bqd,bkd->bqk"}> : () -> ()
    %cst_26 = arith.constant dense<0.000000e+00> : vector<2x8x8xf32>
    %38 = tpu.matmul %33, %35, %cst_26 {dimension_numbers = #tpu.dot_dimension_numbers<[2], [2], [1], [1], [0, 0, 0, 1, 1, 1], [0], [0]>} : vector<2x8x32xbf16>, vector<2x8x32xbf16>, vector<2x8x8xf32> -> vector<2x8x8xf32>
    "tpu.trace_stop"() : () -> ()
    %39 = vector.broadcast %31 : vector<2x1x8xf32> to vector<2x8x8xf32>
    %40 = arith.addf %38, %39 : vector<2x8x8xf32>
    %cst_27 = arith.constant dense<0xFF800000> : vector<2x8xf32>
    %41 = vector.multi_reduction <maximumf>, %40, %cst_27 [2] : vector<2x8x8xf32> to vector<2x8xf32>
    %42 = vector.shape_cast %41 : vector<2x8xf32> to vector<2x8x1xf32>
    %43 = vector.broadcast %42 : vector<2x8x1xf32> to vector<2x8x8xf32>
    %44 = arith.subf %40, %43 : vector<2x8x8xf32>
    %45 = math.exp %44 : vector<2x8x8xf32>
    %cst_28 = arith.constant dense<0.000000e+00> : vector<2x8xf32>
    %46 = vector.multi_reduction <add>, %45, %cst_28 [2] : vector<2x8x8xf32> to vector<2x8xf32>
    %47 = vector.shape_cast %46 : vector<2x8xf32> to vector<2x8x1xf32>
    %48 = tpu.reciprocal %47 {approx = true} : vector<2x8x1xf32> -> vector<2x8x1xf32>
    %49 = vector.broadcast %48 : vector<2x8x1xf32> to vector<2x8x8xf32>
    %50 = arith.mulf %45, %49 : vector<2x8x8xf32>
    %51 = arith.truncf %50 : vector<2x8x8xf32> to vector<2x8x8xbf16>
    "tpu.trace_start"() <{level = 10 : i32, message = "bqk,bkd->bqd"}> : () -> ()
    %cst_29 = arith.constant dense<0.000000e+00> : vector<2x8x32xf32>
    %52 = tpu.matmul %51, %37, %cst_29 {dimension_numbers = #tpu.dot_dimension_numbers<[2], [1], [1], [2], [0, 0, 0, 1, 1, 2], [0], [0]>} : vector<2x8x8xbf16>, vector<2x8x32xbf16>, vector<2x8x32xf32> -> vector<2x8x32xf32>
    "tpu.trace_stop"() : () -> ()
    %53 = vector.extract_strided_slice %28 {offsets = [0, 32], sizes = [16, 32], strides = [1, 1]} : vector<16x128xbf16> to vector<16x32xbf16>
    %54 = vector.shape_cast %53 : vector<16x32xbf16> to vector<2x8x32xbf16>
    %55 = vector.extract_strided_slice %29 {offsets = [0, 32], sizes = [16, 32], strides = [1, 1]} : vector<16x128xbf16> to vector<16x32xbf16>
    %56 = vector.shape_cast %55 : vector<16x32xbf16> to vector<2x8x32xbf16>
    %57 = vector.extract_strided_slice %30 {offsets = [0, 32], sizes = [16, 32], strides = [1, 1]} : vector<16x128xbf16> to vector<16x32xbf16>
    %58 = vector.shape_cast %57 : vector<16x32xbf16> to vector<2x8x32xbf16>
    "tpu.trace_start"() <{level = 10 : i32, message = "bqd,bkd->bqk"}> : () -> ()
    %cst_30 = arith.constant dense<0.000000e+00> : vector<2x8x8xf32>
    %59 = tpu.matmul %54, %56, %cst_30 {dimension_numbers = #tpu.dot_dimension_numbers<[2], [2], [1], [1], [0, 0, 0, 1, 1, 1], [0], [0]>} : vector<2x8x32xbf16>, vector<2x8x32xbf16>, vector<2x8x8xf32> -> vector<2x8x8xf32>
    "tpu.trace_stop"() : () -> ()
    %60 = vector.broadcast %31 : vector<2x1x8xf32> to vector<2x8x8xf32>
    %61 = arith.addf %59, %60 : vector<2x8x8xf32>
    %cst_31 = arith.constant dense<0xFF800000> : vector<2x8xf32>
    %62 = vector.multi_reduction <maximumf>, %61, %cst_31 [2] : vector<2x8x8xf32> to vector<2x8xf32>
    %63 = vector.shape_cast %62 : vector<2x8xf32> to vector<2x8x1xf32>
    %64 = vector.broadcast %63 : vector<2x8x1xf32> to vector<2x8x8xf32>
    %65 = arith.subf %61, %64 : vector<2x8x8xf32>
    %66 = math.exp %65 : vector<2x8x8xf32>
    %cst_32 = arith.constant dense<0.000000e+00> : vector<2x8xf32>
    %67 = vector.multi_reduction <add>, %66, %cst_32 [2] : vector<2x8x8xf32> to vector<2x8xf32>
    %68 = vector.shape_cast %67 : vector<2x8xf32> to vector<2x8x1xf32>
    %69 = tpu.reciprocal %68 {approx = true} : vector<2x8x1xf32> -> vector<2x8x1xf32>
    %70 = vector.broadcast %69 : vector<2x8x1xf32> to vector<2x8x8xf32>
    %71 = arith.mulf %66, %70 : vector<2x8x8xf32>
    %72 = arith.truncf %71 : vector<2x8x8xf32> to vector<2x8x8xbf16>
    "tpu.trace_start"() <{level = 10 : i32, message = "bqk,bkd->bqd"}> : () -> ()
    %cst_33 = arith.constant dense<0.000000e+00> : vector<2x8x32xf32>
    %73 = tpu.matmul %72, %58, %cst_33 {dimension_numbers = #tpu.dot_dimension_numbers<[2], [1], [1], [2], [0, 0, 0, 1, 1, 2], [0], [0]>} : vector<2x8x8xbf16>, vector<2x8x32xbf16>, vector<2x8x32xf32> -> vector<2x8x32xf32>
    "tpu.trace_stop"() : () -> ()
    %74 = vector.extract_strided_slice %28 {offsets = [0, 64], sizes = [16, 32], strides = [1, 1]} : vector<16x128xbf16> to vector<16x32xbf16>
    %75 = vector.shape_cast %74 : vector<16x32xbf16> to vector<2x8x32xbf16>
    %76 = vector.extract_strided_slice %29 {offsets = [0, 64], sizes = [16, 32], strides = [1, 1]} : vector<16x128xbf16> to vector<16x32xbf16>
    %77 = vector.shape_cast %76 : vector<16x32xbf16> to vector<2x8x32xbf16>
    %78 = vector.extract_strided_slice %30 {offsets = [0, 64], sizes = [16, 32], strides = [1, 1]} : vector<16x128xbf16> to vector<16x32xbf16>
    %79 = vector.shape_cast %78 : vector<16x32xbf16> to vector<2x8x32xbf16>
    "tpu.trace_start"() <{level = 10 : i32, message = "bqd,bkd->bqk"}> : () -> ()
    %cst_34 = arith.constant dense<0.000000e+00> : vector<2x8x8xf32>
    %80 = tpu.matmul %75, %77, %cst_34 {dimension_numbers = #tpu.dot_dimension_numbers<[2], [2], [1], [1], [0, 0, 0, 1, 1, 1], [0], [0]>} : vector<2x8x32xbf16>, vector<2x8x32xbf16>, vector<2x8x8xf32> -> vector<2x8x8xf32>
    "tpu.trace_stop"() : () -> ()
    %81 = vector.broadcast %31 : vector<2x1x8xf32> to vector<2x8x8xf32>
    %82 = arith.addf %80, %81 : vector<2x8x8xf32>
    %cst_35 = arith.constant dense<0xFF800000> : vector<2x8xf32>
    %83 = vector.multi_reduction <maximumf>, %82, %cst_35 [2] : vector<2x8x8xf32> to vector<2x8xf32>
    %84 = vector.shape_cast %83 : vector<2x8xf32> to vector<2x8x1xf32>
    %85 = vector.broadcast %84 : vector<2x8x1xf32> to vector<2x8x8xf32>
    %86 = arith.subf %82, %85 : vector<2x8x8xf32>
    %87 = math.exp %86 : vector<2x8x8xf32>
    %cst_36 = arith.constant dense<0.000000e+00> : vector<2x8xf32>
    %88 = vector.multi_reduction <add>, %87, %cst_36 [2] : vector<2x8x8xf32> to vector<2x8xf32>
    %89 = vector.shape_cast %88 : vector<2x8xf32> to vector<2x8x1xf32>
    %90 = tpu.reciprocal %89 {approx = true} : vector<2x8x1xf32> -> vector<2x8x1xf32>
    %91 = vector.broadcast %90 : vector<2x8x1xf32> to vector<2x8x8xf32>
    %92 = arith.mulf %87, %91 : vector<2x8x8xf32>
    %93 = arith.truncf %92 : vector<2x8x8xf32> to vector<2x8x8xbf16>
    "tpu.trace_start"() <{level = 10 : i32, message = "bqk,bkd->bqd"}> : () -> ()
    %cst_37 = arith.constant dense<0.000000e+00> : vector<2x8x32xf32>
    %94 = tpu.matmul %93, %79, %cst_37 {dimension_numbers = #tpu.dot_dimension_numbers<[2], [1], [1], [2], [0, 0, 0, 1, 1, 2], [0], [0]>} : vector<2x8x8xbf16>, vector<2x8x32xbf16>, vector<2x8x32xf32> -> vector<2x8x32xf32>
    "tpu.trace_stop"() : () -> ()
    %95 = vector.extract_strided_slice %28 {offsets = [0, 96], sizes = [16, 32], strides = [1, 1]} : vector<16x128xbf16> to vector<16x32xbf16>
    %96 = vector.shape_cast %95 : vector<16x32xbf16> to vector<2x8x32xbf16>
    %97 = vector.extract_strided_slice %29 {offsets = [0, 96], sizes = [16, 32], strides = [1, 1]} : vector<16x128xbf16> to vector<16x32xbf16>
    %98 = vector.shape_cast %97 : vector<16x32xbf16> to vector<2x8x32xbf16>
    %99 = vector.extract_strided_slice %30 {offsets = [0, 96], sizes = [16, 32], strides = [1, 1]} : vector<16x128xbf16> to vector<16x32xbf16>
    %100 = vector.shape_cast %99 : vector<16x32xbf16> to vector<2x8x32xbf16>
    "tpu.trace_start"() <{level = 10 : i32, message = "bqd,bkd->bqk"}> : () -> ()
    %cst_38 = arith.constant dense<0.000000e+00> : vector<2x8x8xf32>
    %101 = tpu.matmul %96, %98, %cst_38 {dimension_numbers = #tpu.dot_dimension_numbers<[2], [2], [1], [1], [0, 0, 0, 1, 1, 1], [0], [0]>} : vector<2x8x32xbf16>, vector<2x8x32xbf16>, vector<2x8x8xf32> -> vector<2x8x8xf32>
    "tpu.trace_stop"() : () -> ()
    %102 = vector.broadcast %31 : vector<2x1x8xf32> to vector<2x8x8xf32>
    %103 = arith.addf %101, %102 : vector<2x8x8xf32>
    %cst_39 = arith.constant dense<0xFF800000> : vector<2x8xf32>
    %104 = vector.multi_reduction <maximumf>, %103, %cst_39 [2] : vector<2x8x8xf32> to vector<2x8xf32>
    %105 = vector.shape_cast %104 : vector<2x8xf32> to vector<2x8x1xf32>
    %106 = vector.broadcast %105 : vector<2x8x1xf32> to vector<2x8x8xf32>
    %107 = arith.subf %103, %106 : vector<2x8x8xf32>
    %108 = math.exp %107 : vector<2x8x8xf32>
    %cst_40 = arith.constant dense<0.000000e+00> : vector<2x8xf32>
    %109 = vector.multi_reduction <add>, %108, %cst_40 [2] : vector<2x8x8xf32> to vector<2x8xf32>
    %110 = vector.shape_cast %109 : vector<2x8xf32> to vector<2x8x1xf32>
    %111 = tpu.reciprocal %110 {approx = true} : vector<2x8x1xf32> -> vector<2x8x1xf32>
    %112 = vector.broadcast %111 : vector<2x8x1xf32> to vector<2x8x8xf32>
    %113 = arith.mulf %108, %112 : vector<2x8x8xf32>
    %114 = arith.truncf %113 : vector<2x8x8xf32> to vector<2x8x8xbf16>
    "tpu.trace_start"() <{level = 10 : i32, message = "bqk,bkd->bqd"}> : () -> ()
    %cst_41 = arith.constant dense<0.000000e+00> : vector<2x8x32xf32>
    %115 = tpu.matmul %114, %100, %cst_41 {dimension_numbers = #tpu.dot_dimension_numbers<[2], [1], [1], [2], [0, 0, 0, 1, 1, 2], [0], [0]>} : vector<2x8x8xbf16>, vector<2x8x32xbf16>, vector<2x8x32xf32> -> vector<2x8x32xf32>
    "tpu.trace_stop"() : () -> ()
    %116 = tpu.concatenate %52, %73, %94, %115 in 2 : vector<2x8x32xf32>, vector<2x8x32xf32>, vector<2x8x32xf32>, vector<2x8x32xf32> -> vector<2x8x128xf32>
    %117 = vector.shape_cast %116 : vector<2x8x128xf32> to vector<16x128xf32>
    %118 = arith.truncf %117 : vector<16x128xf32> to vector<16x128xbf16>
    %c0_42 = arith.constant 0 : index
    %c0_43 = arith.constant 0 : index
    %c0_44 = arith.constant 0 : index
    %119 = vector.load %arg9[%c0_42, %c0_43, %c0_44] : memref<1x128x128xbf16, #tpu.memory_space<vmem>>, vector<1x128x128xbf16>
    %120 = vector.shape_cast %119 : vector<1x128x128xbf16> to vector<128x128xbf16>
    %cst_45 = arith.constant dense<0.000000e+00> : vector<16x128xf32>
    %121 = tpu.matmul %118, %120, %cst_45 {dimension_numbers = #tpu.dot_dimension_numbers<[1], [0], [0], [1], [0, 0, 1, 1], [], []>} : vector<16x128xbf16>, vector<128x128xbf16>, vector<16x128xf32> -> vector<16x128xf32>
    %c0_46 = arith.constant 0 : index
    %c0_47 = arith.constant 0 : index
    %c0_48 = arith.constant 0 : index
    %122 = vector.load %arg10[%c0_46, %c0_47, %c0_48] : memref<1x1x128xf32, #tpu.memory_space<vmem>>, vector<1x1x128xf32>
    %123 = vector.shape_cast %122 : vector<1x1x128xf32> to vector<1x128xf32>
    %124 = vector.broadcast %123 : vector<1x128xf32> to vector<16x128xf32>
    %125 = arith.addf %121, %124 : vector<16x128xf32>
    %126 = arith.addf %4, %125 : vector<16x128xf32>
    %c0_49 = arith.constant 0 : index
    %c0_50 = arith.constant 0 : index
    %c0_51 = arith.constant 0 : index
    %127 = vector.load %arg11[%c0_49, %c0_50, %c0_51] : memref<1x1x128xf32, #tpu.memory_space<vmem>>, vector<1x1x128xf32>
    %128 = vector.shape_cast %127 : vector<1x1x128xf32> to vector<1x128xf32>
    %c0_52 = arith.constant 0 : index
    %c0_53 = arith.constant 0 : index
    %c0_54 = arith.constant 0 : index
    %129 = vector.load %arg12[%c0_52, %c0_53, %c0_54] : memref<1x1x128xf32, #tpu.memory_space<vmem>>, vector<1x1x128xf32>
    %130 = vector.shape_cast %129 : vector<1x1x128xf32> to vector<1x128xf32>
    %cst_55 = arith.constant dense<0.000000e+00> : vector<16xf32>
    %131 = vector.multi_reduction <add>, %126, %cst_55 [1] : vector<16x128xf32> to vector<16xf32>
    %132 = vector.shape_cast %131 : vector<16xf32> to vector<16x1xf32>
    %cst_56 = arith.constant 1.280000e+02 : f32
    %133 = vector.broadcast %cst_56 : f32 to vector<16x1xf32>
    %134 = arith.divf %132, %133 : vector<16x1xf32>
    %135 = vector.broadcast %134 : vector<16x1xf32> to vector<16x128xf32>
    %136 = arith.subf %126, %135 : vector<16x128xf32>
    %137 = arith.mulf %136, %136 : vector<16x128xf32>
    %cst_57 = arith.constant dense<0.000000e+00> : vector<16xf32>
    %138 = vector.multi_reduction <add>, %137, %cst_57 [1] : vector<16x128xf32> to vector<16xf32>
    %139 = vector.shape_cast %138 : vector<16xf32> to vector<16x1xf32>
    %cst_58 = arith.constant 1.280000e+02 : f32
    %140 = vector.broadcast %cst_58 : f32 to vector<16x1xf32>
    %141 = arith.divf %139, %140 : vector<16x1xf32>
    %142 = vector.broadcast %134 : vector<16x1xf32> to vector<16x128xf32>
    %143 = arith.subf %126, %142 : vector<16x128xf32>
    %cst_59 = arith.constant 9.99999974E-6 : f32
    %144 = vector.broadcast %cst_59 : f32 to vector<16x1xf32>
    %145 = arith.addf %141, %144 : vector<16x1xf32>
    %146 = math.rsqrt %145 : vector<16x1xf32>
    %147 = vector.broadcast %146 : vector<16x1xf32> to vector<16x128xf32>
    %148 = arith.mulf %143, %147 : vector<16x128xf32>
    %149 = vector.broadcast %128 : vector<1x128xf32> to vector<16x128xf32>
    %150 = arith.mulf %148, %149 : vector<16x128xf32>
    %151 = vector.broadcast %130 : vector<1x128xf32> to vector<16x128xf32>
    %152 = arith.addf %150, %151 : vector<16x128xf32>
    %153 = arith.truncf %152 : vector<16x128xf32> to vector<16x128xbf16>
    %c0_60 = arith.constant 0 : index
    %c0_61 = arith.constant 0 : index
    %c0_62 = arith.constant 0 : index
    %154 = vector.load %arg13[%c0_60, %c0_61, %c0_62] : memref<1x128x256xbf16, #tpu.memory_space<vmem>>, vector<1x128x256xbf16>
    %155 = vector.shape_cast %154 : vector<1x128x256xbf16> to vector<128x256xbf16>
    %cst_63 = arith.constant dense<0.000000e+00> : vector<16x256xf32>
    %156 = tpu.matmul %153, %155, %cst_63 {dimension_numbers = #tpu.dot_dimension_numbers<[1], [0], [0], [1], [0, 0, 1, 1], [], []>} : vector<16x128xbf16>, vector<128x256xbf16>, vector<16x256xf32> -> vector<16x256xf32>
    %c0_64 = arith.constant 0 : index
    %c0_65 = arith.constant 0 : index
    %c0_66 = arith.constant 0 : index
    %157 = vector.load %arg14[%c0_64, %c0_65, %c0_66] : memref<1x1x256xf32, #tpu.memory_space<vmem>>, vector<1x1x256xf32>
    %158 = vector.shape_cast %157 : vector<1x1x256xf32> to vector<1x256xf32>
    %159 = vector.broadcast %158 : vector<1x256xf32> to vector<16x256xf32>
    %160 = arith.addf %156, %159 : vector<16x256xf32>
    %cst_67 = arith.constant 5.000000e-01 : f32
    %161 = vector.broadcast %cst_67 : f32 to vector<16x256xf32>
    %162 = arith.mulf %161, %160 : vector<16x256xf32>
    %cst_68 = arith.constant 4.471500e-02 : f32
    %163 = vector.broadcast %cst_68 : f32 to vector<16x256xf32>
    %164 = arith.mulf %163, %160 : vector<16x256xf32>
    %165 = arith.mulf %164, %160 : vector<16x256xf32>
    %166 = arith.mulf %165, %160 : vector<16x256xf32>
    %167 = arith.addf %160, %166 : vector<16x256xf32>
    %cst_69 = arith.constant 0.797884583 : f32
    %168 = vector.broadcast %cst_69 : f32 to vector<16x256xf32>
    %169 = arith.mulf %168, %167 : vector<16x256xf32>
    %170 = math.tanh %169 : vector<16x256xf32>
    %cst_70 = arith.constant 1.000000e+00 : f32
    %171 = vector.broadcast %cst_70 : f32 to vector<16x256xf32>
    %172 = arith.addf %171, %170 : vector<16x256xf32>
    %173 = arith.mulf %162, %172 : vector<16x256xf32>
    %174 = arith.truncf %173 : vector<16x256xf32> to vector<16x256xbf16>
    %c0_71 = arith.constant 0 : index
    %c0_72 = arith.constant 0 : index
    %c0_73 = arith.constant 0 : index
    %175 = vector.load %arg15[%c0_71, %c0_72, %c0_73] : memref<1x256x128xbf16, #tpu.memory_space<vmem>>, vector<1x256x128xbf16>
    %176 = vector.shape_cast %175 : vector<1x256x128xbf16> to vector<256x128xbf16>
    %cst_74 = arith.constant dense<0.000000e+00> : vector<16x128xf32>
    %177 = tpu.matmul %174, %176, %cst_74 {dimension_numbers = #tpu.dot_dimension_numbers<[1], [0], [0], [1], [0, 0, 1, 1], [], []>} : vector<16x256xbf16>, vector<256x128xbf16>, vector<16x128xf32> -> vector<16x128xf32>
    %c0_75 = arith.constant 0 : index
    %c0_76 = arith.constant 0 : index
    %c0_77 = arith.constant 0 : index
    %178 = vector.load %arg16[%c0_75, %c0_76, %c0_77] : memref<1x1x128xf32, #tpu.memory_space<vmem>>, vector<1x1x128xf32>
    %179 = vector.shape_cast %178 : vector<1x1x128xf32> to vector<1x128xf32>
    %180 = vector.broadcast %179 : vector<1x128xf32> to vector<16x128xf32>
    %181 = arith.addf %177, %180 : vector<16x128xf32>
    %182 = arith.addf %152, %181 : vector<16x128xf32>
    %c0_78 = arith.constant 0 : index
    %c0_79 = arith.constant 0 : index
    %c0_80 = arith.constant 0 : index
    %183 = vector.load %arg17[%c0_78, %c0_79, %c0_80] : memref<1x1x128xf32, #tpu.memory_space<vmem>>, vector<1x1x128xf32>
    %184 = vector.shape_cast %183 : vector<1x1x128xf32> to vector<1x128xf32>
    %c0_81 = arith.constant 0 : index
    %c0_82 = arith.constant 0 : index
    %c0_83 = arith.constant 0 : index
    %185 = vector.load %arg18[%c0_81, %c0_82, %c0_83] : memref<1x1x128xf32, #tpu.memory_space<vmem>>, vector<1x1x128xf32>
    %186 = vector.shape_cast %185 : vector<1x1x128xf32> to vector<1x128xf32>
    %cst_84 = arith.constant dense<0.000000e+00> : vector<16xf32>
    %187 = vector.multi_reduction <add>, %182, %cst_84 [1] : vector<16x128xf32> to vector<16xf32>
    %188 = vector.shape_cast %187 : vector<16xf32> to vector<16x1xf32>
    %cst_85 = arith.constant 1.280000e+02 : f32
    %189 = vector.broadcast %cst_85 : f32 to vector<16x1xf32>
    %190 = arith.divf %188, %189 : vector<16x1xf32>
    %191 = vector.broadcast %190 : vector<16x1xf32> to vector<16x128xf32>
    %192 = arith.subf %182, %191 : vector<16x128xf32>
    %193 = arith.mulf %192, %192 : vector<16x128xf32>
    %cst_86 = arith.constant dense<0.000000e+00> : vector<16xf32>
    %194 = vector.multi_reduction <add>, %193, %cst_86 [1] : vector<16x128xf32> to vector<16xf32>
    %195 = vector.shape_cast %194 : vector<16xf32> to vector<16x1xf32>
    %cst_87 = arith.constant 1.280000e+02 : f32
    %196 = vector.broadcast %cst_87 : f32 to vector<16x1xf32>
    %197 = arith.divf %195, %196 : vector<16x1xf32>
    %198 = vector.broadcast %190 : vector<16x1xf32> to vector<16x128xf32>
    %199 = arith.subf %182, %198 : vector<16x128xf32>
    %cst_88 = arith.constant 9.99999974E-6 : f32
    %200 = vector.broadcast %cst_88 : f32 to vector<16x1xf32>
    %201 = arith.addf %197, %200 : vector<16x1xf32>
    %202 = math.rsqrt %201 : vector<16x1xf32>
    %203 = vector.broadcast %202 : vector<16x1xf32> to vector<16x128xf32>
    %204 = arith.mulf %199, %203 : vector<16x128xf32>
    %205 = vector.broadcast %184 : vector<1x128xf32> to vector<16x128xf32>
    %206 = arith.mulf %204, %205 : vector<16x128xf32>
    %207 = vector.broadcast %186 : vector<1x128xf32> to vector<16x128xf32>
    %208 = arith.addf %206, %207 : vector<16x128xf32>
    %209 = arith.truncf %208 : vector<16x128xf32> to vector<16x128xbf16>
    %c0_89 = arith.constant 0 : index
    %c0_90 = arith.constant 0 : index
    %210 = vector.load %arg24[%c0_89, %c0_90] : memref<16x128xbf16, #tpu.memory_space<vmem>>, vector<16x128xbf16>
    tpu.vector_store %arg24[%c0_89, %c0_90], %209 {strides = array<i32>} : memref<16x128xbf16, #tpu.memory_space<vmem>>, vector<16x128xbf16>,
    %c1_i32 = arith.constant 1 : i32
    %211 = arith.cmpi eq, %arg0, %c1_i32 : i32
    %212 = arith.extui %211 : i1 to i32
    %c0_i32_91 = arith.constant 0 : i32
    %213 = arith.cmpi ne, %212, %c0_i32_91 : i32
    scf.if %213 {
      %214 = vector.shape_cast %208 : vector<16x128xf32> to vector<2x8x128xf32>
      %215 = vector.extract_strided_slice %214 {offsets = [0, 0, 0], sizes = [2, 1, 128], strides = [1, 1, 1]} : vector<2x8x128xf32> to vector<2x1x128xf32>
      %216 = vector.shape_cast %215 : vector<2x1x128xf32> to vector<2x128xf32>
      %217 = arith.truncf %216 : vector<2x128xf32> to vector<2x128xbf16>
      %c0_92 = arith.constant 0 : index
      %c0_93 = arith.constant 0 : index
      %218 = vector.load %arg19[%c0_92, %c0_93] : memref<128x128xbf16, #tpu.memory_space<vmem>>, vector<128x128xbf16>
      %cst_94 = arith.constant dense<0.000000e+00> : vector<2x128xf32>
      %219 = tpu.matmul %217, %218, %cst_94 {dimension_numbers = #tpu.dot_dimension_numbers<[1], [0], [0], [1], [0, 0, 1, 1], [], []>} : vector<2x128xbf16>, vector<128x128xbf16>, vector<2x128xf32> -> vector<2x128xf32>
      %c0_95 = arith.constant 0 : index
      %c0_96 = arith.constant 0 : index
      %220 = vector.load %arg20[%c0_95, %c0_96] : memref<1x128xf32, #tpu.memory_space<vmem>>, vector<1x128xf32>
      %221 = vector.broadcast %220 : vector<1x128xf32> to vector<2x128xf32>
      %222 = arith.addf %219, %221 : vector<2x128xf32>
      %cst_97 = arith.constant 0.000000e+00 : f32
      %223 = vector.broadcast %cst_97 : f32 to vector<2x128xf32>
      %224 = arith.maximumf %222, %223 : vector<2x128xf32>
      %225 = arith.truncf %224 : vector<2x128xf32> to vector<2x128xbf16>
      %c0_98 = arith.constant 0 : index
      %c0_99 = arith.constant 0 : index
      %226 = vector.load %arg21[%c0_98, %c0_99] : memref<128x128xbf16, #tpu.memory_space<vmem>>, vector<128x128xbf16>
      %cst_100 = arith.constant dense<0.000000e+00> : vector<2x128xf32>
      %227 = tpu.matmul %225, %226, %cst_100 {dimension_numbers = #tpu.dot_dimension_numbers<[1], [0], [0], [1], [0, 0, 1, 1], [], []>} : vector<2x128xbf16>, vector<128x128xbf16>, vector<2x128xf32> -> vector<2x128xf32>
      %c0_101 = arith.constant 0 : index
      %c0_102 = arith.constant 0 : index
      %228 = vector.load %arg22[%c0_101, %c0_102] : memref<1x128xf32, #tpu.memory_space<vmem>>, vector<1x128xf32>
      %229 = vector.broadcast %228 : vector<1x128xf32> to vector<2x128xf32>
      %230 = arith.addf %227, %229 : vector<2x128xf32>
      %c0_103 = arith.constant 0 : index
      %c0_104 = arith.constant 0 : index
      %231 = vector.load %arg23[%c0_103, %c0_104] : memref<2x128xf32, #tpu.memory_space<vmem>>, vector<2x128xf32>
      tpu.vector_store %arg23[%c0_103, %c0_104], %230 {strides = array<i32>} : memref<2x128xf32, #tpu.memory_space<vmem>>, vector<2x128xf32>,
    } else {
    }
    return
  }
  func.func @transform_0(%arg0: i32) -> (i32, i32) {
    %c0_i32 = arith.constant 0 : i32
    %c0_i32_0 = arith.constant 0 : i32
    %c0_i32_1 = arith.constant 0 : i32
    return %c0_i32, %c0_i32_0 : i32, i32
  }
  func.func @transform_1(%arg0: i32) -> (i32, i32, i32) {
    %c0_i32 = arith.constant 0 : i32
    %c0_i32_0 = arith.constant 0 : i32
    %c0_i32_1 = arith.constant 0 : i32
    %c0_i32_2 = arith.constant 0 : i32
    return %c0_i32, %c0_i32_0, %c0_i32_1 : i32, i32, i32
  }
  func.func @transform_2(%arg0: i32) -> (i32, i32, i32) {
    %c0_i32 = arith.constant 0 : i32
    %c0_i32_0 = arith.constant 0 : i32
    %c0_i32_1 = arith.constant 0 : i32
    return %arg0, %c0_i32, %c0_i32_0 : i32, i32, i32
  }
  func.func @transform_3(%arg0: i32) -> (i32, i32, i32) {
    %c0_i32 = arith.constant 0 : i32
    %c0_i32_0 = arith.constant 0 : i32
    %c0_i32_1 = arith.constant 0 : i32
    return %arg0, %c0_i32, %c0_i32_0 : i32, i32, i32
  }
  func.func @transform_4(%arg0: i32) -> (i32, i32, i32) {
    %c0_i32 = arith.constant 0 : i32
    %c0_i32_0 = arith.constant 0 : i32
    %c0_i32_1 = arith.constant 0 : i32
    return %arg0, %c0_i32, %c0_i32_0 : i32, i32, i32
  }
  func.func @transform_5(%arg0: i32) -> (i32, i32, i32) {
    %c0_i32 = arith.constant 0 : i32
    %c0_i32_0 = arith.constant 0 : i32
    %c0_i32_1 = arith.constant 0 : i32
    return %arg0, %c0_i32, %c0_i32_0 : i32, i32, i32
  }
  func.func @transform_6(%arg0: i32) -> (i32, i32, i32) {
    %c0_i32 = arith.constant 0 : i32
    %c0_i32_0 = arith.constant 0 : i32
    %c0_i32_1 = arith.constant 0 : i32
    return %arg0, %c0_i32, %c0_i32_0 : i32, i32, i32
  }
  func.func @transform_7(%arg0: i32) -> (i32, i32, i32) {
    %c0_i32 = arith.constant 0 : i32
    %c0_i32_0 = arith.constant 0 : i32
    %c0_i32_1 = arith.constant 0 : i32
    return %arg0, %c0_i32, %c0_i32_0 : i32, i32, i32
  }
  func.func @transform_8(%arg0: i32) -> (i32, i32, i32) {
    %c0_i32 = arith.constant 0 : i32
    %c0_i32_0 = arith.constant 0 : i32
    %c0_i32_1 = arith.constant 0 : i32
    return %arg0, %c0_i32, %c0_i32_0 : i32, i32, i32
  }
  func.func @transform_9(%arg0: i32) -> (i32, i32, i32) {
    %c0_i32 = arith.constant 0 : i32
    %c0_i32_0 = arith.constant 0 : i32
    %c0_i32_1 = arith.constant 0 : i32
    return %arg0, %c0_i32, %c0_i32_0 : i32, i32, i32
  }
  func.func @transform_10(%arg0: i32) -> (i32, i32, i32) {
    %c0_i32 = arith.constant 0 : i32
    %c0_i32_0 = arith.constant 0 : i32
    %c0_i32_1 = arith.constant 0 : i32
    return %arg0, %c0_i32, %c0_i32_0 : i32, i32, i32
  }
  func.func @transform_11(%arg0: i32) -> (i32, i32, i32) {
    %c0_i32 = arith.constant 0 : i32
    %c0_i32_0 = arith.constant 0 : i32
    %c0_i32_1 = arith.constant 0 : i32
    return %arg0, %c0_i32, %c0_i32_0 : i32, i32, i32
  }
  func.func @transform_12(%arg0: i32) -> (i32, i32, i32) {
    %c0_i32 = arith.constant 0 : i32
    %c0_i32_0 = arith.constant 0 : i32
    %c0_i32_1 = arith.constant 0 : i32
    return %arg0, %c0_i32, %c0_i32_0 : i32, i32, i32
  }
  func.func @transform_13(%arg0: i32) -> (i32, i32, i32) {
    %c0_i32 = arith.constant 0 : i32
    %c0_i32_0 = arith.constant 0 : i32
    %c0_i32_1 = arith.constant 0 : i32
    return %arg0, %c0_i32, %c0_i32_0 : i32, i32, i32
  }
  func.func @transform_14(%arg0: i32) -> (i32, i32, i32) {
    %c0_i32 = arith.constant 0 : i32
    %c0_i32_0 = arith.constant 0 : i32
    %c0_i32_1 = arith.constant 0 : i32
    return %arg0, %c0_i32, %c0_i32_0 : i32, i32, i32
  }
  func.func @transform_15(%arg0: i32) -> (i32, i32, i32) {
    %c0_i32 = arith.constant 0 : i32
    %c0_i32_0 = arith.constant 0 : i32
    %c0_i32_1 = arith.constant 0 : i32
    return %arg0, %c0_i32, %c0_i32_0 : i32, i32, i32
  }
  func.func @transform_16(%arg0: i32) -> (i32, i32, i32) {
    %c0_i32 = arith.constant 0 : i32
    %c0_i32_0 = arith.constant 0 : i32
    %c0_i32_1 = arith.constant 0 : i32
    return %arg0, %c0_i32, %c0_i32_0 : i32, i32, i32
  }
  func.func @transform_17(%arg0: i32) -> (i32, i32, i32) {
    %c0_i32 = arith.constant 0 : i32
    %c0_i32_0 = arith.constant 0 : i32
    %c0_i32_1 = arith.constant 0 : i32
    return %arg0, %c0_i32, %c0_i32_0 : i32, i32, i32
  }
  func.func @transform_18(%arg0: i32) -> (i32, i32) {
    %c0_i32 = arith.constant 0 : i32
    %c0_i32_0 = arith.constant 0 : i32
    %c0_i32_1 = arith.constant 0 : i32
    return %c0_i32, %c0_i32_0 : i32, i32
  }
  func.func @transform_19(%arg0: i32) -> (i32, i32) {
    %c0_i32 = arith.constant 0 : i32
    %c0_i32_0 = arith.constant 0 : i32
    %c0_i32_1 = arith.constant 0 : i32
    return %c0_i32, %c0_i32_0 : i32, i32
  }
  func.func @transform_20(%arg0: i32) -> (i32, i32) {
    %c0_i32 = arith.constant 0 : i32
    %c0_i32_0 = arith.constant 0 : i32
    %c0_i32_1 = arith.constant 0 : i32
    return %c0_i32, %c0_i32_0 : i32, i32
  }
  func.func @transform_21(%arg0: i32) -> (i32, i32) {
    %c0_i32 = arith.constant 0 : i32
    %c0_i32_0 = arith.constant 0 : i32
    %c0_i32_1 = arith.constant 0 : i32
    return %c0_i32, %c0_i32_0 : i32, i32
  }
  func.func @transform_22(%arg0: i32) -> (i32, i32) {
    %c0_i32 = arith.constant 0 : i32
    %c0_i32_0 = arith.constant 0 : i32
    %c0_i32_1 = arith.constant 0 : i32
    return %c0_i32, %c0_i32_0 : i32, i32
  }
}

</mosaic_0001>

<llo_original>
// kernel: roberta_class_forward.1
$region0: #{roberta_class_forward.1}
  #allocation0 [shape = 'u32[]', space=smem, size = 0x4, offset = 0x4, fixed_abs, tag = 'smem constant byte address 0x4 - core index']
  #allocation1 [shape = 'u32[144,128]{1,0:T(1,128)}', space=vmem, size = 0x12000, scoped, tag = 'internal scratch']
  #allocation2 [shape = 'bf16[16,128]{1,0:T(8,128)(2,1)}', space=vmem, size = 0x1000, scoped, tag = 'scratch operand']
  %s0 = inlined_call_operand.vmem [shape: bf16[16,128], index: 0, kind: input, shape index: {}]
  %s1 = inlined_call_operand.vmem [shape: f32[2,1,8], index: 1, kind: input, shape index: {}]
  %s2 = inlined_call_operand.hbm [shape: bf16[2,128,128], index: 2, kind: input, shape index: {}]
  %s3 = inlined_call_operand.vmem [shape: f32[2,1,128], index: 3, kind: input, shape index: {}]
  %s4 = inlined_call_operand.hbm [shape: bf16[2,128,128], index: 4, kind: input, shape index: {}]
  %s5 = inlined_call_operand.vmem [shape: f32[2,1,128], index: 5, kind: input, shape index: {}]
  %s6 = inlined_call_operand.hbm [shape: bf16[2,128,128], index: 6, kind: input, shape index: {}]
  %s7 = inlined_call_operand.vmem [shape: f32[2,1,128], index: 7, kind: input, shape index: {}]
  %s8 = inlined_call_operand.hbm [shape: bf16[2,128,128], index: 8, kind: input, shape index: {}]
  %s9 = inlined_call_operand.vmem [shape: f32[2,1,128], index: 9, kind: input, shape index: {}]
  %s10 = inlined_call_operand.vmem [shape: f32[2,1,128], index: 10, kind: input, shape index: {}]
  %s11 = inlined_call_operand.vmem [shape: f32[2,1,128], index: 11, kind: input, shape index: {}]
  %s12 = inlined_call_operand.vmem [shape: bf16[2,128,256], index: 12, kind: input, shape index: {}]
  %s13 = inlined_call_operand.vmem [shape: f32[2,1,256], index: 13, kind: input, shape index: {}]
  %s14 = inlined_call_operand.hbm [shape: bf16[2,256,128], index: 14, kind: input, shape index: {}]
  %s15 = inlined_call_operand.vmem [shape: f32[2,1,128], index: 15, kind: input, shape index: {}]
  %s16 = inlined_call_operand.vmem [shape: f32[2,1,128], index: 16, kind: input, shape index: {}]
  %s17 = inlined_call_operand.vmem [shape: f32[2,1,128], index: 17, kind: input, shape index: {}]
  %s18 = inlined_call_operand.hbm [shape: bf16[128,128], index: 18, kind: input, shape index: {}]
  %s19 = inlined_call_operand.vmem [shape: f32[1,128], index: 19, kind: input, shape index: {}]
  %s20 = inlined_call_operand.hbm [shape: bf16[128,128], index: 20, kind: input, shape index: {}]
  %s21 = inlined_call_operand.vmem [shape: f32[1,128], index: 21, kind: input, shape index: {}]
  %s22 = inlined_call_operand.hbm [shape: f32[2,128], index: 22, kind: output, shape index: {}]
  %s23 = sld [smem:[#allocation0]]
  $region157: #{roberta_class_forward.1} parent=0
    _
  %s25 = ssub.s32 1, %s23
  %s26 = scalar_select 0, %s25, %s23
  $region1: #{roberta_class_forward.1} parent=0
    #allocation3 [shape = 'u8[65536]{0}', space=vmem, size = 0x10000, scoped, tag = 'input window, operand 2']
    #allocation4 [shape = 's32[2]{0}', space=sflag, size = 0x8, scoped, tag = 'scoped memory for roberta_class_forward.1']
    #allocation5 [shape = 's32[2]{0}', space=sflag, size = 0x8, scoped, tag = 'scoped memory for roberta_class_forward.1']
    #allocation6 [shape = 'u8[65536]{0}', space=vmem, size = 0x10000, scoped, tag = 'input window, operand 4']
    #allocation7 [shape = 's32[2]{0}', space=sflag, size = 0x8, scoped, tag = 'scoped memory for roberta_class_forward.1']
    #allocation8 [shape = 'u8[65536]{0}', space=vmem, size = 0x10000, scoped, tag = 'input window, operand 6']
    #allocation9 [shape = 'u8[65536]{0}', space=vmem, size = 0x10000, scoped, tag = 'input window, operand 8']
    #allocation10 [shape = 's32[2]{0}', space=sflag, size = 0x8, scoped, tag = 'scoped memory for roberta_class_forward.1']
    #allocation11 [shape = 'u8[131072]{0}', space=vmem, size = 0x20000, scoped, tag = 'input window, operand 14']
    #allocation12 [shape = 'u8[32768]{0}', space=vmem, size = 0x8000, scoped, tag = 'input window, operand 18, single buffered']
    #allocation13 [shape = 's32[1]{0}', space=sflag, size = 0x4, scoped, tag = 'scoped memory for roberta_class_forward.1']
    #allocation14 [shape = 'u8[32768]{0}', space=vmem, size = 0x8000, scoped, tag = 'input window, operand 20, single buffered']
    #allocation15 [shape = 'u8[1024]{0}', space=vmem, size = 0x400, scoped, tag = 'output window, operand 0, single buffered']
    %27 = vsyncpa [#allocation4], 0
    %s28 = scalar_lea.sflag [#allocation4], 1
    %29 = vsyncpa %s28, 0
    %30 = vsyncpa [#allocation7], 0
    %s31 = scalar_lea.sflag [#allocation7], 1
    %32 = vsyncpa %s31, 0
    %33 = vsyncpa [#allocation10], 0
    %s34 = scalar_lea.sflag [#allocation10], 1
    %35 = vsyncpa %s34, 0
    %36 = vsyncpa [#allocation13], 0
    %37 = vsyncpa [#allocation5], 0
    loop: start=0, step=1, limit=4
    $region2: #{roberta_class_forward.1} parent=1 // loop_pre_header
      _
    $region3: #{roberta_class_forward.1} parent=1 // loop_header
      %s39 = sphi 0, %s43
      %p40 = scmp.ge.s32.totalorder %s39, 4
      %s47 = sphi 0, %s47
      %s49 = sphi 0, %s47
      %s50 = sphi 0, %s49
      %s64 = sphi 0, %s50
      %s68 = sphi 0, %s68
      %s70 = sphi 0, %s68
      %s71 = sphi 0, %s70
      %s85 = sphi 0, %s71
      %s91 = sphi 0, %s93
      %s94 = sphi 0, %s91
      %s95 = sphi 0, %s94
      %s111 = sphi 0, %s95
      %s117 = sphi 0, %s119
      %s120 = sphi 0, %s117
      %s121 = sphi 0, %s120
      %s137 = sphi 0, %s121
      %s143 = sphi 0, %s145
      %s146 = sphi 0, %s143
      %s147 = sphi 0, %s146
      %s163 = sphi 0, %s147
      %s169 = sphi 0, %s171
      %s172 = sphi 0, %s169
      %s173 = sphi 0, %s172
      %s189 = sphi 0, %s173
      %s195 = sphi 0, %s197
      %s198 = sphi 0, %s195
      %s199 = sphi 0, %s198
      %s215 = sphi 0, %s199
      %s221 = sphi 0, %s223
      %s224 = sphi 0, %s221
      %s225 = sphi 0, %s224
      %s241 = sphi 0, %s225
      %s247 = sphi 0, %s249
      %s250 = sphi 0, %s247
      %s251 = sphi 0, %s250
      %s267 = sphi 0, %s251
      %s273 = sphi 0, %s275
      %s276 = sphi 0, %s273
      %s277 = sphi 0, %s276
      %s293 = sphi 0, %s277
      %s299 = sphi 0, %s301
      %s302 = sphi 0, %s299
      %s303 = sphi 0, %s302
      %s319 = sphi 0, %s303
      %s325 = sphi 0, %s327
      %s328 = sphi 0, %s325
      %s329 = sphi 0, %s328
      %s345 = sphi 0, %s329
      %s351 = sphi 0, %s353
      %s354 = sphi 0, %s351
      %s355 = sphi 0, %s354
      %s371 = sphi 0, %s355
      %s377 = sphi 0, %s379
      %s380 = sphi 0, %s377
      %s381 = sphi 0, %s380
      %s397 = sphi 0, %s381
      %s403 = sphi 0, %s405
      %s406 = sphi 0, %s403
      %s407 = sphi 0, %s406
      %s423 = sphi 0, %s407
      %s429 = sphi 0, %s431
      %s432 = sphi 0, %s429
      %s433 = sphi 0, %s432
      %s449 = sphi 0, %s433
      %s455 = sphi 0, %s457
      %s458 = sphi 0, %s455
      %s459 = sphi 0, %s458
      %s475 = sphi 0, %s459
      %s481 = sphi 0, %s483
      %s484 = sphi 0, %s481
      %s485 = sphi 0, %s484
      %s501 = sphi 0, %s485
      %s505 = sphi 0, %s505
      %s507 = sphi 0, %s505
      %s508 = sphi 0, %s507
      %s522 = sphi 0, %s508
      %s526 = sphi 0, %s526
      %s528 = sphi 0, %s526
      %s529 = sphi 0, %s528
      %s543 = sphi 0, %s529
      %s547 = sphi 0, %s547
      %s549 = sphi 0, %s547
      %s550 = sphi 0, %s549
      %s564 = sphi 0, %s550
      %s568 = sphi 0, %s568
      %s570 = sphi 0, %s568
      %s571 = sphi 0, %s570
      %s585 = sphi 0, %s571
      %s589 = sphi 0, %s589
      %s591 = sphi 0, %s589
      %s592 = sphi 0, %s591
      %s606 = sphi 0, %s592
    $region4: #{roberta_class_forward.1} parent=1 // loop_header_branch
      %42 = sbr.rel (%p40) target = $region8
    $region5: #{roberta_class_forward.1} parent=1 // loop_body
      %s44 = ssub.s32 %s39, 1
      %s45 = ssub.s32 %s39, 2
      %s46 = sadd.s32 %s39, 1
      %s48 = sadd.s32 %s47, 1
      %p51 = scmp.eq.s32.totalorder %s39, 1
      %p52 = scmp.ne.s32.totalorder %s47, %s49
      %p53 = scmp.eq.s32.totalorder %s39, 0
      %p54 = por %p52, %p53
      %p55 = scmp.ne.s32.totalorder %s47, %s49
      %p56 = scmp.eq.s32.totalorder %s44, 1
      %p57 = por %p55, %p56
      %p58 = scmp.ne.s32.totalorder %s49, %s50
      %p59 = scmp.eq.s32.totalorder %s44, 0
      %p60 = por %p58, %p59
      %p61 = scmp.ne.s32.totalorder %s49, %s50
      %p62 = scmp.eq.s32.totalorder %s45, 1
      %p63 = por %p61, %p62
      %p65 = scmp.ne.s32.totalorder %s50, %s64
      %p66 = scmp.eq.s32.totalorder %s45, 0
      %p67 = por %p65, %p66
      %s69 = sadd.s32 %s68, 1
      %p72 = scmp.eq.s32.totalorder %s39, 1
      %p73 = scmp.ne.s32.totalorder %s68, %s70
      %p74 = scmp.eq.s32.totalorder %s39, 0
      %p75 = por %p73, %p74
      %p76 = scmp.ne.s32.totalorder %s68, %s70
      %p77 = scmp.eq.s32.totalorder %s44, 1
      %p78 = por %p76, %p77
      %p79 = scmp.ne.s32.totalorder %s70, %s71
      %p80 = scmp.eq.s32.totalorder %s44, 0
      %p81 = por %p79, %p80
      %p82 = scmp.ne.s32.totalorder %s70, %s71
      %p83 = scmp.eq.s32.totalorder %s45, 1
      %p84 = por %p82, %p83
      %p86 = scmp.ne.s32.totalorder %s71, %s85
      %p87 = scmp.eq.s32.totalorder %s45, 0
      %p88 = por %p86, %p87
      %s89 = ssub.s32 %s39, %s46
      %p90 = scmp.eq.s32.totalorder %s89, 0
      %s92 = sadd.s32 %s91, 1
      %s93 = scalar_select %p90, %s91, %s92
      %p96 = pneg %p90
      %p97 = scmp.eq.s32.totalorder %s39, 1
      %p98 = por %p96, %p97
      %p99 = scmp.ne.s32.totalorder %s91, %s94
      %p100 = scmp.eq.s32.totalorder %s39, 0
      %p101 = por %p99, %p100
      %p102 = scmp.ne.s32.totalorder %s91, %s94
      %p103 = scmp.eq.s32.totalorder %s44, 1
      %p104 = por %p102, %p103
      %p105 = scmp.ne.s32.totalorder %s94, %s95
      %p106 = scmp.eq.s32.totalorder %s44, 0
      %p107 = por %p105, %p106
      %p108 = scmp.ne.s32.totalorder %s94, %s95
      %p109 = scmp.eq.s32.totalorder %s45, 1
      %p110 = por %p108, %p109
      %p112 = scmp.ne.s32.totalorder %s95, %s111
      %p113 = scmp.eq.s32.totalorder %s45, 0
      %p114 = por %p112, %p113
      %s115 = ssub.s32 %s39, %s46
      %p116 = scmp.eq.s32.totalorder %s115, 0
      %s118 = sadd.s32 %s117, 1
      %s119 = scalar_select %p116, %s117, %s118
      %p122 = pneg %p116
      %p123 = scmp.eq.s32.totalorder %s39, 1
      %p124 = por %p122, %p123
      %p125 = scmp.ne.s32.totalorder %s117, %s120
      %p126 = scmp.eq.s32.totalorder %s39, 0
      %p127 = por %p125, %p126
      %p128 = scmp.ne.s32.totalorder %s117, %s120
      %p129 = scmp.eq.s32.totalorder %s44, 1
      %p130 = por %p128, %p129
      %p131 = scmp.ne.s32.totalorder %s120, %s121
      %p132 = scmp.eq.s32.totalorder %s44, 0
      %p133 = por %p131, %p132
      %p134 = scmp.ne.s32.totalorder %s120, %s121
      %p135 = scmp.eq.s32.totalorder %s45, 1
      %p136 = por %p134, %p135
      %p138 = scmp.ne.s32.totalorder %s121, %s137
      %p139 = scmp.eq.s32.totalorder %s45, 0
      %p140 = por %p138, %p139
      %s141 = ssub.s32 %s39, %s46
      %p142 = scmp.eq.s32.totalorder %s141, 0
      %s144 = sadd.s32 %s143, 1
      %s145 = scalar_select %p142, %s143, %s144
      %p148 = pneg %p142
      %p149 = scmp.eq.s32.totalorder %s39, 1
      %p150 = por %p148, %p149
      %p151 = scmp.ne.s32.totalorder %s143, %s146
      %p152 = scmp.eq.s32.totalorder %s39, 0
      %p153 = por %p151, %p152
      %p154 = scmp.ne.s32.totalorder %s143, %s146
      %p155 = scmp.eq.s32.totalorder %s44, 1
      %p156 = por %p154, %p155
      %p157 = scmp.ne.s32.totalorder %s146, %s147
      %p158 = scmp.eq.s32.totalorder %s44, 0
      %p159 = por %p157, %p158
      %p160 = scmp.ne.s32.totalorder %s146, %s147
      %p161 = scmp.eq.s32.totalorder %s45, 1
      %p162 = por %p160, %p161
      %p164 = scmp.ne.s32.totalorder %s147, %s163
      %p165 = scmp.eq.s32.totalorder %s45, 0
      %p166 = por %p164, %p165
      %s167 = ssub.s32 %s39, %s46
      %p168 = scmp.eq.s32.totalorder %s167, 0
      %s170 = sadd.s32 %s169, 1
      %s171 = scalar_select %p168, %s169, %s170
      %p174 = pneg %p168
      %p175 = scmp.eq.s32.totalorder %s39, 1
      %p176 = por %p174, %p175
      %p177 = scmp.ne.s32.totalorder %s169, %s172
      %p178 = scmp.eq.s32.totalorder %s39, 0
      %p179 = por %p177, %p178
      %p180 = scmp.ne.s32.totalorder %s169, %s172
      %p181 = scmp.eq.s32.totalorder %s44, 1
      %p182 = por %p180, %p181
      %p183 = scmp.ne.s32.totalorder %s172, %s173
      %p184 = scmp.eq.s32.totalorder %s44, 0
      %p185 = por %p183, %p184
      %p186 = scmp.ne.s32.totalorder %s172, %s173
      %p187 = scmp.eq.s32.totalorder %s45, 1
      %p188 = por %p186, %p187
      %p190 = scmp.ne.s32.totalorder %s173, %s189
      %p191 = scmp.eq.s32.totalorder %s45, 0
      %p192 = por %p190, %p191
      %s193 = ssub.s32 %s39, %s46
      %p194 = scmp.eq.s32.totalorder %s193, 0
      %s196 = sadd.s32 %s195, 1
      %s197 = scalar_select %p194, %s195, %s196
      %p200 = pneg %p194
      %p201 = scmp.eq.s32.totalorder %s39, 1
      %p202 = por %p200, %p201
      %p203 = scmp.ne.s32.totalorder %s195, %s198
      %p204 = scmp.eq.s32.totalorder %s39, 0
      %p205 = por %p203, %p204
      %p206 = scmp.ne.s32.totalorder %s195, %s198
      %p207 = scmp.eq.s32.totalorder %s44, 1
      %p208 = por %p206, %p207
      %p209 = scmp.ne.s32.totalorder %s198, %s199
      %p210 = scmp.eq.s32.totalorder %s44, 0
      %p211 = por %p209, %p210
      %p212 = scmp.ne.s32.totalorder %s198, %s199
      %p213 = scmp.eq.s32.totalorder %s45, 1
      %p214 = por %p212, %p213
      %p216 = scmp.ne.s32.totalorder %s199, %s215
      %p217 = scmp.eq.s32.totalorder %s45, 0
      %p218 = por %p216, %p217
      %s219 = ssub.s32 %s39, %s46
      %p220 = scmp.eq.s32.totalorder %s219, 0
      %s222 = sadd.s32 %s221, 1
      %s223 = scalar_select %p220, %s221, %s222
      %p226 = pneg %p220
      %p227 = scmp.eq.s32.totalorder %s39, 1
      %p228 = por %p226, %p227
      %p229 = scmp.ne.s32.totalorder %s221, %s224
      %p230 = scmp.eq.s32.totalorder %s39, 0
      %p231 = por %p229, %p230
      %p232 = scmp.ne.s32.totalorder %s221, %s224
      %p233 = scmp.eq.s32.totalorder %s44, 1
      %p234 = por %p232, %p233
      %p235 = scmp.ne.s32.totalorder %s224, %s225
      %p236 = scmp.eq.s32.totalorder %s44, 0
      %p237 = por %p235, %p236
      %p238 = scmp.ne.s32.totalorder %s224, %s225
      %p239 = scmp.eq.s32.totalorder %s45, 1
      %p240 = por %p238, %p239
      %p242 = scmp.ne.s32.totalorder %s225, %s241
      %p243 = scmp.eq.s32.totalorder %s45, 0
      %p244 = por %p242, %p243
      %s245 = ssub.s32 %s39, %s46
      %p246 = scmp.eq.s32.totalorder %s245, 0
      %s248 = sadd.s32 %s247, 1
      %s249 = scalar_select %p246, %s247, %s248
      %p252 = pneg %p246
      %p253 = scmp.eq.s32.totalorder %s39, 1
      %p254 = por %p252, %p253
      %p255 = scmp.ne.s32.totalorder %s247, %s250
      %p256 = scmp.eq.s32.totalorder %s39, 0
      %p257 = por %p255, %p256
      %p258 = scmp.ne.s32.totalorder %s247, %s250
      %p259 = scmp.eq.s32.totalorder %s44, 1
      %p260 = por %p258, %p259
      %p261 = scmp.ne.s32.totalorder %s250, %s251
      %p262 = scmp.eq.s32.totalorder %s44, 0
      %p263 = por %p261, %p262
      %p264 = scmp.ne.s32.totalorder %s250, %s251
      %p265 = scmp.eq.s32.totalorder %s45, 1
      %p266 = por %p264, %p265
      %p268 = scmp.ne.s32.totalorder %s251, %s267
      %p269 = scmp.eq.s32.totalorder %s45, 0
      %p270 = por %p268, %p269
      %s271 = ssub.s32 %s39, %s46
      %p272 = scmp.eq.s32.totalorder %s271, 0
      %s274 = sadd.s32 %s273, 1
      %s275 = scalar_select %p272, %s273, %s274
      %p278 = pneg %p272
      %p279 = scmp.eq.s32.totalorder %s39, 1
      %p280 = por %p278, %p279
      %p281 = scmp.ne.s32.totalorder %s273, %s276
      %p282 = scmp.eq.s32.totalorder %s39, 0
      %p283 = por %p281, %p282
      %p284 = scmp.ne.s32.totalorder %s273, %s276
      %p285 = scmp.eq.s32.totalorder %s44, 1
      %p286 = por %p284, %p285
      %p287 = scmp.ne.s32.totalorder %s276, %s277
      %p288 = scmp.eq.s32.totalorder %s44, 0
      %p289 = por %p287, %p288
      %p290 = scmp.ne.s32.totalorder %s276, %s277
      %p291 = scmp.eq.s32.totalorder %s45, 1
      %p292 = por %p290, %p291
      %p294 = scmp.ne.s32.totalorder %s277, %s293
      %p295 = scmp.eq.s32.totalorder %s45, 0
      %p296 = por %p294, %p295
      %s297 = ssub.s32 %s39, %s46
      %p298 = scmp.eq.s32.totalorder %s297, 0
      %s300 = sadd.s32 %s299, 1
      %s301 = scalar_select %p298, %s299, %s300
      %p304 = pneg %p298
      %p305 = scmp.eq.s32.totalorder %s39, 1
      %p306 = por %p304, %p305
      %p307 = scmp.ne.s32.totalorder %s299, %s302
      %p308 = scmp.eq.s32.totalorder %s39, 0
      %p309 = por %p307, %p308
      %p310 = scmp.ne.s32.totalorder %s299, %s302
      %p311 = scmp.eq.s32.totalorder %s44, 1
      %p312 = por %p310, %p311
      %p313 = scmp.ne.s32.totalorder %s302, %s303
      %p314 = scmp.eq.s32.totalorder %s44, 0
      %p315 = por %p313, %p314
      %p316 = scmp.ne.s32.totalorder %s302, %s303
      %p317 = scmp.eq.s32.totalorder %s45, 1
      %p318 = por %p316, %p317
      %p320 = scmp.ne.s32.totalorder %s303, %s319
      %p321 = scmp.eq.s32.totalorder %s45, 0
      %p322 = por %p320, %p321
      %s323 = ssub.s32 %s39, %s46
      %p324 = scmp.eq.s32.totalorder %s323, 0
      %s326 = sadd.s32 %s325, 1
      %s327 = scalar_select %p324, %s325, %s326
      %p330 = pneg %p324
      %p331 = scmp.eq.s32.totalorder %s39, 1
      %p332 = por %p330, %p331
      %p333 = scmp.ne.s32.totalorder %s325, %s328
      %p334 = scmp.eq.s32.totalorder %s39, 0
      %p335 = por %p333, %p334
      %p336 = scmp.ne.s32.totalorder %s325, %s328
      %p337 = scmp.eq.s32.totalorder %s44, 1
      %p338 = por %p336, %p337
      %p339 = scmp.ne.s32.totalorder %s328, %s329
      %p340 = scmp.eq.s32.totalorder %s44, 0
      %p341 = por %p339, %p340
      %p342 = scmp.ne.s32.totalorder %s328, %s329
      %p343 = scmp.eq.s32.totalorder %s45, 1
      %p344 = por %p342, %p343
      %p346 = scmp.ne.s32.totalorder %s329, %s345
      %p347 = scmp.eq.s32.totalorder %s45, 0
      %p348 = por %p346, %p347
      %s349 = ssub.s32 %s39, %s46
      %p350 = scmp.eq.s32.totalorder %s349, 0
      %s352 = sadd.s32 %s351, 1
      %s353 = scalar_select %p350, %s351, %s352
      %p356 = pneg %p350
      %p357 = scmp.eq.s32.totalorder %s39, 1
      %p358 = por %p356, %p357
      %p359 = scmp.ne.s32.totalorder %s351, %s354
      %p360 = scmp.eq.s32.totalorder %s39, 0
      %p361 = por %p359, %p360
      %p362 = scmp.ne.s32.totalorder %s351, %s354
      %p363 = scmp.eq.s32.totalorder %s44, 1
      %p364 = por %p362, %p363
      %p365 = scmp.ne.s32.totalorder %s354, %s355
      %p366 = scmp.eq.s32.totalorder %s44, 0
      %p367 = por %p365, %p366
      %p368 = scmp.ne.s32.totalorder %s354, %s355
      %p369 = scmp.eq.s32.totalorder %s45, 1
      %p370 = por %p368, %p369
      %p372 = scmp.ne.s32.totalorder %s355, %s371
      %p373 = scmp.eq.s32.totalorder %s45, 0
      %p374 = por %p372, %p373
      %s375 = ssub.s32 %s39, %s46
      %p376 = scmp.eq.s32.totalorder %s375, 0
      %s378 = sadd.s32 %s377, 1
      %s379 = scalar_select %p376, %s377, %s378
      %p382 = pneg %p376
      %p383 = scmp.eq.s32.totalorder %s39, 1
      %p384 = por %p382, %p383
      %p385 = scmp.ne.s32.totalorder %s377, %s380
      %p386 = scmp.eq.s32.totalorder %s39, 0
      %p387 = por %p385, %p386
      %p388 = scmp.ne.s32.totalorder %s377, %s380
      %p389 = scmp.eq.s32.totalorder %s44, 1
      %p390 = por %p388, %p389
      %p391 = scmp.ne.s32.totalorder %s380, %s381
      %p392 = scmp.eq.s32.totalorder %s44, 0
      %p393 = por %p391, %p392
      %p394 = scmp.ne.s32.totalorder %s380, %s381
      %p395 = scmp.eq.s32.totalorder %s45, 1
      %p396 = por %p394, %p395
      %p398 = scmp.ne.s32.totalorder %s381, %s397
      %p399 = scmp.eq.s32.totalorder %s45, 0
      %p400 = por %p398, %p399
      %s401 = ssub.s32 %s39, %s46
      %p402 = scmp.eq.s32.totalorder %s401, 0
      %s404 = sadd.s32 %s403, 1
      %s405 = scalar_select %p402, %s403, %s404
      %p408 = pneg %p402
      %p409 = scmp.eq.s32.totalorder %s39, 1
      %p410 = por %p408, %p409
      %p411 = scmp.ne.s32.totalorder %s403, %s406
      %p412 = scmp.eq.s32.totalorder %s39, 0
      %p413 = por %p411, %p412
      %p414 = scmp.ne.s32.totalorder %s403, %s406
      %p415 = scmp.eq.s32.totalorder %s44, 1
      %p416 = por %p414, %p415
      %p417 = scmp.ne.s32.totalorder %s406, %s407
      %p418 = scmp.eq.s32.totalorder %s44, 0
      %p419 = por %p417, %p418
      %p420 = scmp.ne.s32.totalorder %s406, %s407
      %p421 = scmp.eq.s32.totalorder %s45, 1
      %p422 = por %p420, %p421
      %p424 = scmp.ne.s32.totalorder %s407, %s423
      %p425 = scmp.eq.s32.totalorder %s45, 0
      %p426 = por %p424, %p425
      %s427 = ssub.s32 %s39, %s46
      %p428 = scmp.eq.s32.totalorder %s427, 0
      %s430 = sadd.s32 %s429, 1
      %s431 = scalar_select %p428, %s429, %s430
      %p434 = pneg %p428
      %p435 = scmp.eq.s32.totalorder %s39, 1
      %p436 = por %p434, %p435
      %p437 = scmp.ne.s32.totalorder %s429, %s432
      %p438 = scmp.eq.s32.totalorder %s39, 0
      %p439 = por %p437, %p438
      %p440 = scmp.ne.s32.totalorder %s429, %s432
      %p441 = scmp.eq.s32.totalorder %s44, 1
      %p442 = por %p440, %p441
      %p443 = scmp.ne.s32.totalorder %s432, %s433
      %p444 = scmp.eq.s32.totalorder %s44, 0
      %p445 = por %p443, %p444
      %p446 = scmp.ne.s32.totalorder %s432, %s433
      %p447 = scmp.eq.s32.totalorder %s45, 1
      %p448 = por %p446, %p447
      %p450 = scmp.ne.s32.totalorder %s433, %s449
      %p451 = scmp.eq.s32.totalorder %s45, 0
      %p452 = por %p450, %p451
      %s453 = ssub.s32 %s39, %s46
      %p454 = scmp.eq.s32.totalorder %s453, 0
      %s456 = sadd.s32 %s455, 1
      %s457 = scalar_select %p454, %s455, %s456
      %p460 = pneg %p454
      %p461 = scmp.eq.s32.totalorder %s39, 1
      %p462 = por %p460, %p461
      %p463 = scmp.ne.s32.totalorder %s455, %s458
      %p464 = scmp.eq.s32.totalorder %s39, 0
      %p465 = por %p463, %p464
      %p466 = scmp.ne.s32.totalorder %s455, %s458
      %p467 = scmp.eq.s32.totalorder %s44, 1
      %p468 = por %p466, %p467
      %p469 = scmp.ne.s32.totalorder %s458, %s459
      %p470 = scmp.eq.s32.totalorder %s44, 0
      %p471 = por %p469, %p470
      %p472 = scmp.ne.s32.totalorder %s458, %s459
      %p473 = scmp.eq.s32.totalorder %s45, 1
      %p474 = por %p472, %p473
      %p476 = scmp.ne.s32.totalorder %s459, %s475
      %p477 = scmp.eq.s32.totalorder %s45, 0
      %p478 = por %p476, %p477
      %s479 = ssub.s32 %s39, %s46
      %p480 = scmp.eq.s32.totalorder %s479, 0
      %s482 = sadd.s32 %s481, 1
      %s483 = scalar_select %p480, %s481, %s482
      %p486 = pneg %p480
      %p487 = scmp.eq.s32.totalorder %s39, 1
      %p488 = por %p486, %p487
      %p489 = scmp.ne.s32.totalorder %s481, %s484
      %p490 = scmp.eq.s32.totalorder %s39, 0
      %p491 = por %p489, %p490
      %p492 = scmp.ne.s32.totalorder %s481, %s484
      %p493 = scmp.eq.s32.totalorder %s44, 1
      %p494 = por %p492, %p493
      %p495 = scmp.ne.s32.totalorder %s484, %s485
      %p496 = scmp.eq.s32.totalorder %s44, 0
      %p497 = por %p495, %p496
      %p498 = scmp.ne.s32.totalorder %s484, %s485
      %p499 = scmp.eq.s32.totalorder %s45, 1
      %p500 = por %p498, %p499
      %p502 = scmp.ne.s32.totalorder %s485, %s501
      %p503 = scmp.eq.s32.totalorder %s45, 0
      %p504 = por %p502, %p503
      %s506 = sadd.s32 %s505, 1
      %p509 = scmp.eq.s32.totalorder %s39, 1
      %p510 = scmp.ne.s32.totalorder %s505, %s507
      %p511 = scmp.eq.s32.totalorder %s39, 0
      %p512 = por %p510, %p511
      %p513 = scmp.ne.s32.totalorder %s505, %s507
      %p514 = scmp.eq.s32.totalorder %s44, 1
      %p515 = por %p513, %p514
      %p516 = scmp.ne.s32.totalorder %s507, %s508
      %p517 = scmp.eq.s32.totalorder %s44, 0
      %p518 = por %p516, %p517
      %p519 = scmp.ne.s32.totalorder %s507, %s508
      %p520 = scmp.eq.s32.totalorder %s45, 1
      %p521 = por %p519, %p520
      %p523 = scmp.ne.s32.totalorder %s508, %s522
      %p524 = scmp.eq.s32.totalorder %s45, 0
      %p525 = por %p523, %p524
      %s527 = sadd.s32 %s526, 1
      %p530 = scmp.eq.s32.totalorder %s39, 1
      %p531 = scmp.ne.s32.totalorder %s526, %s528
      %p532 = scmp.eq.s32.totalorder %s39, 0
      %p533 = por %p531, %p532
      %p534 = scmp.ne.s32.totalorder %s526, %s528
      %p535 = scmp.eq.s32.totalorder %s44, 1
      %p536 = por %p534, %p535
      %p537 = scmp.ne.s32.totalorder %s528, %s529
      %p538 = scmp.eq.s32.totalorder %s44, 0
      %p539 = por %p537, %p538
      %p540 = scmp.ne.s32.totalorder %s528, %s529
      %p541 = scmp.eq.s32.totalorder %s45, 1
      %p542 = por %p540, %p541
      %p544 = scmp.ne.s32.totalorder %s529, %s543
      %p545 = scmp.eq.s32.totalorder %s45, 0
      %p546 = por %p544, %p545
      %s548 = sadd.s32 %s547, 1
      %p551 = scmp.eq.s32.totalorder %s39, 1
      %p552 = scmp.ne.s32.totalorder %s547, %s549
      %p553 = scmp.eq.s32.totalorder %s39, 0
      %p554 = por %p552, %p553
      %p555 = scmp.ne.s32.totalorder %s547, %s549
      %p556 = scmp.eq.s32.totalorder %s44, 1
      %p557 = por %p555, %p556
      %p558 = scmp.ne.s32.totalorder %s549, %s550
      %p559 = scmp.eq.s32.totalorder %s44, 0
      %p560 = por %p558, %p559
      %p561 = scmp.ne.s32.totalorder %s549, %s550
      %p562 = scmp.eq.s32.totalorder %s45, 1
      %p563 = por %p561, %p562
      %p565 = scmp.ne.s32.totalorder %s550, %s564
      %p566 = scmp.eq.s32.totalorder %s45, 0
      %p567 = por %p565, %p566
      %s569 = sadd.s32 %s568, 1
      %p572 = scmp.eq.s32.totalorder %s39, 1
      %p573 = scmp.ne.s32.totalorder %s568, %s570
      %p574 = scmp.eq.s32.totalorder %s39, 0
      %p575 = por %p573, %p574
      %p576 = scmp.ne.s32.totalorder %s568, %s570
      %p577 = scmp.eq.s32.totalorder %s44, 1
      %p578 = por %p576, %p577
      %p579 = scmp.ne.s32.totalorder %s570, %s571
      %p580 = scmp.eq.s32.totalorder %s44, 0
      %p581 = por %p579, %p580
      %p582 = scmp.ne.s32.totalorder %s570, %s571
      %p583 = scmp.eq.s32.totalorder %s45, 1
      %p584 = por %p582, %p583
      %p586 = scmp.ne.s32.totalorder %s571, %s585
      %p587 = scmp.eq.s32.totalorder %s45, 0
      %p588 = por %p586, %p587
      %s590 = sadd.s32 %s589, 1
      %p593 = scmp.eq.s32.totalorder %s39, 1
      %p594 = scmp.ne.s32.totalorder %s589, %s591
      %p595 = scmp.eq.s32.totalorder %s39, 0
      %p596 = por %p594, %p595
      %p597 = scmp.ne.s32.totalorder %s589, %s591
      %p598 = scmp.eq.s32.totalorder %s44, 1
      %p599 = por %p597, %p598
      %p600 = scmp.ne.s32.totalorder %s591, %s592
      %p601 = scmp.eq.s32.totalorder %s44, 0
      %p602 = por %p600, %p601
      %p603 = scmp.ne.s32.totalorder %s591, %s592
      %p604 = scmp.eq.s32.totalorder %s45, 1
      %p605 = por %p603, %p604
      %p607 = scmp.ne.s32.totalorder %s592, %s606
      %p608 = scmp.eq.s32.totalorder %s45, 0
      %p609 = por %p607, %p608
      %p610 = scmp.le.s32.totalorder 1, %s39
      %p611 = scmp.lt.s32.totalorder %s39, 3
      %p612 = pnand %p610, %p611
      %p613 = pneg %p612
      // Predicated region
      $region9: #{roberta_class_forward.1} parent=5 // pred_check
        _
      $region10: #{roberta_class_forward.1} parent=5 // pred_check_branch
        %615 = sbr.rel (%p612) target = $region12
      $region11: #{roberta_class_forward.1} parent=5 // pred_region
        %s616 = ssub.s32 %s39, 1
        // Predicated region
        $region13: #{roberta_class_forward.1} parent=11 // pred_check
          %p617 = pneg %p60
        $region14: #{roberta_class_forward.1} parent=11 // pred_check_branch
          %619 = sbr.rel (%p617) target = $region16
        $region15: #{roberta_class_forward.1} parent=11 // pred_region
          _
        $region16: #{roberta_class_forward.1} parent=11 // pred_fallthru
          _
        // Predicated region
        $region17: #{roberta_class_forward.1} parent=11 // pred_check
          %p620 = pneg %p81
        $region18: #{roberta_class_forward.1} parent=11 // pred_check_branch
          %622 = sbr.rel (%p620) target = $region20
        $region19: #{roberta_class_forward.1} parent=11 // pred_region
          _
        $region20: #{roberta_class_forward.1} parent=11 // pred_fallthru
          _
        // Predicated region
        $region21: #{roberta_class_forward.1} parent=11 // pred_check
          %p623 = pneg %p518
        $region22: #{roberta_class_forward.1} parent=11 // pred_check_branch
          %625 = sbr.rel (%p623) target = $region24
        $region23: #{roberta_class_forward.1} parent=11 // pred_region
          %s627 = ssub.s32 1024, 1024
          %628 = vsyncadd [#allocation13], %s627
          %s629 = sshll.u32 [#allocation12], 4
          %s630 = int_to_ptr.vmem [resolvable:$true] %s629
          %635 = dma.hbm_to_vmem [thread:$0]  %s18, 1024, %s630, [#allocation13], 64, 64, 4
        $region24: #{roberta_class_forward.1} parent=11 // pred_fallthru
          _
        // Predicated region
        $region25: #{roberta_class_forward.1} parent=11 // pred_check
          %p636 = pneg %p539
        $region26: #{roberta_class_forward.1} parent=11 // pred_check_branch
          %638 = sbr.rel (%p636) target = $region28
        $region27: #{roberta_class_forward.1} parent=11 // pred_region
          _
        $region28: #{roberta_class_forward.1} parent=11 // pred_fallthru
          _
        // Predicated region
        $region29: #{roberta_class_forward.1} parent=11 // pred_check
          %p639 = pneg %p560
        $region30: #{roberta_class_forward.1} parent=11 // pred_check_branch
          %641 = sbr.rel (%p639) target = $region32
        $region31: #{roberta_class_forward.1} parent=11 // pred_region
          %s643 = ssub.s32 1024, 1024
          %644 = vsyncadd [#allocation13], %s643
          %s645 = sshll.u32 [#allocation14], 4
          %s646 = int_to_ptr.vmem [resolvable:$true] %s645
          %651 = dma.hbm_to_vmem [thread:$0]  %s20, 1024, %s646, [#allocation13], 64, 64, 4
        $region32: #{roberta_class_forward.1} parent=11 // pred_fallthru
          _
        // Predicated region
        $region33: #{roberta_class_forward.1} parent=11 // pred_check
          %p652 = pneg %p581
        $region34: #{roberta_class_forward.1} parent=11 // pred_check_branch
          %654 = sbr.rel (%p652) target = $region36
        $region35: #{roberta_class_forward.1} parent=11 // pred_region
          _
        $region36: #{roberta_class_forward.1} parent=11 // pred_fallthru
          _
      $region12: #{roberta_class_forward.1} parent=5 // pred_fallthru
        _
      %p655 = scmp.lt.s32.totalorder %s39, 2
      // Predicated region
      $region37: #{roberta_class_forward.1} parent=5 // pred_check
        %p656 = pneg %p655
      $region38: #{roberta_class_forward.1} parent=5 // pred_check_branch
        %658 = sbr.rel (%p656) target = $region40
      $region39: #{roberta_class_forward.1} parent=5 // pred_region
        // Predicated region
        $region41: #{roberta_class_forward.1} parent=39 // pred_check
          %p659 = pneg %p101
        $region42: #{roberta_class_forward.1} parent=39 // pred_check_branch
          %661 = sbr.rel (%p659) target = $region44
        $region43: #{roberta_class_forward.1} parent=39 // pred_region
          %s662 = sand.u32 %s91, 1
          %s663 = scalar_lea.sflag [#allocation4], %s662
          %s664 = sand.u32 %s91, 1
          %s665 = smul.addr %s664, 64
          %s666 = scalar_lea.vmem [#allocation3], %s665
          %s668 = ssub.s32 1024, 1024
          %669 = vsyncadd %s663, %s668
          %s670 = smul.addr %s39, 16
          %s671 = smul.addr %s670, 64
          %s672 = scalar_lea.hbm %s2, %s671
          %s673 = sshll.u32 %s666, 4
          %s674 = int_to_ptr.vmem [resolvable:$true] %s673
          %679 = dma.hbm_to_vmem [thread:$0]  %s672, 1024, %s674, %s663, 64, 64, 4
        $region44: #{roberta_class_forward.1} parent=39 // pred_fallthru
          _
        // Predicated region
        $region45: #{roberta_class_forward.1} parent=39 // pred_check
          %p680 = pneg %p127
        $region46: #{roberta_class_forward.1} parent=39 // pred_check_branch
          %682 = sbr.rel (%p680) target = $region48
        $region47: #{roberta_class_forward.1} parent=39 // pred_region
          %p683 = scmp.lt.s32.totalorder %s39, 1
          %s684 = scalar_select %p683, %s39, 1
          %s685 = scalar_lea.vmem %s3, %s684
        $region48: #{roberta_class_forward.1} parent=39 // pred_fallthru
          _
        // Predicated region
        $region49: #{roberta_class_forward.1} parent=39 // pred_check
          %p686 = pneg %p153
        $region50: #{roberta_class_forward.1} parent=39 // pred_check_branch
          %688 = sbr.rel (%p686) target = $region52
        $region51: #{roberta_class_forward.1} parent=39 // pred_region
          %s689 = sand.u32 %s39, 1
          %s690 = scalar_lea.sflag [#allocation7], %s689
          %s691 = sand.u32 %s143, 1
          %s692 = smul.addr %s691, 64
          %s693 = scalar_lea.vmem [#allocation6], %s692
          %s695 = ssub.s32 1024, 1024
          %696 = vsyncadd %s690, %s695
          %s697 = smul.addr %s39, 16
          %s698 = smul.addr %s697, 64
          %s699 = scalar_lea.hbm %s4, %s698
          %s700 = sshll.u32 %s693, 4
          %s701 = int_to_ptr.vmem [resolvable:$true] %s700
          %706 = dma.hbm_to_vmem [thread:$0]  %s699, 1024, %s701, %s690, 64, 64, 4
        $region52: #{roberta_class_forward.1} parent=39 // pred_fallthru
          _
        // Predicated region
        $region53: #{roberta_class_forward.1} parent=39 // pred_check
          %p707 = pneg %p179
        $region54: #{roberta_class_forward.1} parent=39 // pred_check_branch
          %709 = sbr.rel (%p707) target = $region56
        $region55: #{roberta_class_forward.1} parent=39 // pred_region
          %p710 = scmp.lt.s32.totalorder %s39, 1
          %s711 = scalar_select %p710, %s39, 1
          %s712 = scalar_lea.vmem %s5, %s711
        $region56: #{roberta_class_forward.1} parent=39 // pred_fallthru
          _
        // Predicated region
        $region57: #{roberta_class_forward.1} parent=39 // pred_check
          %p713 = pneg %p205
        $region58: #{roberta_class_forward.1} parent=39 // pred_check_branch
          %715 = sbr.rel (%p713) target = $region60
        $region59: #{roberta_class_forward.1} parent=39 // pred_region
          %s716 = sand.u32 %s39, 1
          %s717 = scalar_lea.sflag [#allocation7], %s716
          %s718 = sand.u32 %s195, 1
          %s719 = smul.addr %s718, 64
          %s720 = scalar_lea.vmem [#allocation8], %s719
          %s722 = ssub.s32 1024, 1024
          %723 = vsyncadd %s717, %s722
          %s724 = smul.addr %s39, 16
          %s725 = smul.addr %s724, 64
          %s726 = scalar_lea.hbm %s6, %s725
          %s727 = sshll.u32 %s720, 4
          %s728 = int_to_ptr.vmem [resolvable:$true] %s727
          %733 = dma.hbm_to_vmem [thread:$0]  %s726, 1024, %s728, %s717, 64, 64, 4
        $region60: #{roberta_class_forward.1} parent=39 // pred_fallthru
          _
        // Predicated region
        $region61: #{roberta_class_forward.1} parent=39 // pred_check
          %p734 = pneg %p231
        $region62: #{roberta_class_forward.1} parent=39 // pred_check_branch
          %736 = sbr.rel (%p734) target = $region64
        $region63: #{roberta_class_forward.1} parent=39 // pred_region
          %p737 = scmp.lt.s32.totalorder %s39, 1
          %s738 = scalar_select %p737, %s39, 1
          %s739 = scalar_lea.vmem %s7, %s738
        $region64: #{roberta_class_forward.1} parent=39 // pred_fallthru
          _
        // Predicated region
        $region65: #{roberta_class_forward.1} parent=39 // pred_check
          %p740 = pneg %p257
        $region66: #{roberta_class_forward.1} parent=39 // pred_check_branch
          %742 = sbr.rel (%p740) target = $region68
        $region67: #{roberta_class_forward.1} parent=39 // pred_region
          %s743 = sand.u32 %s39, 1
          %s744 = scalar_lea.sflag [#allocation10], %s743
          %s745 = sand.u32 %s247, 1
          %s746 = smul.addr %s745, 64
          %s747 = scalar_lea.vmem [#allocation9], %s746
          %s749 = ssub.s32 1024, 1024
          %750 = vsyncadd %s744, %s749
          %s751 = smul.addr %s39, 16
          %s752 = smul.addr %s751, 64
          %s753 = scalar_lea.hbm %s8, %s752
          %s754 = sshll.u32 %s747, 4
          %s755 = int_to_ptr.vmem [resolvable:$true] %s754
          %760 = dma.hbm_to_vmem [thread:$0]  %s753, 1024, %s755, %s744, 64, 64, 4
        $region68: #{roberta_class_forward.1} parent=39 // pred_fallthru
          _
        // Predicated region
        $region69: #{roberta_class_forward.1} parent=39 // pred_check
          %p761 = pneg %p283
        $region70: #{roberta_class_forward.1} parent=39 // pred_check_branch
          %763 = sbr.rel (%p761) target = $region72
        $region71: #{roberta_class_forward.1} parent=39 // pred_region
          %p764 = scmp.lt.s32.totalorder %s39, 1
          %s765 = scalar_select %p764, %s39, 1
          %s766 = scalar_lea.vmem %s9, %s765
        $region72: #{roberta_class_forward.1} parent=39 // pred_fallthru
          _
        // Predicated region
        $region73: #{roberta_class_forward.1} parent=39 // pred_check
          %p767 = pneg %p309
        $region74: #{roberta_class_forward.1} parent=39 // pred_check_branch
          %769 = sbr.rel (%p767) target = $region76
        $region75: #{roberta_class_forward.1} parent=39 // pred_region
          %p770 = scmp.lt.s32.totalorder %s39, 1
          %s771 = scalar_select %p770, %s39, 1
          %s772 = scalar_lea.vmem %s10, %s771
        $region76: #{roberta_class_forward.1} parent=39 // pred_fallthru
          _
        // Predicated region
        $region77: #{roberta_class_forward.1} parent=39 // pred_check
          %p773 = pneg %p335
        $region78: #{roberta_class_forward.1} parent=39 // pred_check_branch
          %775 = sbr.rel (%p773) target = $region80
        $region79: #{roberta_class_forward.1} parent=39 // pred_region
          %p776 = scmp.lt.s32.totalorder %s39, 1
          %s777 = scalar_select %p776, %s39, 1
          %s778 = scalar_lea.vmem %s11, %s777
        $region80: #{roberta_class_forward.1} parent=39 // pred_fallthru
          _
        // Predicated region
        $region81: #{roberta_class_forward.1} parent=39 // pred_check
          %p779 = pneg %p361
        $region82: #{roberta_class_forward.1} parent=39 // pred_check_branch
          %781 = sbr.rel (%p779) target = $region84
        $region83: #{roberta_class_forward.1} parent=39 // pred_region
          %p782 = scmp.lt.s32.totalorder %s39, 1
          %s783 = scalar_select %p782, %s39, 1
          %s784 = smul.addr %s783, 32
          %s785 = smul.addr %s784, 4
          %s786 = scalar_lea.vmem %s12, %s785
        $region84: #{roberta_class_forward.1} parent=39 // pred_fallthru
          _
        // Predicated region
        $region85: #{roberta_class_forward.1} parent=39 // pred_check
          %p787 = pneg %p387
        $region86: #{roberta_class_forward.1} parent=39 // pred_check_branch
          %789 = sbr.rel (%p787) target = $region88
        $region87: #{roberta_class_forward.1} parent=39 // pred_region
          %p790 = scmp.lt.s32.totalorder %s39, 1
          %s791 = scalar_select %p790, %s39, 1
          %s792 = smul.addr %s791, 2
          %s793 = scalar_lea.vmem %s13, %s792
        $region88: #{roberta_class_forward.1} parent=39 // pred_fallthru
          _
        // Predicated region
        $region89: #{roberta_class_forward.1} parent=39 // pred_check
          %p794 = pneg %p413
        $region90: #{roberta_class_forward.1} parent=39 // pred_check_branch
          %796 = sbr.rel (%p794) target = $region92
        $region91: #{roberta_class_forward.1} parent=39 // pred_region
          %s797 = sand.u32 %s39, 1
          %s798 = scalar_lea.sflag [#allocation10], %s797
          %s799 = sand.u32 %s403, 1
          %s800 = smul.addr %s799, 128
          %s801 = scalar_lea.vmem [#allocation11], %s800
          %s803 = ssub.s32 2048, 2048
          %804 = vsyncadd %s798, %s803
          %s805 = smul.addr %s39, 32
          %s806 = smul.addr %s805, 64
          %s807 = scalar_lea.hbm %s14, %s806
          %s808 = sshll.u32 %s801, 4
          %s809 = int_to_ptr.vmem [resolvable:$true] %s808
          %814 = dma.hbm_to_vmem [thread:$0]  %s807, 2048, %s809, %s798, 64, 64, 4
        $region92: #{roberta_class_forward.1} parent=39 // pred_fallthru
          _
        // Predicated region
        $region93: #{roberta_class_forward.1} parent=39 // pred_check
          %p815 = pneg %p439
        $region94: #{roberta_class_forward.1} parent=39 // pred_check_branch
          %817 = sbr.rel (%p815) target = $region96
        $region95: #{roberta_class_forward.1} parent=39 // pred_region
          %p818 = scmp.lt.s32.totalorder %s39, 1
          %s819 = scalar_select %p818, %s39, 1
          %s820 = scalar_lea.vmem %s15, %s819
        $region96: #{roberta_class_forward.1} parent=39 // pred_fallthru
          _
        // Predicated region
        $region97: #{roberta_class_forward.1} parent=39 // pred_check
          %p821 = pneg %p465
        $region98: #{roberta_class_forward.1} parent=39 // pred_check_branch
          %823 = sbr.rel (%p821) target = $region100
        $region99: #{roberta_class_forward.1} parent=39 // pred_region
          %p824 = scmp.lt.s32.totalorder %s39, 1
          %s825 = scalar_select %p824, %s39, 1
          %s826 = scalar_lea.vmem %s16, %s825
        $region100: #{roberta_class_forward.1} parent=39 // pred_fallthru
          _
        // Predicated region
        $region101: #{roberta_class_forward.1} parent=39 // pred_check
          %p827 = pneg %p491
        $region102: #{roberta_class_forward.1} parent=39 // pred_check_branch
          %829 = sbr.rel (%p827) target = $region104
        $region103: #{roberta_class_forward.1} parent=39 // pred_region
          %p830 = scmp.lt.s32.totalorder %s39, 1
          %s831 = scalar_select %p830, %s39, 1
          %s832 = scalar_lea.vmem %s17, %s831
        $region104: #{roberta_class_forward.1} parent=39 // pred_fallthru
          _
      $region40: #{roberta_class_forward.1} parent=5 // pred_fallthru
        _
      %p833 = scmp.le.s32.totalorder 1, %s39
      %p834 = scmp.lt.s32.totalorder %s39, 3
      %p835 = pnand %p833, %p834
      %p836 = pneg %p835
      // Predicated region
      $region105: #{roberta_class_forward.1} parent=5 // pred_check
        _
      $region106: #{roberta_class_forward.1} parent=5 // pred_check_branch
        %838 = sbr.rel (%p835) target = $region108
      $region107: #{roberta_class_forward.1} parent=5 // pred_region
        %s839 = ssub.s32 %s39, 1
        %s840 = sand.u32 %s94, 1
        %s841 = scalar_lea.sflag [#allocation4], %s840
        %s842 = sand.u32 %s94, 1
        %s843 = smul.addr %s842, 64
        %s844 = scalar_lea.vmem [#allocation3], %s843
        // Predicated region
        $region109: #{roberta_class_forward.1} parent=107 // pred_check
          %p845 = pneg %p107
        $region110: #{roberta_class_forward.1} parent=107 // pred_check_branch
          %847 = sbr.rel (%p845) target = $region112
        $region111: #{roberta_class_forward.1} parent=107 // pred_region
          %848 = dma.done %s841, 1024
        $region112: #{roberta_class_forward.1} parent=107 // pred_fallthru
          _
        %s849 = sand.u32 %s44, 1
        %s850 = scalar_lea.sflag [#allocation7], %s849
        %s851 = sand.u32 %s146, 1
        %s852 = smul.addr %s851, 64
        %s853 = scalar_lea.vmem [#allocation6], %s852
        // Predicated region
        $region113: #{roberta_class_forward.1} parent=107 // pred_check
          %p854 = pneg %p159
        $region114: #{roberta_class_forward.1} parent=107 // pred_check_branch
          %856 = sbr.rel (%p854) target = $region116
        $region115: #{roberta_class_forward.1} parent=107 // pred_region
          %857 = dma.done %s850, 1024
        $region116: #{roberta_class_forward.1} parent=107 // pred_fallthru
          _
        %s858 = sand.u32 %s44, 1
        %s859 = scalar_lea.sflag [#allocation7], %s858
        %s860 = sand.u32 %s198, 1
        %s861 = smul.addr %s860, 64
        %s862 = scalar_lea.vmem [#allocation8], %s861
        // Predicated region
        $region117: #{roberta_class_forward.1} parent=107 // pred_check
          %p863 = pneg %p211
        $region118: #{roberta_class_forward.1} parent=107 // pred_check_branch
          %865 = sbr.rel (%p863) target = $region120
        $region119: #{roberta_class_forward.1} parent=107 // pred_region
          %866 = dma.done %s859, 1024
        $region120: #{roberta_class_forward.1} parent=107 // pred_fallthru
          _
        %s867 = sand.u32 %s44, 1
        %s868 = scalar_lea.sflag [#allocation10], %s867
        %s869 = sand.u32 %s250, 1
        %s870 = smul.addr %s869, 64
        %s871 = scalar_lea.vmem [#allocation9], %s870
        // Predicated region
        $region121: #{roberta_class_forward.1} parent=107 // pred_check
          %p872 = pneg %p263
        $region122: #{roberta_class_forward.1} parent=107 // pred_check_branch
          %874 = sbr.rel (%p872) target = $region124
        $region123: #{roberta_class_forward.1} parent=107 // pred_region
          %875 = dma.done %s868, 1024
        $region124: #{roberta_class_forward.1} parent=107 // pred_fallthru
          _
        %s876 = sand.u32 %s44, 1
        %s877 = scalar_lea.sflag [#allocation10], %s876
        %s878 = sand.u32 %s406, 1
        %s879 = smul.addr %s878, 128
        %s880 = scalar_lea.vmem [#allocation11], %s879
        // Predicated region
        $region125: #{roberta_class_forward.1} parent=107 // pred_check
          %p881 = pneg %p419
        $region126: #{roberta_class_forward.1} parent=107 // pred_check_branch
          %883 = sbr.rel (%p881) target = $region128
        $region127: #{roberta_class_forward.1} parent=107 // pred_region
          %884 = dma.done %s877, 2048
        $region128: #{roberta_class_forward.1} parent=107 // pred_fallthru
          _
        // Predicated region
        $region129: #{roberta_class_forward.1} parent=107 // pred_check
          %p885 = pneg %p518
        $region130: #{roberta_class_forward.1} parent=107 // pred_check_branch
          %887 = sbr.rel (%p885) target = $region132
        $region131: #{roberta_class_forward.1} parent=107 // pred_region
          %888 = dma.done [#allocation13], 1024
        $region132: #{roberta_class_forward.1} parent=107 // pred_fallthru
          _
        // Predicated region
        $region133: #{roberta_class_forward.1} parent=107 // pred_check
          %p889 = pneg %p560
        $region134: #{roberta_class_forward.1} parent=107 // pred_check_branch
          %891 = sbr.rel (%p889) target = $region136
        $region135: #{roberta_class_forward.1} parent=107 // pred_region
          %892 = dma.done [#allocation13], 1024
        $region136: #{roberta_class_forward.1} parent=107 // pred_fallthru
          _
        %p893 = pneg %p60
        %p894 = pneg %p57
        %p895 = pneg %p81
        %p896 = pneg %p78
        %s897 = sand.u32 %s94, 1
        %s898 = scalar_lea.sflag [#allocation4], %s897
        %s899 = sand.u32 %s94, 1
        %s900 = smul.addr %s899, 64
        %s901 = scalar_lea.vmem [#allocation3], %s900
        %p902 = pneg %p107
        %p903 = pneg %p104
        %p904 = scmp.lt.s32.totalorder %s44, 1
        %s905 = scalar_select %p904, %s44, 1
        %s906 = scalar_lea.vmem %s3, %s905
        %p907 = pneg %p133
        %p908 = pneg %p130
        %s909 = sand.u32 %s44, 1
        %s910 = scalar_lea.sflag [#allocation7], %s909
        %s911 = sand.u32 %s146, 1
        %s912 = smul.addr %s911, 64
        %s913 = scalar_lea.vmem [#allocation6], %s912
        %p914 = pneg %p159
        %p915 = pneg %p156
        %p916 = scmp.lt.s32.totalorder %s44, 1
        %s917 = scalar_select %p916, %s44, 1
        %s918 = scalar_lea.vmem %s5, %s917
        %p919 = pneg %p185
        %p920 = pneg %p182
        %s921 = sand.u32 %s44, 1
        %s922 = scalar_lea.sflag [#allocation7], %s921
        %s923 = sand.u32 %s198, 1
        %s924 = smul.addr %s923, 64
        %s925 = scalar_lea.vmem [#allocation8], %s924
        %p926 = pneg %p211
        %p927 = pneg %p208
        %p928 = scmp.lt.s32.totalorder %s44, 1
        %s929 = scalar_select %p928, %s44, 1
        %s930 = scalar_lea.vmem %s7, %s929
        %p931 = pneg %p237
        %p932 = pneg %p234
        %s933 = sand.u32 %s44, 1
        %s934 = scalar_lea.sflag [#allocation10], %s933
        %s935 = sand.u32 %s250, 1
        %s936 = smul.addr %s935, 64
        %s937 = scalar_lea.vmem [#allocation9], %s936
        %p938 = pneg %p263
        %p939 = pneg %p260
        %p940 = scmp.lt.s32.totalorder %s44, 1
        %s941 = scalar_select %p940, %s44, 1
        %s942 = scalar_lea.vmem %s9, %s941
        %p943 = pneg %p289
        %p944 = pneg %p286
        %p945 = scmp.lt.s32.totalorder %s44, 1
        %s946 = scalar_select %p945, %s44, 1
        %s947 = scalar_lea.vmem %s10, %s946
        %p948 = pneg %p315
        %p949 = pneg %p312
        %p950 = scmp.lt.s32.totalorder %s44, 1
        %s951 = scalar_select %p950, %s44, 1
        %s952 = scalar_lea.vmem %s11, %s951
        %p953 = pneg %p341
        %p954 = pneg %p338
        %p955 = scmp.lt.s32.totalorder %s44, 1
        %s956 = scalar_select %p955, %s44, 1
        %s957 = smul.addr %s956, 32
        %s958 = smul.addr %s957, 4
        %s959 = scalar_lea.vmem %s12, %s958
        %p960 = pneg %p367
        %p961 = pneg %p364
        %p962 = scmp.lt.s32.totalorder %s44, 1
        %s963 = scalar_select %p962, %s44, 1
        %s964 = smul.addr %s963, 2
        %s965 = scalar_lea.vmem %s13, %s964
        %p966 = pneg %p393
        %p967 = pneg %p390
        %s968 = sand.u32 %s44, 1
        %s969 = scalar_lea.sflag [#allocation10], %s968
        %s970 = sand.u32 %s406, 1
        %s971 = smul.addr %s970, 128
        %s972 = scalar_lea.vmem [#allocation11], %s971
        %p973 = pneg %p419
        %p974 = pneg %p416
        %p975 = scmp.lt.s32.totalorder %s44, 1
        %s976 = scalar_select %p975, %s44, 1
        %s977 = scalar_lea.vmem %s15, %s976
        %p978 = pneg %p445
        %p979 = pneg %p442
        %p980 = scmp.lt.s32.totalorder %s44, 1
        %s981 = scalar_select %p980, %s44, 1
        %s982 = scalar_lea.vmem %s16, %s981
        %p983 = pneg %p471
        %p984 = pneg %p468
        %p985 = scmp.lt.s32.totalorder %s44, 1
        %s986 = scalar_select %p985, %s44, 1
        %s987 = scalar_lea.vmem %s17, %s986
        %p988 = pneg %p497
        %p989 = pneg %p494
        %p990 = pneg %p518
        %p991 = pneg %p515
        %p992 = pneg %p539
        %p993 = pneg %p536
        %p994 = pneg %p560
        %p995 = pneg %p557
        %p996 = pneg %p581
        %p997 = pneg %p578
        %p998 = pneg %p602
        %p999 = pneg %p599
        %p1000 = scmp.lt.s32.totalorder %s44, 1
        %s1001 = scalar_select %p1000, %s44, 1
        %s1002 = scalar_lea.vmem %s3, %s1001
        %p1003 = scmp.lt.s32.totalorder %s44, 1
        %s1004 = scalar_select %p1003, %s44, 1
        %s1005 = scalar_lea.vmem %s5, %s1004
        %p1006 = scmp.lt.s32.totalorder %s44, 1
        %s1007 = scalar_select %p1006, %s44, 1
        %s1008 = scalar_lea.vmem %s7, %s1007
        %p1009 = scmp.lt.s32.totalorder %s44, 1
        %s1010 = scalar_select %p1009, %s44, 1
        %s1011 = scalar_lea.vmem %s9, %s1010
        %p1012 = scmp.lt.s32.totalorder %s44, 1
        %s1013 = scalar_select %p1012, %s44, 1
        %s1014 = scalar_lea.vmem %s10, %s1013
        %p1015 = scmp.lt.s32.totalorder %s44, 1
        %s1016 = scalar_select %p1015, %s44, 1
        %s1017 = scalar_lea.vmem %s11, %s1016
        %p1018 = scmp.lt.s32.totalorder %s44, 1
        %s1019 = scalar_select %p1018, %s44, 1
        %s1020 = smul.addr %s1019, 32
        %s1021 = smul.addr %s1020, 4
        %s1022 = scalar_lea.vmem %s12, %s1021
        %p1023 = scmp.lt.s32.totalorder %s44, 1
        %s1024 = scalar_select %p1023, %s44, 1
        %s1025 = smul.addr %s1024, 2
        %s1026 = scalar_lea.vmem %s13, %s1025
        %p1027 = scmp.lt.s32.totalorder %s44, 1
        %s1028 = scalar_select %p1027, %s44, 1
        %s1029 = scalar_lea.vmem %s15, %s1028
        %p1030 = scmp.lt.s32.totalorder %s44, 1
        %s1031 = scalar_select %p1030, %s44, 1
        %s1032 = scalar_lea.vmem %s16, %s1031
        %p1033 = scmp.lt.s32.totalorder %s44, 1
        %s1034 = scalar_select %p1033, %s44, 1
        %s1035 = scalar_lea.vmem %s17, %s1034
        %p1037 = scmp.eq.s32.totalorder %s44, 0
        // Predicated region
        $region137: #{roberta_class_forward.1} parent=107 // pred_check
          %p1038 = pneg %p1037
        $region138: #{roberta_class_forward.1} parent=107 // pred_check_branch
          %1040 = sbr.rel (%p1038) target = $region140
        $region139: #{roberta_class_forward.1} parent=107 // pred_region
          %v1041 = vld [vmem:[%s0] sm:$0xf]
          %v1042 = vld [vmem:[%s0 + $0x4] sm:$0xf]
          %1043 = vst [vmem:[#allocation2] sm:$0xf] %v1041
          %1044 = vst [vmem:[#allocation2 + $0x4] sm:$0xf] %v1042
        $region140: #{roberta_class_forward.1} parent=107 // pred_fallthru
          _
        %v1045 = vld [vmem:[#allocation2] sm:$0xf]
        %v1046 = vld [vmem:[#allocation2 + $0x4] sm:$0xf]
        %v1047 = vunpack.c.l.bf16 %v1045
        %v1048 = vunpack.c.l.bf16 %v1046
        %v1049 = vld [vmem:[%s844] sm:$0xf]
        %v1050 = vld [vmem:[%s844 + $0x4] sm:$0xf]
        %v1051 = vld [vmem:[%s844 + $0x8] sm:$0xf]
        %v1052 = vld [vmem:[%s844 + $0xc] sm:$0xf]
        %v1053 = vld [vmem:[%s844 + $0x10] sm:$0xf]
        %v1054 = vld [vmem:[%s844 + $0x14] sm:$0xf]
        %v1055 = vld [vmem:[%s844 + $0x18] sm:$0xf]
        %v1056 = vld [vmem:[%s844 + $0x1c] sm:$0xf]
        %v1057 = vld [vmem:[%s844 + $0x20] sm:$0xf]
        %v1058 = vld [vmem:[%s844 + $0x24] sm:$0xf]
        %v1059 = vld [vmem:[%s844 + $0x28] sm:$0xf]
        %v1060 = vld [vmem:[%s844 + $0x2c] sm:$0xf]
        %v1061 = vld [vmem:[%s844 + $0x30] sm:$0xf]
        %v1062 = vld [vmem:[%s844 + $0x34] sm:$0xf]
        %v1063 = vld [vmem:[%s844 + $0x38] sm:$0xf]
        %v1064 = vld [vmem:[%s844 + $0x3c] sm:$0xf]
        %v1065 = vld [vmem:[%s1002] sm:$0x1]
        %v1067 = vlaneseq
        %v1068 = vshrl.u32 %v1067, 7
        %v1069 = vsub.s32 0, %v1068
        %v1070 = vrot.slane %v1065, %v1069
        %v1074 = vunpack.c.l.b16 %v1045
        %v1075 = vunpack.c.l.b16 %v1046
        %v1076 = vpack.c.b16 %v1075, %v1074
        %v1094 = vunpack.c.l.b16 %v1049
        %v1095 = vunpack.c.l.b16 %v1050
        %v1096 = vunpack.c.l.b16 %v1051
        %v1097 = vunpack.c.l.b16 %v1052
        %v1098 = vunpack.c.l.b16 %v1053
        %v1099 = vunpack.c.l.b16 %v1054
        %v1100 = vunpack.c.l.b16 %v1055
        %v1101 = vunpack.c.l.b16 %v1056
        %v1102 = vunpack.c.l.b16 %v1057
        %v1103 = vunpack.c.l.b16 %v1058
        %v1104 = vunpack.c.l.b16 %v1059
        %v1105 = vunpack.c.l.b16 %v1060
        %v1106 = vunpack.c.l.b16 %v1061
        %v1107 = vunpack.c.l.b16 %v1062
        %v1108 = vunpack.c.l.b16 %v1063
        %v1109 = vunpack.c.l.b16 %v1064
        %v1110 = vpack.c.b16 %v1095, %v1094
        %v1111 = vpack.c.b16 %v1097, %v1096
        %v1112 = vpack.c.b16 %v1099, %v1098
        %v1113 = vpack.c.b16 %v1101, %v1100
        %v1114 = vpack.c.b16 %v1103, %v1102
        %v1115 = vpack.c.b16 %v1105, %v1104
        %v1116 = vpack.c.b16 %v1107, %v1106
        %v1117 = vpack.c.b16 %v1109, %v1108
        %1126 = vmatprep.subr.bf16.mxu0 0
        %1127 = vmatpush1.bf16.msra.mxu0 %v1117
        %1128 = vmatprep.subr.bf16.mxu0 0
        %1129 = vmatpush1.bf16.msra.mxu0 %v1116
        %1130 = vmatprep.subr.bf16.mxu0 0
        %1131 = vmatpush1.bf16.msra.mxu0 %v1115
        %1132 = vmatprep.subr.bf16.mxu0 0
        %1133 = vmatpush1.bf16.msra.mxu0 %v1114
        %1134 = vmatprep.subr.bf16.mxu0 0
        %1135 = vmatpush1.bf16.msra.mxu0 %v1113
        %1136 = vmatprep.subr.bf16.mxu0 0
        %1137 = vmatpush1.bf16.msra.mxu0 %v1112
        %1138 = vmatprep.subr.bf16.mxu0 0
        %1139 = vmatpush1.bf16.msra.mxu0 %v1111
        %1140 = vmatprep.subr.bf16.mxu0 0
        %1141 = vmatpush1.bf16.msra.mxu0 %v1110
        %1142 = vmatprep.subr.bf16.mxu0 0
        %1143 = vmatpush2.bf16.msra.mxu0 0
        %1144 = vmatprep.subr.bf16.mxu0 0
        %1145 = vmatpush2.bf16.msra.mxu0 0
        %1146 = vmatprep.subr.bf16.mxu0 0
        %1147 = vmatpush2.bf16.msra.mxu0 0
        %1148 = vmatprep.subr.bf16.mxu0 0
        %1149 = vmatpush2.bf16.msra.mxu0 0
        %1150 = vmatprep.subr.bf16.mxu0 0
        %1151 = vmatpush2.bf16.msra.mxu0 0
        %1152 = vmatprep.subr.bf16.mxu0 0
        %1153 = vmatpush2.bf16.msra.mxu0 0
        %1154 = vmatprep.subr.bf16.mxu0 0
        %1155 = vmatpush2.bf16.msra.mxu0 0
        %1156 = vmatprep.subr.bf16.mxu0 0
        %1157 = vmatpush2.bf16.msra.mxu0 0
        %1158 = vmatprep.mubr.bf16.mxu0 0
        %1159 = vmatmul.mubr.bf16.gmra.mxu0 %v1076
        %v1160 = vpop.f32.mrf.mxu0
        %v1161 = vadd.f32 %v1070, %v1160
        %v1162 = vpop.f32.mrf.mxu0
        %v1163 = vpop.f32.mrf.mxu0
        %v1164 = vadd.f32 %v1070, %v1163
        %v1165 = vpop.f32.mrf.mxu0
        %1166 = vdwg.mxu0
        %v1167 = vmul.f32 %v1161, 0.17677669
        %v1168 = vmul.f32 %v1164, 0.17677669
        %v1169 = vld [vmem:[%s853] sm:$0xf]
        %v1170 = vld [vmem:[%s853 + $0x4] sm:$0xf]
        %v1171 = vld [vmem:[%s853 + $0x8] sm:$0xf]
        %v1172 = vld [vmem:[%s853 + $0xc] sm:$0xf]
        %v1173 = vld [vmem:[%s853 + $0x10] sm:$0xf]
        %v1174 = vld [vmem:[%s853 + $0x14] sm:$0xf]
        %v1175 = vld [vmem:[%s853 + $0x18] sm:$0xf]
        %v1176 = vld [vmem:[%s853 + $0x1c] sm:$0xf]
        %v1177 = vld [vmem:[%s853 + $0x20] sm:$0xf]
        %v1178 = vld [vmem:[%s853 + $0x24] sm:$0xf]
        %v1179 = vld [vmem:[%s853 + $0x28] sm:$0xf]
        %v1180 = vld [vmem:[%s853 + $0x2c] sm:$0xf]
        %v1181 = vld [vmem:[%s853 + $0x30] sm:$0xf]
        %v1182 = vld [vmem:[%s853 + $0x34] sm:$0xf]
        %v1183 = vld [vmem:[%s853 + $0x38] sm:$0xf]
        %v1184 = vld [vmem:[%s853 + $0x3c] sm:$0xf]
        %v1185 = vld [vmem:[%s1005] sm:$0x1]
        %v1187 = vlaneseq
        %v1188 = vshrl.u32 %v1187, 7
        %v1189 = vsub.s32 0, %v1188
        %v1190 = vrot.slane %v1185, %v1189
        %v1208 = vunpack.c.l.b16 %v1169
        %v1209 = vunpack.c.l.b16 %v1170
        %v1210 = vunpack.c.l.b16 %v1171
        %v1211 = vunpack.c.l.b16 %v1172
        %v1212 = vunpack.c.l.b16 %v1173
        %v1213 = vunpack.c.l.b16 %v1174
        %v1214 = vunpack.c.l.b16 %v1175
        %v1215 = vunpack.c.l.b16 %v1176
        %v1216 = vunpack.c.l.b16 %v1177
        %v1217 = vunpack.c.l.b16 %v1178
        %v1218 = vunpack.c.l.b16 %v1179
        %v1219 = vunpack.c.l.b16 %v1180
        %v1220 = vunpack.c.l.b16 %v1181
        %v1221 = vunpack.c.l.b16 %v1182
        %v1222 = vunpack.c.l.b16 %v1183
        %v1223 = vunpack.c.l.b16 %v1184
        %v1224 = vpack.c.b16 %v1209, %v1208
        %v1225 = vpack.c.b16 %v1211, %v1210
        %v1226 = vpack.c.b16 %v1213, %v1212
        %v1227 = vpack.c.b16 %v1215, %v1214
        %v1228 = vpack.c.b16 %v1217, %v1216
        %v1229 = vpack.c.b16 %v1219, %v1218
        %v1230 = vpack.c.b16 %v1221, %v1220
        %v1231 = vpack.c.b16 %v1223, %v1222
        %1240 = vmatprep.subr.bf16.mxu0 0
        %1241 = vmatpush1.bf16.msra.mxu0 %v1231
        %1242 = vmatprep.subr.bf16.mxu0 0
        %1243 = vmatpush1.bf16.msra.mxu0 %v1230
        %1244 = vmatprep.subr.bf16.mxu0 0
        %1245 = vmatpush1.bf16.msra.mxu0 %v1229
        %1246 = vmatprep.subr.bf16.mxu0 0
        %1247 = vmatpush1.bf16.msra.mxu0 %v1228
        %1248 = vmatprep.subr.bf16.mxu0 0
        %1249 = vmatpush1.bf16.msra.mxu0 %v1227
        %1250 = vmatprep.subr.bf16.mxu0 0
        %1251 = vmatpush1.bf16.msra.mxu0 %v1226
        %1252 = vmatprep.subr.bf16.mxu0 0
        %1253 = vmatpush1.bf16.msra.mxu0 %v1225
        %1254 = vmatprep.subr.bf16.mxu0 0
        %1255 = vmatpush1.bf16.msra.mxu0 %v1224
        %1256 = vmatprep.subr.bf16.mxu0 0
        %1257 = vmatpush2.bf16.msra.mxu0 0
        %1258 = vmatprep.subr.bf16.mxu0 0
        %1259 = vmatpush2.bf16.msra.mxu0 0
        %1260 = vmatprep.subr.bf16.mxu0 0
        %1261 = vmatpush2.bf16.msra.mxu0 0
        %1262 = vmatprep.subr.bf16.mxu0 0
        %1263 = vmatpush2.bf16.msra.mxu0 0
        %1264 = vmatprep.subr.bf16.mxu0 0
        %1265 = vmatpush2.bf16.msra.mxu0 0
        %1266 = vmatprep.subr.bf16.mxu0 0
        %1267 = vmatpush2.bf16.msra.mxu0 0
        %1268 = vmatprep.subr.bf16.mxu0 0
        %1269 = vmatpush2.bf16.msra.mxu0 0
        %1270 = vmatprep.subr.bf16.mxu0 0
        %1271 = vmatpush2.bf16.msra.mxu0 0
        %1272 = vmatprep.mubr.bf16.mxu0 0
        %1273 = vmatmul.mubr.bf16.gmra.mxu0 %v1076
        %v1274 = vpop.f32.mrf.mxu0
        %v1275 = vadd.f32 %v1190, %v1274
        %v1276 = vpop.f32.mrf.mxu0
        %v1277 = vpop.f32.mrf.mxu0
        %v1278 = vadd.f32 %v1190, %v1277
        %v1279 = vpop.f32.mrf.mxu0
        %1280 = vdwg.mxu0
        %v1281 = vld [vmem:[%s862] sm:$0xf]
        %v1282 = vld [vmem:[%s862 + $0x4] sm:$0xf]
        %v1283 = vld [vmem:[%s862 + $0x8] sm:$0xf]
        %v1284 = vld [vmem:[%s862 + $0xc] sm:$0xf]
        %v1285 = vld [vmem:[%s862 + $0x10] sm:$0xf]
        %v1286 = vld [vmem:[%s862 + $0x14] sm:$0xf]
        %v1287 = vld [vmem:[%s862 + $0x18] sm:$0xf]
        %v1288 = vld [vmem:[%s862 + $0x1c] sm:$0xf]
        %v1289 = vld [vmem:[%s862 + $0x20] sm:$0xf]
        %v1290 = vld [vmem:[%s862 + $0x24] sm:$0xf]
        %v1291 = vld [vmem:[%s862 + $0x28] sm:$0xf]
        %v1292 = vld [vmem:[%s862 + $0x2c] sm:$0xf]
        %v1293 = vld [vmem:[%s862 + $0x30] sm:$0xf]
        %v1294 = vld [vmem:[%s862 + $0x34] sm:$0xf]
        %v1295 = vld [vmem:[%s862 + $0x38] sm:$0xf]
        %v1296 = vld [vmem:[%s862 + $0x3c] sm:$0xf]
        %v1297 = vld [vmem:[%s1008] sm:$0x1]
        %v1299 = vlaneseq
        %v1300 = vshrl.u32 %v1299, 7
        %v1301 = vsub.s32 0, %v1300
        %v1302 = vrot.slane %v1297, %v1301
        %v1320 = vunpack.c.l.b16 %v1281
        %v1321 = vunpack.c.l.b16 %v1282
        %v1322 = vunpack.c.l.b16 %v1283
        %v1323 = vunpack.c.l.b16 %v1284
        %v1324 = vunpack.c.l.b16 %v1285
        %v1325 = vunpack.c.l.b16 %v1286
        %v1326 = vunpack.c.l.b16 %v1287
        %v1327 = vunpack.c.l.b16 %v1288
        %v1328 = vunpack.c.l.b16 %v1289
        %v1329 = vunpack.c.l.b16 %v1290
        %v1330 = vunpack.c.l.b16 %v1291
        %v1331 = vunpack.c.l.b16 %v1292
        %v1332 = vunpack.c.l.b16 %v1293
        %v1333 = vunpack.c.l.b16 %v1294
        %v1334 = vunpack.c.l.b16 %v1295
        %v1335 = vunpack.c.l.b16 %v1296
        %v1336 = vpack.c.b16 %v1321, %v1320
        %v1337 = vpack.c.b16 %v1323, %v1322
        %v1338 = vpack.c.b16 %v1325, %v1324
        %v1339 = vpack.c.b16 %v1327, %v1326
        %v1340 = vpack.c.b16 %v1329, %v1328
        %v1341 = vpack.c.b16 %v1331, %v1330
        %v1342 = vpack.c.b16 %v1333, %v1332
        %v1343 = vpack.c.b16 %v1335, %v1334
        %1352 = vmatprep.subr.bf16.mxu0 0
        %1353 = vmatpush1.bf16.msra.mxu0 %v1343
        %1354 = vmatprep.subr.bf16.mxu0 0
        %1355 = vmatpush1.bf16.msra.mxu0 %v1342
        %1356 = vmatprep.subr.bf16.mxu0 0
        %1357 = vmatpush1.bf16.msra.mxu0 %v1341
        %1358 = vmatprep.subr.bf16.mxu0 0
        %1359 = vmatpush1.bf16.msra.mxu0 %v1340
        %1360 = vmatprep.subr.bf16.mxu0 0
        %1361 = vmatpush1.bf16.msra.mxu0 %v1339
        %1362 = vmatprep.subr.bf16.mxu0 0
        %1363 = vmatpush1.bf16.msra.mxu0 %v1338
        %1364 = vmatprep.subr.bf16.mxu0 0
        %1365 = vmatpush1.bf16.msra.mxu0 %v1337
        %1366 = vmatprep.subr.bf16.mxu0 0
        %1367 = vmatpush1.bf16.msra.mxu0 %v1336
        %1368 = vmatprep.subr.bf16.mxu0 0
        %1369 = vmatpush2.bf16.msra.mxu0 0
        %1370 = vmatprep.subr.bf16.mxu0 0
        %1371 = vmatpush2.bf16.msra.mxu0 0
        %1372 = vmatprep.subr.bf16.mxu0 0
        %1373 = vmatpush2.bf16.msra.mxu0 0
        %1374 = vmatprep.subr.bf16.mxu0 0
        %1375 = vmatpush2.bf16.msra.mxu0 0
        %1376 = vmatprep.subr.bf16.mxu0 0
        %1377 = vmatpush2.bf16.msra.mxu0 0
        %1378 = vmatprep.subr.bf16.mxu0 0
        %1379 = vmatpush2.bf16.msra.mxu0 0
        %1380 = vmatprep.subr.bf16.mxu0 0
        %1381 = vmatpush2.bf16.msra.mxu0 0
        %1382 = vmatprep.subr.bf16.mxu0 0
        %1383 = vmatpush2.bf16.msra.mxu0 0
        %1384 = vmatprep.mubr.bf16.mxu0 0
        %1385 = vmatmul.mubr.bf16.gmra.mxu0 %v1076
        %v1386 = vpop.f32.mrf.mxu0
        %v1387 = vadd.f32 %v1302, %v1386
        %v1388 = vpop.f32.mrf.mxu0
        %v1389 = vpop.f32.mrf.mxu0
        %v1390 = vadd.f32 %v1302, %v1389
        %v1391 = vpop.f32.mrf.mxu0
        %1392 = vdwg.mxu0
        %v1393 = vpack.c.bf16 %v1168, %v1167
        %v1394 = vpack.c.bf16 %v1278, %v1275
        %v1395 = vpack.c.bf16 %v1390, %v1387
        %v1396 = vld [vmem:[%s1] sm:$0x1]
        %v1397 = vld [vmem:[%s1 + $0x1] sm:$0x1]
        %v1399 = vunpack.c.l.b16 %v1393
        %v1400 = vunpack.c.h.b16 %v1393
        %v1401 = vpack.c.b16 %v1399, %v1399
        %v1402 = vpack.c.b16 %v1400, %v1400
        %v1404 = vunpack.c.l.b16 %v1394
        %v1405 = vunpack.c.h.b16 %v1394
        %v1406 = vpack.c.b16 %v1404, %v1404
        %v1407 = vpack.c.b16 %v1405, %v1405
        %v1409 = vunpack.c.l.b16 %v1395
        %v1410 = vunpack.c.h.b16 %v1395
        %v1411 = vpack.c.b16 %v1409, %v1409
        %v1412 = vpack.c.b16 %v1410, %v1410
        %v1415 = vlaneseq
        %v1416 = vshrl.u32 %v1415, 7
        %v1417 = vsub.s32 0, %v1416
        %v1418 = vrot.slane %v1396, %v1417
        %v1419 = vlaneseq
        %v1420 = vshrl.u32 %v1419, 7
        %v1421 = vsub.s32 0, %v1420
        %v1422 = vrot.slane %v1397, %v1421
        %vm1425 = vcmask 261120
        %v1427 = vsel %vm1425, %v1401, 0
        %v1430 = vsel %vm1425, %v1406, 0
        %1432 = vmatprep.subr.bf16.mxu0 0
        %1433 = vmatpush1.bf16.xpose.msra.mxu0 0
        %1434 = vmatprep.subr.bf16.mxu0 0
        %1435 = vmatpush1.bf16.xpose.msra.mxu0 0
        %1436 = vmatprep.subr.bf16.mxu0 0
        %1437 = vmatpush1.bf16.xpose.msra.mxu0 0
        %1438 = vmatprep.subr.bf16.mxu0 0
        %1439 = vmatpush1.bf16.xpose.msra.mxu0 0
        %1440 = vmatprep.subr.bf16.mxu0 0
        %1441 = vmatpush1.bf16.xpose.msra.mxu0 0
        %1442 = vmatprep.subr.bf16.mxu0 0
        %1443 = vmatpush1.bf16.xpose.msra.mxu0 0
        %1444 = vmatprep.subr.bf16.mxu0 0
        %1445 = vmatpush1.bf16.xpose.msra.mxu0 0
        %1446 = vmatprep.subr.bf16.mxu0 0
        %1447 = vmatpush1.bf16.xpose.msra.mxu0 %v1430
        %1448 = vmatprep.subr.bf16.mxu0 0
        %1449 = vmatpush2.bf16.xpose.msra.mxu0 0
        %1450 = vmatprep.subr.bf16.mxu0 0
        %1451 = vmatpush2.bf16.xpose.msra.mxu0 0
        %1452 = vmatprep.subr.bf16.mxu0 0
        %1453 = vmatpush2.bf16.xpose.msra.mxu0 0
        %1454 = vmatprep.subr.bf16.mxu0 0
        %1455 = vmatpush2.bf16.xpose.msra.mxu0 0
        %1456 = vmatprep.subr.bf16.mxu0 0
        %1457 = vmatpush2.bf16.xpose.msra.mxu0 0
        %1458 = vmatprep.subr.bf16.mxu0 0
        %1459 = vmatpush2.bf16.xpose.msra.mxu0 0
        %1460 = vmatprep.subr.bf16.mxu0 0
        %1461 = vmatpush2.bf16.xpose.msra.mxu0 0
        %1462 = vmatprep.subr.bf16.mxu0 0
        %1463 = vmatpush2.bf16.xpose.msra.mxu0 0
        %1464 = vmatprep.mubr.bf16.mxu0 0
        %1465 = vmatmul.mubr.bf16.gmra.mxu0 %v1427
        %v1466 = vpop.f32.mrf.mxu0
        %v1467 = vadd.f32 %v1418, %v1466
        %v1468 = vpop.f32.mrf.mxu0
        %v1469 = vpop.f32.mrf.mxu0
        %v1470 = vpop.f32.mrf.mxu0
        %1471 = vdwg.mxu0
        %v1473 = vsel %vm1425, %v1402, 0
        %v1476 = vsel %vm1425, %v1407, 0
        %1478 = vmatprep.subr.bf16.mxu0 0
        %1479 = vmatpush1.bf16.xpose.msra.mxu0 0
        %1480 = vmatprep.subr.bf16.mxu0 0
        %1481 = vmatpush1.bf16.xpose.msra.mxu0 0
        %1482 = vmatprep.subr.bf16.mxu0 0
        %1483 = vmatpush1.bf16.xpose.msra.mxu0 0
        %1484 = vmatprep.subr.bf16.mxu0 0
        %1485 = vmatpush1.bf16.xpose.msra.mxu0 0
        %1486 = vmatprep.subr.bf16.mxu0 0
        %1487 = vmatpush1.bf16.xpose.msra.mxu0 0
        %1488 = vmatprep.subr.bf16.mxu0 0
        %1489 = vmatpush1.bf16.xpose.msra.mxu0 0
        %1490 = vmatprep.subr.bf16.mxu0 0
        %1491 = vmatpush1.bf16.xpose.msra.mxu0 0
        %1492 = vmatprep.subr.bf16.mxu0 0
        %1493 = vmatpush1.bf16.xpose.msra.mxu0 %v1476
        %1494 = vmatprep.subr.bf16.mxu0 0
        %1495 = vmatpush2.bf16.xpose.msra.mxu0 0
        %1496 = vmatprep.subr.bf16.mxu0 0
        %1497 = vmatpush2.bf16.xpose.msra.mxu0 0
        %1498 = vmatprep.subr.bf16.mxu0 0
        %1499 = vmatpush2.bf16.xpose.msra.mxu0 0
        %1500 = vmatprep.subr.bf16.mxu0 0
        %1501 = vmatpush2.bf16.xpose.msra.mxu0 0
        %1502 = vmatprep.subr.bf16.mxu0 0
        %1503 = vmatpush2.bf16.xpose.msra.mxu0 0
        %1504 = vmatprep.subr.bf16.mxu0 0
        %1505 = vmatpush2.bf16.xpose.msra.mxu0 0
        %1506 = vmatprep.subr.bf16.mxu0 0
        %1507 = vmatpush2.bf16.xpose.msra.mxu0 0
        %1508 = vmatprep.subr.bf16.mxu0 0
        %1509 = vmatpush2.bf16.xpose.msra.mxu0 0
        %1510 = vmatprep.mubr.bf16.mxu0 0
        %1511 = vmatmul.mubr.bf16.gmra.mxu0 %v1473
        %v1512 = vpop.f32.mrf.mxu0
        %v1513 = vadd.f32 %v1422, %v1512
        %v1514 = vpop.f32.mrf.mxu0
        %v1515 = vpop.f32.mrf.mxu0
        %v1516 = vpop.f32.mrf.mxu0
        %1517 = vdwg.mxu0
        %vm1518 = vcmask 64512
        %v1519 = vsel %vm1518, %v1467, -inf
        %1520 = vmax.xlane.f32.xlu0 %v1519
        %v1521 = vpop.xlane.xlu0 %1520
        %v1522 = vsel %vm1518, %v1513, -inf
        %1523 = vmax.xlane.f32.xlu0 %v1522
        %v1524 = vpop.xlane.xlu0 %1523
        %v1525 = vsub.f32 %v1467, %v1521
        %v1526 = vsub.f32 %v1513, %v1524
        %v1527 = vmul.f32 %v1525, 1.442695
        %v1528 = vpow.pop %v1527
        %v1529 = vmul.f32 %v1526, 1.442695
        %v1530 = vpow.pop %v1529
        %v1531 = vsel %vm1518, %v1528, 0.0
        %1532 = vadd.xlane.f32.xlu0 %v1531
        %v1533 = vpop.xlane.xlu0 %1532
        %v1534 = vsel %vm1518, %v1530, 0.0
        %1535 = vadd.xlane.f32.xlu0 %v1534
        %v1536 = vpop.xlane.xlu0 %1535
        %v1537 = vrcp.pop %v1533
        %v1538 = vrcp.pop %v1536
        %v1539 = vmul.f32 %v1528, %v1537
        %v1540 = vmul.f32 %v1530, %v1538
        %v1541 = vpack.c.bf16 %v1539, %v1539
        %v1542 = vpack.c.bf16 %v1540, %v1540
        %v1544 = vsel %vm1518, %v1541, 0
        %vm1546 = vcmask 1043456
        %v1548 = vsel %vm1546, %v1411, 0
        %1550 = vmatprep.subr.bf16.mxu0 0
        %1551 = vmatpush1.bf16.msra.mxu0 0
        %1552 = vmatprep.subr.bf16.mxu0 0
        %1553 = vmatpush1.bf16.msra.mxu0 0
        %1554 = vmatprep.subr.bf16.mxu0 0
        %1555 = vmatpush1.bf16.msra.mxu0 0
        %1556 = vmatprep.subr.bf16.mxu0 0
        %1557 = vmatpush1.bf16.msra.mxu0 0
        %1558 = vmatprep.subr.bf16.mxu0 0
        %1559 = vmatpush1.bf16.msra.mxu0 0
        %1560 = vmatprep.subr.bf16.mxu0 0
        %1561 = vmatpush1.bf16.msra.mxu0 0
        %1562 = vmatprep.subr.bf16.mxu0 0
        %1563 = vmatpush1.bf16.msra.mxu0 0
        %1564 = vmatprep.subr.bf16.mxu0 0
        %1565 = vmatpush1.bf16.msra.mxu0 %v1548
        %1566 = vmatprep.subr.bf16.mxu0 0
        %1567 = vmatpush2.bf16.msra.mxu0 0
        %1568 = vmatprep.subr.bf16.mxu0 0
        %1569 = vmatpush2.bf16.msra.mxu0 0
        %1570 = vmatprep.subr.bf16.mxu0 0
        %1571 = vmatpush2.bf16.msra.mxu0 0
        %1572 = vmatprep.subr.bf16.mxu0 0
        %1573 = vmatpush2.bf16.msra.mxu0 0
        %1574 = vmatprep.subr.bf16.mxu0 0
        %1575 = vmatpush2.bf16.msra.mxu0 0
        %1576 = vmatprep.subr.bf16.mxu0 0
        %1577 = vmatpush2.bf16.msra.mxu0 0
        %1578 = vmatprep.subr.bf16.mxu0 0
        %1579 = vmatpush2.bf16.msra.mxu0 0
        %1580 = vmatprep.subr.bf16.mxu0 0
        %1581 = vmatpush2.bf16.msra.mxu0 0
        %1582 = vmatprep.mubr.bf16.mxu0 0
        %1583 = vmatmul.mubr.bf16.gmra.mxu0 %v1544
        %v1584 = vpop.f32.mrf.mxu0
        %v1585 = vadd.f32 0.0, %v1584
        %v1586 = vpop.f32.mrf.mxu0
        %v1587 = vpop.f32.mrf.mxu0
        %v1588 = vpop.f32.mrf.mxu0
        %1589 = vdwg.mxu0
        %v1591 = vsel %vm1518, %v1542, 0
        %v1594 = vsel %vm1546, %v1412, 0
        %1596 = vmatprep.subr.bf16.mxu0 0
        %1597 = vmatpush1.bf16.msra.mxu0 0
        %1598 = vmatprep.subr.bf16.mxu0 0
        %1599 = vmatpush1.bf16.msra.mxu0 0
        %1600 = vmatprep.subr.bf16.mxu0 0
        %1601 = vmatpush1.bf16.msra.mxu0 0
        %1602 = vmatprep.subr.bf16.mxu0 0
        %1603 = vmatpush1.bf16.msra.mxu0 0
        %1604 = vmatprep.subr.bf16.mxu0 0
        %1605 = vmatpush1.bf16.msra.mxu0 0
        %1606 = vmatprep.subr.bf16.mxu0 0
        %1607 = vmatpush1.bf16.msra.mxu0 0
        %1608 = vmatprep.subr.bf16.mxu0 0
        %1609 = vmatpush1.bf16.msra.mxu0 0
        %1610 = vmatprep.subr.bf16.mxu0 0
        %1611 = vmatpush1.bf16.msra.mxu0 %v1594
        %1612 = vmatprep.subr.bf16.mxu0 0
        %1613 = vmatpush2.bf16.msra.mxu0 0
        %1614 = vmatprep.subr.bf16.mxu0 0
        %1615 = vmatpush2.bf16.msra.mxu0 0
        %1616 = vmatprep.subr.bf16.mxu0 0
        %1617 = vmatpush2.bf16.msra.mxu0 0
        %1618 = vmatprep.subr.bf16.mxu0 0
        %1619 = vmatpush2.bf16.msra.mxu0 0
        %1620 = vmatprep.subr.bf16.mxu0 0
        %1621 = vmatpush2.bf16.msra.mxu0 0
        %1622 = vmatprep.subr.bf16.mxu0 0
        %1623 = vmatpush2.bf16.msra.mxu0 0
        %1624 = vmatprep.subr.bf16.mxu0 0
        %1625 = vmatpush2.bf16.msra.mxu0 0
        %1626 = vmatprep.subr.bf16.mxu0 0
        %1627 = vmatpush2.bf16.msra.mxu0 0
        %1628 = vmatprep.mubr.bf16.mxu0 0
        %1629 = vmatmul.mubr.bf16.gmra.mxu0 %v1591
        %v1630 = vpop.f32.mrf.mxu0
        %v1631 = vadd.f32 0.0, %v1630
        %v1632 = vpop.f32.mrf.mxu0
        %v1633 = vpop.f32.mrf.mxu0
        %v1634 = vpop.f32.mrf.mxu0
        %1635 = vdwg.mxu0
        %1636 = vrot.lane.b32.xlu0 %v1401, 96
        %v1637 = vpop.permute.xlu0 %1636
        %1638 = vrot.lane.b32.xlu0 %v1406, 96
        %v1639 = vpop.permute.xlu0 %1638
        %v1641 = vsel %vm1425, %v1637, 0
        %v1644 = vsel %vm1425, %v1639, 0
        %1646 = vmatprep.subr.bf16.mxu0 0
        %1647 = vmatpush1.bf16.xpose.msra.mxu0 0
        %1648 = vmatprep.subr.bf16.mxu0 0
        %1649 = vmatpush1.bf16.xpose.msra.mxu0 0
        %1650 = vmatprep.subr.bf16.mxu0 0
        %1651 = vmatpush1.bf16.xpose.msra.mxu0 0
        %1652 = vmatprep.subr.bf16.mxu0 0
        %1653 = vmatpush1.bf16.xpose.msra.mxu0 0
        %1654 = vmatprep.subr.bf16.mxu0 0
        %1655 = vmatpush1.bf16.xpose.msra.mxu0 0
        %1656 = vmatprep.subr.bf16.mxu0 0
        %1657 = vmatpush1.bf16.xpose.msra.mxu0 0
        %1658 = vmatprep.subr.bf16.mxu0 0
        %1659 = vmatpush1.bf16.xpose.msra.mxu0 0
        %1660 = vmatprep.subr.bf16.mxu0 0
        %1661 = vmatpush1.bf16.xpose.msra.mxu0 %v1644
        %1662 = vmatprep.subr.bf16.mxu0 0
        %1663 = vmatpush2.bf16.xpose.msra.mxu0 0
        %1664 = vmatprep.subr.bf16.mxu0 0
        %1665 = vmatpush2.bf16.xpose.msra.mxu0 0
        %1666 = vmatprep.subr.bf16.mxu0 0
        %1667 = vmatpush2.bf16.xpose.msra.mxu0 0
        %1668 = vmatprep.subr.bf16.mxu0 0
        %1669 = vmatpush2.bf16.xpose.msra.mxu0 0
        %1670 = vmatprep.subr.bf16.mxu0 0
        %1671 = vmatpush2.bf16.xpose.msra.mxu0 0
        %1672 = vmatprep.subr.bf16.mxu0 0
        %1673 = vmatpush2.bf16.xpose.msra.mxu0 0
        %1674 = vmatprep.subr.bf16.mxu0 0
        %1675 = vmatpush2.bf16.xpose.msra.mxu0 0
        %1676 = vmatprep.subr.bf16.mxu0 0
        %1677 = vmatpush2.bf16.xpose.msra.mxu0 0
        %1678 = vmatprep.mubr.bf16.mxu0 0
        %1679 = vmatmul.mubr.bf16.gmra.mxu0 %v1641
        %v1680 = vpop.f32.mrf.mxu0
        %v1681 = vadd.f32 %v1418, %v1680
        %v1682 = vpop.f32.mrf.mxu0
        %v1683 = vpop.f32.mrf.mxu0
        %v1684 = vpop.f32.mrf.mxu0
        %1685 = vdwg.mxu0
        %1686 = vrot.lane.b32.xlu0 %v1402, 96
        %v1687 = vpop.permute.xlu0 %1686
        %1688 = vrot.lane.b32.xlu0 %v1407, 96
        %v1689 = vpop.permute.xlu0 %1688
        %v1691 = vsel %vm1425, %v1687, 0
        %v1694 = vsel %vm1425, %v1689, 0
        %1696 = vmatprep.subr.bf16.mxu0 0
        %1697 = vmatpush1.bf16.xpose.msra.mxu0 0
        %1698 = vmatprep.subr.bf16.mxu0 0
        %1699 = vmatpush1.bf16.xpose.msra.mxu0 0
        %1700 = vmatprep.subr.bf16.mxu0 0
        %1701 = vmatpush1.bf16.xpose.msra.mxu0 0
        %1702 = vmatprep.subr.bf16.mxu0 0
        %1703 = vmatpush1.bf16.xpose.msra.mxu0 0
        %1704 = vmatprep.subr.bf16.mxu0 0
        %1705 = vmatpush1.bf16.xpose.msra.mxu0 0
        %1706 = vmatprep.subr.bf16.mxu0 0
        %1707 = vmatpush1.bf16.xpose.msra.mxu0 0
        %1708 = vmatprep.subr.bf16.mxu0 0
        %1709 = vmatpush1.bf16.xpose.msra.mxu0 0
        %1710 = vmatprep.subr.bf16.mxu0 0
        %1711 = vmatpush1.bf16.xpose.msra.mxu0 %v1694
        %1712 = vmatprep.subr.bf16.mxu0 0
        %1713 = vmatpush2.bf16.xpose.msra.mxu0 0
        %1714 = vmatprep.subr.bf16.mxu0 0
        %1715 = vmatpush2.bf16.xpose.msra.mxu0 0
        %1716 = vmatprep.subr.bf16.mxu0 0
        %1717 = vmatpush2.bf16.xpose.msra.mxu0 0
        %1718 = vmatprep.subr.bf16.mxu0 0
        %1719 = vmatpush2.bf16.xpose.msra.mxu0 0
        %1720 = vmatprep.subr.bf16.mxu0 0
        %1721 = vmatpush2.bf16.xpose.msra.mxu0 0
        %1722 = vmatprep.subr.bf16.mxu0 0
        %1723 = vmatpush2.bf16.xpose.msra.mxu0 0
        %1724 = vmatprep.subr.bf16.mxu0 0
        %1725 = vmatpush2.bf16.xpose.msra.mxu0 0
        %1726 = vmatprep.subr.bf16.mxu0 0
        %1727 = vmatpush2.bf16.xpose.msra.mxu0 0
        %1728 = vmatprep.mubr.bf16.mxu0 0
        %1729 = vmatmul.mubr.bf16.gmra.mxu0 %v1691
        %v1730 = vpop.f32.mrf.mxu0
        %v1731 = vadd.f32 %v1422, %v1730
        %v1732 = vpop.f32.mrf.mxu0
        %v1733 = vpop.f32.mrf.mxu0
        %v1734 = vpop.f32.mrf.mxu0
        %1735 = vdwg.mxu0
        %v1736 = vsel %vm1518, %v1681, -inf
        %1737 = vmax.xlane.f32.xlu0 %v1736
        %v1738 = vpop.xlane.xlu0 %1737
        %v1739 = vsel %vm1518, %v1731, -inf
        %1740 = vmax.xlane.f32.xlu0 %v1739
        %v1741 = vpop.xlane.xlu0 %1740
        %v1742 = vsub.f32 %v1681, %v1738
        %v1743 = vsub.f32 %v1731, %v1741
        %v1744 = vmul.f32 %v1742, 1.442695
        %v1745 = vpow.pop %v1744
        %v1746 = vmul.f32 %v1743, 1.442695
        %v1747 = vpow.pop %v1746
        %v1748 = vsel %vm1518, %v1745, 0.0
        %1749 = vadd.xlane.f32.xlu0 %v1748
        %v1750 = vpop.xlane.xlu0 %1749
        %v1751 = vsel %vm1518, %v1747, 0.0
        %1752 = vadd.xlane.f32.xlu0 %v1751
        %v1753 = vpop.xlane.xlu0 %1752
        %v1754 = vrcp.pop %v1750
        %v1755 = vrcp.pop %v1753
        %v1756 = vmul.f32 %v1745, %v1754
        %v1757 = vmul.f32 %v1747, %v1755
        %v1758 = vpack.c.bf16 %v1756, %v1756
        %v1759 = vpack.c.bf16 %v1757, %v1757
        %1760 = vrot.lane.b32.xlu0 %v1411, 96
        %v1761 = vpop.permute.xlu0 %1760
        %v1763 = vsel %vm1518, %v1758, 0
        %v1766 = vsel %vm1546, %v1761, 0
        %1768 = vmatprep.subr.bf16.mxu0 0
        %1769 = vmatpush1.bf16.msra.mxu0 0
        %1770 = vmatprep.subr.bf16.mxu0 0
        %1771 = vmatpush1.bf16.msra.mxu0 0
        %1772 = vmatprep.subr.bf16.mxu0 0
        %1773 = vmatpush1.bf16.msra.mxu0 0
        %1774 = vmatprep.subr.bf16.mxu0 0
        %1775 = vmatpush1.bf16.msra.mxu0 0
        %1776 = vmatprep.subr.bf16.mxu0 0
        %1777 = vmatpush1.bf16.msra.mxu0 0
        %1778 = vmatprep.subr.bf16.mxu0 0
        %1779 = vmatpush1.bf16.msra.mxu0 0
        %1780 = vmatprep.subr.bf16.mxu0 0
        %1781 = vmatpush1.bf16.msra.mxu0 0
        %1782 = vmatprep.subr.bf16.mxu0 0
        %1783 = vmatpush1.bf16.msra.mxu0 %v1766
        %1784 = vmatprep.subr.bf16.mxu0 0
        %1785 = vmatpush2.bf16.msra.mxu0 0
        %1786 = vmatprep.subr.bf16.mxu0 0
        %1787 = vmatpush2.bf16.msra.mxu0 0
        %1788 = vmatprep.subr.bf16.mxu0 0
        %1789 = vmatpush2.bf16.msra.mxu0 0
        %1790 = vmatprep.subr.bf16.mxu0 0
        %1791 = vmatpush2.bf16.msra.mxu0 0
        %1792 = vmatprep.subr.bf16.mxu0 0
        %1793 = vmatpush2.bf16.msra.mxu0 0
        %1794 = vmatprep.subr.bf16.mxu0 0
        %1795 = vmatpush2.bf16.msra.mxu0 0
        %1796 = vmatprep.subr.bf16.mxu0 0
        %1797 = vmatpush2.bf16.msra.mxu0 0
        %1798 = vmatprep.subr.bf16.mxu0 0
        %1799 = vmatpush2.bf16.msra.mxu0 0
        %1800 = vmatprep.mubr.bf16.mxu0 0
        %1801 = vmatmul.mubr.bf16.gmra.mxu0 %v1763
        %v1802 = vpop.f32.mrf.mxu0
        %v1803 = vadd.f32 0.0, %v1802
        %v1804 = vpop.f32.mrf.mxu0
        %v1805 = vpop.f32.mrf.mxu0
        %v1806 = vpop.f32.mrf.mxu0
        %1807 = vdwg.mxu0
        %1808 = vrot.lane.b32.xlu0 %v1412, 96
        %v1809 = vpop.permute.xlu0 %1808
        %v1811 = vsel %vm1518, %v1759, 0
        %v1814 = vsel %vm1546, %v1809, 0
        %1816 = vmatprep.subr.bf16.mxu0 0
        %1817 = vmatpush1.bf16.msra.mxu0 0
        %1818 = vmatprep.subr.bf16.mxu0 0
        %1819 = vmatpush1.bf16.msra.mxu0 0
        %1820 = vmatprep.subr.bf16.mxu0 0
        %1821 = vmatpush1.bf16.msra.mxu0 0
        %1822 = vmatprep.subr.bf16.mxu0 0
        %1823 = vmatpush1.bf16.msra.mxu0 0
        %1824 = vmatprep.subr.bf16.mxu0 0
        %1825 = vmatpush1.bf16.msra.mxu0 0
        %1826 = vmatprep.subr.bf16.mxu0 0
        %1827 = vmatpush1.bf16.msra.mxu0 0
        %1828 = vmatprep.subr.bf16.mxu0 0
        %1829 = vmatpush1.bf16.msra.mxu0 0
        %1830 = vmatprep.subr.bf16.mxu0 0
        %1831 = vmatpush1.bf16.msra.mxu0 %v1814
        %1832 = vmatprep.subr.bf16.mxu0 0
        %1833 = vmatpush2.bf16.msra.mxu0 0
        %1834 = vmatprep.subr.bf16.mxu0 0
        %1835 = vmatpush2.bf16.msra.mxu0 0
        %1836 = vmatprep.subr.bf16.mxu0 0
        %1837 = vmatpush2.bf16.msra.mxu0 0
        %1838 = vmatprep.subr.bf16.mxu0 0
        %1839 = vmatpush2.bf16.msra.mxu0 0
        %1840 = vmatprep.subr.bf16.mxu0 0
        %1841 = vmatpush2.bf16.msra.mxu0 0
        %1842 = vmatprep.subr.bf16.mxu0 0
        %1843 = vmatpush2.bf16.msra.mxu0 0
        %1844 = vmatprep.subr.bf16.mxu0 0
        %1845 = vmatpush2.bf16.msra.mxu0 0
        %1846 = vmatprep.subr.bf16.mxu0 0
        %1847 = vmatpush2.bf16.msra.mxu0 0
        %1848 = vmatprep.mubr.bf16.mxu0 0
        %1849 = vmatmul.mubr.bf16.gmra.mxu0 %v1811
        %v1850 = vpop.f32.mrf.mxu0
        %v1851 = vadd.f32 0.0, %v1850
        %v1852 = vpop.f32.mrf.mxu0
        %v1853 = vpop.f32.mrf.mxu0
        %v1854 = vpop.f32.mrf.mxu0
        %1855 = vdwg.mxu0
        %1856 = vrot.lane.b32.xlu0 %v1401, 64
        %v1857 = vpop.permute.xlu0 %1856
        %1858 = vrot.lane.b32.xlu0 %v1406, 64
        %v1859 = vpop.permute.xlu0 %1858
        %v1861 = vsel %vm1425, %v1857, 0
        %v1864 = vsel %vm1425, %v1859, 0
        %1866 = vmatprep.subr.bf16.mxu0 0
        %1867 = vmatpush1.bf16.xpose.msra.mxu0 0
        %1868 = vmatprep.subr.bf16.mxu0 0
        %1869 = vmatpush1.bf16.xpose.msra.mxu0 0
        %1870 = vmatprep.subr.bf16.mxu0 0
        %1871 = vmatpush1.bf16.xpose.msra.mxu0 0
        %1872 = vmatprep.subr.bf16.mxu0 0
        %1873 = vmatpush1.bf16.xpose.msra.mxu0 0
        %1874 = vmatprep.subr.bf16.mxu0 0
        %1875 = vmatpush1.bf16.xpose.msra.mxu0 0
        %1876 = vmatprep.subr.bf16.mxu0 0
        %1877 = vmatpush1.bf16.xpose.msra.mxu0 0
        %1878 = vmatprep.subr.bf16.mxu0 0
        %1879 = vmatpush1.bf16.xpose.msra.mxu0 0
        %1880 = vmatprep.subr.bf16.mxu0 0
        %1881 = vmatpush1.bf16.xpose.msra.mxu0 %v1864
        %1882 = vmatprep.subr.bf16.mxu0 0
        %1883 = vmatpush2.bf16.xpose.msra.mxu0 0
        %1884 = vmatprep.subr.bf16.mxu0 0
        %1885 = vmatpush2.bf16.xpose.msra.mxu0 0
        %1886 = vmatprep.subr.bf16.mxu0 0
        %1887 = vmatpush2.bf16.xpose.msra.mxu0 0
        %1888 = vmatprep.subr.bf16.mxu0 0
        %1889 = vmatpush2.bf16.xpose.msra.mxu0 0
        %1890 = vmatprep.subr.bf16.mxu0 0
        %1891 = vmatpush2.bf16.xpose.msra.mxu0 0
        %1892 = vmatprep.subr.bf16.mxu0 0
        %1893 = vmatpush2.bf16.xpose.msra.mxu0 0
        %1894 = vmatprep.subr.bf16.mxu0 0
        %1895 = vmatpush2.bf16.xpose.msra.mxu0 0
        %1896 = vmatprep.subr.bf16.mxu0 0
        %1897 = vmatpush2.bf16.xpose.msra.mxu0 0
        %1898 = vmatprep.mubr.bf16.mxu0 0
        %1899 = vmatmul.mubr.bf16.gmra.mxu0 %v1861
        %v1900 = vpop.f32.mrf.mxu0
        %v1901 = vadd.f32 %v1418, %v1900
        %v1902 = vpop.f32.mrf.mxu0
        %v1903 = vpop.f32.mrf.mxu0
        %v1904 = vpop.f32.mrf.mxu0
        %1905 = vdwg.mxu0
        %1906 = vrot.lane.b32.xlu0 %v1402, 64
        %v1907 = vpop.permute.xlu0 %1906
        %1908 = vrot.lane.b32.xlu0 %v1407, 64
        %v1909 = vpop.permute.xlu0 %1908
        %v1911 = vsel %vm1425, %v1907, 0
        %v1914 = vsel %vm1425, %v1909, 0
        %1916 = vmatprep.subr.bf16.mxu0 0
        %1917 = vmatpush1.bf16.xpose.msra.mxu0 0
        %1918 = vmatprep.subr.bf16.mxu0 0
        %1919 = vmatpush1.bf16.xpose.msra.mxu0 0
        %1920 = vmatprep.subr.bf16.mxu0 0
        %1921 = vmatpush1.bf16.xpose.msra.mxu0 0
        %1922 = vmatprep.subr.bf16.mxu0 0
        %1923 = vmatpush1.bf16.xpose.msra.mxu0 0
        %1924 = vmatprep.subr.bf16.mxu0 0
        %1925 = vmatpush1.bf16.xpose.msra.mxu0 0
        %1926 = vmatprep.subr.bf16.mxu0 0
        %1927 = vmatpush1.bf16.xpose.msra.mxu0 0
        %1928 = vmatprep.subr.bf16.mxu0 0
        %1929 = vmatpush1.bf16.xpose.msra.mxu0 0
        %1930 = vmatprep.subr.bf16.mxu0 0
        %1931 = vmatpush1.bf16.xpose.msra.mxu0 %v1914
        %1932 = vmatprep.subr.bf16.mxu0 0
        %1933 = vmatpush2.bf16.xpose.msra.mxu0 0
        %1934 = vmatprep.subr.bf16.mxu0 0
        %1935 = vmatpush2.bf16.xpose.msra.mxu0 0
        %1936 = vmatprep.subr.bf16.mxu0 0
        %1937 = vmatpush2.bf16.xpose.msra.mxu0 0
        %1938 = vmatprep.subr.bf16.mxu0 0
        %1939 = vmatpush2.bf16.xpose.msra.mxu0 0
        %1940 = vmatprep.subr.bf16.mxu0 0
        %1941 = vmatpush2.bf16.xpose.msra.mxu0 0
        %1942 = vmatprep.subr.bf16.mxu0 0
        %1943 = vmatpush2.bf16.xpose.msra.mxu0 0
        %1944 = vmatprep.subr.bf16.mxu0 0
        %1945 = vmatpush2.bf16.xpose.msra.mxu0 0
        %1946 = vmatprep.subr.bf16.mxu0 0
        %1947 = vmatpush2.bf16.xpose.msra.mxu0 0
        %1948 = vmatprep.mubr.bf16.mxu0 0
        %1949 = vmatmul.mubr.bf16.gmra.mxu0 %v1911
        %v1950 = vpop.f32.mrf.mxu0
        %v1951 = vadd.f32 %v1422, %v1950
        %v1952 = vpop.f32.mrf.mxu0
        %v1953 = vpop.f32.mrf.mxu0
        %v1954 = vpop.f32.mrf.mxu0
        %1955 = vdwg.mxu0
        %v1956 = vsel %vm1518, %v1901, -inf
        %1957 = vmax.xlane.f32.xlu0 %v1956
        %v1958 = vpop.xlane.xlu0 %1957
        %v1959 = vsel %vm1518, %v1951, -inf
        %1960 = vmax.xlane.f32.xlu0 %v1959
        %v1961 = vpop.xlane.xlu0 %1960
        %v1962 = vsub.f32 %v1901, %v1958
        %v1963 = vsub.f32 %v1951, %v1961
        %v1964 = vmul.f32 %v1962, 1.442695
        %v1965 = vpow.pop %v1964
        %v1966 = vmul.f32 %v1963, 1.442695
        %v1967 = vpow.pop %v1966
        %v1968 = vsel %vm1518, %v1965, 0.0
        %1969 = vadd.xlane.f32.xlu0 %v1968
        %v1970 = vpop.xlane.xlu0 %1969
        %v1971 = vsel %vm1518, %v1967, 0.0
        %1972 = vadd.xlane.f32.xlu0 %v1971
        %v1973 = vpop.xlane.xlu0 %1972
        %v1974 = vrcp.pop %v1970
        %v1975 = vrcp.pop %v1973
        %v1976 = vmul.f32 %v1965, %v1974
        %v1977 = vmul.f32 %v1967, %v1975
        %v1978 = vpack.c.bf16 %v1976, %v1976
        %v1979 = vpack.c.bf16 %v1977, %v1977
        %1980 = vrot.lane.b32.xlu0 %v1411, 64
        %v1981 = vpop.permute.xlu0 %1980
        %v1983 = vsel %vm1518, %v1978, 0
        %v1986 = vsel %vm1546, %v1981, 0
        %1988 = vmatprep.subr.bf16.mxu0 0
        %1989 = vmatpush1.bf16.msra.mxu0 0
        %1990 = vmatprep.subr.bf16.mxu0 0
        %1991 = vmatpush1.bf16.msra.mxu0 0
        %1992 = vmatprep.subr.bf16.mxu0 0
        %1993 = vmatpush1.bf16.msra.mxu0 0
        %1994 = vmatprep.subr.bf16.mxu0 0
        %1995 = vmatpush1.bf16.msra.mxu0 0
        %1996 = vmatprep.subr.bf16.mxu0 0
        %1997 = vmatpush1.bf16.msra.mxu0 0
        %1998 = vmatprep.subr.bf16.mxu0 0
        %1999 = vmatpush1.bf16.msra.mxu0 0
        %2000 = vmatprep.subr.bf16.mxu0 0
        %2001 = vmatpush1.bf16.msra.mxu0 0
        %2002 = vmatprep.subr.bf16.mxu0 0
        %2003 = vmatpush1.bf16.msra.mxu0 %v1986
        %2004 = vmatprep.subr.bf16.mxu0 0
        %2005 = vmatpush2.bf16.msra.mxu0 0
        %2006 = vmatprep.subr.bf16.mxu0 0
        %2007 = vmatpush2.bf16.msra.mxu0 0
        %2008 = vmatprep.subr.bf16.mxu0 0
        %2009 = vmatpush2.bf16.msra.mxu0 0
        %2010 = vmatprep.subr.bf16.mxu0 0
        %2011 = vmatpush2.bf16.msra.mxu0 0
        %2012 = vmatprep.subr.bf16.mxu0 0
        %2013 = vmatpush2.bf16.msra.mxu0 0
        %2014 = vmatprep.subr.bf16.mxu0 0
        %2015 = vmatpush2.bf16.msra.mxu0 0
        %2016 = vmatprep.subr.bf16.mxu0 0
        %2017 = vmatpush2.bf16.msra.mxu0 0
        %2018 = vmatprep.subr.bf16.mxu0 0
        %2019 = vmatpush2.bf16.msra.mxu0 0
        %2020 = vmatprep.mubr.bf16.mxu0 0
        %2021 = vmatmul.mubr.bf16.gmra.mxu0 %v1983
        %v2022 = vpop.f32.mrf.mxu0
        %v2023 = vadd.f32 0.0, %v2022
        %v2024 = vpop.f32.mrf.mxu0
        %v2025 = vpop.f32.mrf.mxu0
        %v2026 = vpop.f32.mrf.mxu0
        %2027 = vdwg.mxu0
        %2028 = vrot.lane.b32.xlu0 %v1412, 64
        %v2029 = vpop.permute.xlu0 %2028
        %v2031 = vsel %vm1518, %v1979, 0
        %v2034 = vsel %vm1546, %v2029, 0
        %2036 = vmatprep.subr.bf16.mxu0 0
        %2037 = vmatpush1.bf16.msra.mxu0 0
        %2038 = vmatprep.subr.bf16.mxu0 0
        %2039 = vmatpush1.bf16.msra.mxu0 0
        %2040 = vmatprep.subr.bf16.mxu0 0
        %2041 = vmatpush1.bf16.msra.mxu0 0
        %2042 = vmatprep.subr.bf16.mxu0 0
        %2043 = vmatpush1.bf16.msra.mxu0 0
        %2044 = vmatprep.subr.bf16.mxu0 0
        %2045 = vmatpush1.bf16.msra.mxu0 0
        %2046 = vmatprep.subr.bf16.mxu0 0
        %2047 = vmatpush1.bf16.msra.mxu0 0
        %2048 = vmatprep.subr.bf16.mxu0 0
        %2049 = vmatpush1.bf16.msra.mxu0 0
        %2050 = vmatprep.subr.bf16.mxu0 0
        %2051 = vmatpush1.bf16.msra.mxu0 %v2034
        %2052 = vmatprep.subr.bf16.mxu0 0
        %2053 = vmatpush2.bf16.msra.mxu0 0
        %2054 = vmatprep.subr.bf16.mxu0 0
        %2055 = vmatpush2.bf16.msra.mxu0 0
        %2056 = vmatprep.subr.bf16.mxu0 0
        %2057 = vmatpush2.bf16.msra.mxu0 0
        %2058 = vmatprep.subr.bf16.mxu0 0
        %2059 = vmatpush2.bf16.msra.mxu0 0
        %2060 = vmatprep.subr.bf16.mxu0 0
        %2061 = vmatpush2.bf16.msra.mxu0 0
        %2062 = vmatprep.subr.bf16.mxu0 0
        %2063 = vmatpush2.bf16.msra.mxu0 0
        %2064 = vmatprep.subr.bf16.mxu0 0
        %2065 = vmatpush2.bf16.msra.mxu0 0
        %2066 = vmatprep.subr.bf16.mxu0 0
        %2067 = vmatpush2.bf16.msra.mxu0 0
        %2068 = vmatprep.mubr.bf16.mxu0 0
        %2069 = vmatmul.mubr.bf16.gmra.mxu0 %v2031
        %v2070 = vpop.f32.mrf.mxu0
        %v2071 = vadd.f32 0.0, %v2070
        %v2072 = vpop.f32.mrf.mxu0
        %v2073 = vpop.f32.mrf.mxu0
        %v2074 = vpop.f32.mrf.mxu0
        %2075 = vdwg.mxu0
        %2076 = vrot.lane.b32.xlu0 %v1401, 32
        %v2077 = vpop.permute.xlu0 %2076
        %2078 = vrot.lane.b32.xlu0 %v1406, 32
        %v2079 = vpop.permute.xlu0 %2078
        %v2081 = vsel %vm1425, %v2077, 0
        %v2084 = vsel %vm1425, %v2079, 0
        %2086 = vmatprep.subr.bf16.mxu0 0
        %2087 = vmatpush1.bf16.xpose.msra.mxu0 0
        %2088 = vmatprep.subr.bf16.mxu0 0
        %2089 = vmatpush1.bf16.xpose.msra.mxu0 0
        %2090 = vmatprep.subr.bf16.mxu0 0
        %2091 = vmatpush1.bf16.xpose.msra.mxu0 0
        %2092 = vmatprep.subr.bf16.mxu0 0
        %2093 = vmatpush1.bf16.xpose.msra.mxu0 0
        %2094 = vmatprep.subr.bf16.mxu0 0
        %2095 = vmatpush1.bf16.xpose.msra.mxu0 0
        %2096 = vmatprep.subr.bf16.mxu0 0
        %2097 = vmatpush1.bf16.xpose.msra.mxu0 0
        %2098 = vmatprep.subr.bf16.mxu0 0
        %2099 = vmatpush1.bf16.xpose.msra.mxu0 0
        %2100 = vmatprep.subr.bf16.mxu0 0
        %2101 = vmatpush1.bf16.xpose.msra.mxu0 %v2084
        %2102 = vmatprep.subr.bf16.mxu0 0
        %2103 = vmatpush2.bf16.xpose.msra.mxu0 0
        %2104 = vmatprep.subr.bf16.mxu0 0
        %2105 = vmatpush2.bf16.xpose.msra.mxu0 0
        %2106 = vmatprep.subr.bf16.mxu0 0
        %2107 = vmatpush2.bf16.xpose.msra.mxu0 0
        %2108 = vmatprep.subr.bf16.mxu0 0
        %2109 = vmatpush2.bf16.xpose.msra.mxu0 0
        %2110 = vmatprep.subr.bf16.mxu0 0
        %2111 = vmatpush2.bf16.xpose.msra.mxu0 0
        %2112 = vmatprep.subr.bf16.mxu0 0
        %2113 = vmatpush2.bf16.xpose.msra.mxu0 0
        %2114 = vmatprep.subr.bf16.mxu0 0
        %2115 = vmatpush2.bf16.xpose.msra.mxu0 0
        %2116 = vmatprep.subr.bf16.mxu0 0
        %2117 = vmatpush2.bf16.xpose.msra.mxu0 0
        %2118 = vmatprep.mubr.bf16.mxu0 0
        %2119 = vmatmul.mubr.bf16.gmra.mxu0 %v2081
        %v2120 = vpop.f32.mrf.mxu0
        %v2121 = vadd.f32 %v1418, %v2120
        %v2122 = vpop.f32.mrf.mxu0
        %v2123 = vpop.f32.mrf.mxu0
        %v2124 = vpop.f32.mrf.mxu0
        %2125 = vdwg.mxu0
        %2126 = vrot.lane.b32.xlu0 %v1402, 32
        %v2127 = vpop.permute.xlu0 %2126
        %2128 = vrot.lane.b32.xlu0 %v1407, 32
        %v2129 = vpop.permute.xlu0 %2128
        %v2131 = vsel %vm1425, %v2127, 0
        %v2134 = vsel %vm1425, %v2129, 0
        %2136 = vmatprep.subr.bf16.mxu0 0
        %2137 = vmatpush1.bf16.xpose.msra.mxu0 0
        %2138 = vmatprep.subr.bf16.mxu0 0
        %2139 = vmatpush1.bf16.xpose.msra.mxu0 0
        %2140 = vmatprep.subr.bf16.mxu0 0
        %2141 = vmatpush1.bf16.xpose.msra.mxu0 0
        %2142 = vmatprep.subr.bf16.mxu0 0
        %2143 = vmatpush1.bf16.xpose.msra.mxu0 0
        %2144 = vmatprep.subr.bf16.mxu0 0
        %2145 = vmatpush1.bf16.xpose.msra.mxu0 0
        %2146 = vmatprep.subr.bf16.mxu0 0
        %2147 = vmatpush1.bf16.xpose.msra.mxu0 0
        %2148 = vmatprep.subr.bf16.mxu0 0
        %2149 = vmatpush1.bf16.xpose.msra.mxu0 0
        %2150 = vmatprep.subr.bf16.mxu0 0
        %2151 = vmatpush1.bf16.xpose.msra.mxu0 %v2134
        %2152 = vmatprep.subr.bf16.mxu0 0
        %2153 = vmatpush2.bf16.xpose.msra.mxu0 0
        %2154 = vmatprep.subr.bf16.mxu0 0
        %2155 = vmatpush2.bf16.xpose.msra.mxu0 0
        %2156 = vmatprep.subr.bf16.mxu0 0
        %2157 = vmatpush2.bf16.xpose.msra.mxu0 0
        %2158 = vmatprep.subr.bf16.mxu0 0
        %2159 = vmatpush2.bf16.xpose.msra.mxu0 0
        %2160 = vmatprep.subr.bf16.mxu0 0
        %2161 = vmatpush2.bf16.xpose.msra.mxu0 0
        %2162 = vmatprep.subr.bf16.mxu0 0
        %2163 = vmatpush2.bf16.xpose.msra.mxu0 0
        %2164 = vmatprep.subr.bf16.mxu0 0
        %2165 = vmatpush2.bf16.xpose.msra.mxu0 0
        %2166 = vmatprep.subr.bf16.mxu0 0
        %2167 = vmatpush2.bf16.xpose.msra.mxu0 0
        %2168 = vmatprep.mubr.bf16.mxu0 0
        %2169 = vmatmul.mubr.bf16.gmra.mxu0 %v2131
        %v2170 = vpop.f32.mrf.mxu0
        %v2171 = vadd.f32 %v1422, %v2170
        %v2172 = vpop.f32.mrf.mxu0
        %v2173 = vpop.f32.mrf.mxu0
        %v2174 = vpop.f32.mrf.mxu0
        %2175 = vdwg.mxu0
        %v2176 = vsel %vm1518, %v2121, -inf
        %2177 = vmax.xlane.f32.xlu0 %v2176
        %v2178 = vpop.xlane.xlu0 %2177
        %v2179 = vsel %vm1518, %v2171, -inf
        %2180 = vmax.xlane.f32.xlu0 %v2179
        %v2181 = vpop.xlane.xlu0 %2180
        %v2182 = vsub.f32 %v2121, %v2178
        %v2183 = vsub.f32 %v2171, %v2181
        %v2184 = vmul.f32 %v2182, 1.442695
        %v2185 = vpow.pop %v2184
        %v2186 = vmul.f32 %v2183, 1.442695
        %v2187 = vpow.pop %v2186
        %v2188 = vsel %vm1518, %v2185, 0.0
        %2189 = vadd.xlane.f32.xlu0 %v2188
        %v2190 = vpop.xlane.xlu0 %2189
        %v2191 = vsel %vm1518, %v2187, 0.0
        %2192 = vadd.xlane.f32.xlu0 %v2191
        %v2193 = vpop.xlane.xlu0 %2192
        %v2194 = vrcp.pop %v2190
        %v2195 = vrcp.pop %v2193
        %v2196 = vmul.f32 %v2185, %v2194
        %v2197 = vmul.f32 %v2187, %v2195
        %v2198 = vpack.c.bf16 %v2196, %v2196
        %v2199 = vpack.c.bf16 %v2197, %v2197
        %2200 = vrot.lane.b32.xlu0 %v1411, 32
        %v2201 = vpop.permute.xlu0 %2200
        %v2203 = vsel %vm1518, %v2198, 0
        %v2206 = vsel %vm1546, %v2201, 0
        %2208 = vmatprep.subr.bf16.mxu0 0
        %2209 = vmatpush1.bf16.msra.mxu0 0
        %2210 = vmatprep.subr.bf16.mxu0 0
        %2211 = vmatpush1.bf16.msra.mxu0 0
        %2212 = vmatprep.subr.bf16.mxu0 0
        %2213 = vmatpush1.bf16.msra.mxu0 0
        %2214 = vmatprep.subr.bf16.mxu0 0
        %2215 = vmatpush1.bf16.msra.mxu0 0
        %2216 = vmatprep.subr.bf16.mxu0 0
        %2217 = vmatpush1.bf16.msra.mxu0 0
        %2218 = vmatprep.subr.bf16.mxu0 0
        %2219 = vmatpush1.bf16.msra.mxu0 0
        %2220 = vmatprep.subr.bf16.mxu0 0
        %2221 = vmatpush1.bf16.msra.mxu0 0
        %2222 = vmatprep.subr.bf16.mxu0 0
        %2223 = vmatpush1.bf16.msra.mxu0 %v2206
        %2224 = vmatprep.subr.bf16.mxu0 0
        %2225 = vmatpush2.bf16.msra.mxu0 0
        %2226 = vmatprep.subr.bf16.mxu0 0
        %2227 = vmatpush2.bf16.msra.mxu0 0
        %2228 = vmatprep.subr.bf16.mxu0 0
        %2229 = vmatpush2.bf16.msra.mxu0 0
        %2230 = vmatprep.subr.bf16.mxu0 0
        %2231 = vmatpush2.bf16.msra.mxu0 0
        %2232 = vmatprep.subr.bf16.mxu0 0
        %2233 = vmatpush2.bf16.msra.mxu0 0
        %2234 = vmatprep.subr.bf16.mxu0 0
        %2235 = vmatpush2.bf16.msra.mxu0 0
        %2236 = vmatprep.subr.bf16.mxu0 0
        %2237 = vmatpush2.bf16.msra.mxu0 0
        %2238 = vmatprep.subr.bf16.mxu0 0
        %2239 = vmatpush2.bf16.msra.mxu0 0
        %2240 = vmatprep.mubr.bf16.mxu0 0
        %2241 = vmatmul.mubr.bf16.gmra.mxu0 %v2203
        %v2242 = vpop.f32.mrf.mxu0
        %v2243 = vadd.f32 0.0, %v2242
        %v2244 = vpop.f32.mrf.mxu0
        %v2245 = vpop.f32.mrf.mxu0
        %v2246 = vpop.f32.mrf.mxu0
        %2247 = vdwg.mxu0
        %2248 = vrot.lane.b32.xlu0 %v1412, 32
        %v2249 = vpop.permute.xlu0 %2248
        %v2251 = vsel %vm1518, %v2199, 0
        %v2254 = vsel %vm1546, %v2249, 0
        %2256 = vmatprep.subr.bf16.mxu0 0
        %2257 = vmatpush1.bf16.msra.mxu0 0
        %2258 = vmatprep.subr.bf16.mxu0 0
        %2259 = vmatpush1.bf16.msra.mxu0 0
        %2260 = vmatprep.subr.bf16.mxu0 0
        %2261 = vmatpush1.bf16.msra.mxu0 0
        %2262 = vmatprep.subr.bf16.mxu0 0
        %2263 = vmatpush1.bf16.msra.mxu0 0
        %2264 = vmatprep.subr.bf16.mxu0 0
        %2265 = vmatpush1.bf16.msra.mxu0 0
        %2266 = vmatprep.subr.bf16.mxu0 0
        %2267 = vmatpush1.bf16.msra.mxu0 0
        %2268 = vmatprep.subr.bf16.mxu0 0
        %2269 = vmatpush1.bf16.msra.mxu0 0
        %2270 = vmatprep.subr.bf16.mxu0 0
        %2271 = vmatpush1.bf16.msra.mxu0 %v2254
        %2272 = vmatprep.subr.bf16.mxu0 0
        %2273 = vmatpush2.bf16.msra.mxu0 0
        %2274 = vmatprep.subr.bf16.mxu0 0
        %2275 = vmatpush2.bf16.msra.mxu0 0
        %2276 = vmatprep.subr.bf16.mxu0 0
        %2277 = vmatpush2.bf16.msra.mxu0 0
        %2278 = vmatprep.subr.bf16.mxu0 0
        %2279 = vmatpush2.bf16.msra.mxu0 0
        %2280 = vmatprep.subr.bf16.mxu0 0
        %2281 = vmatpush2.bf16.msra.mxu0 0
        %2282 = vmatprep.subr.bf16.mxu0 0
        %2283 = vmatpush2.bf16.msra.mxu0 0
        %2284 = vmatprep.subr.bf16.mxu0 0
        %2285 = vmatpush2.bf16.msra.mxu0 0
        %2286 = vmatprep.subr.bf16.mxu0 0
        %2287 = vmatpush2.bf16.msra.mxu0 0
        %2288 = vmatprep.mubr.bf16.mxu0 0
        %2289 = vmatmul.mubr.bf16.gmra.mxu0 %v2251
        %v2290 = vpop.f32.mrf.mxu0
        %v2291 = vadd.f32 0.0, %v2290
        %v2292 = vpop.f32.mrf.mxu0
        %v2293 = vpop.f32.mrf.mxu0
        %v2294 = vpop.f32.mrf.mxu0
        %2295 = vdwg.mxu0
        %2298 = vrot.lane.b32.xlu0 %v1803, 32
        %v2299 = vpop.permute.xlu0 %2298
        %2300 = vrot.lane.b32.xlu0 %v1851, 32
        %v2301 = vpop.permute.xlu0 %2300
        %2306 = vrot.lane.b32.xlu0 %v2023, 64
        %v2307 = vpop.permute.xlu0 %2306
        %2308 = vrot.lane.b32.xlu0 %v2071, 64
        %v2309 = vpop.permute.xlu0 %2308
        %2314 = vrot.lane.b32.xlu0 %v2243, 96
        %v2315 = vpop.permute.xlu0 %2314
        %2316 = vrot.lane.b32.xlu0 %v2291, 96
        %v2317 = vpop.permute.xlu0 %2316
        %v2320 = vsel %vm1425, %v1585, %v2299
        %v2321 = vsel %vm1425, %v1631, %v2301
        %vm2322 = vcmask 523264
        %v2323 = vsel %vm2322, %v2320, %v2307
        %v2324 = vsel %vm2322, %v2321, %v2309
        %vm2325 = vcmask 785408
        %v2326 = vsel %vm2325, %v2323, %v2315
        %v2327 = vsel %vm2325, %v2324, %v2317
        %v2328 = vpack.c.bf16 %v2327, %v2326
        %v2329 = vld [vmem:[%s871] sm:$0xf]
        %v2330 = vld [vmem:[%s871 + $0x4] sm:$0xf]
        %v2331 = vld [vmem:[%s871 + $0x8] sm:$0xf]
        %v2332 = vld [vmem:[%s871 + $0xc] sm:$0xf]
        %v2333 = vld [vmem:[%s871 + $0x10] sm:$0xf]
        %v2334 = vld [vmem:[%s871 + $0x14] sm:$0xf]
        %v2335 = vld [vmem:[%s871 + $0x18] sm:$0xf]
        %v2336 = vld [vmem:[%s871 + $0x1c] sm:$0xf]
        %v2337 = vld [vmem:[%s871 + $0x20] sm:$0xf]
        %v2338 = vld [vmem:[%s871 + $0x24] sm:$0xf]
        %v2339 = vld [vmem:[%s871 + $0x28] sm:$0xf]
        %v2340 = vld [vmem:[%s871 + $0x2c] sm:$0xf]
        %v2341 = vld [vmem:[%s871 + $0x30] sm:$0xf]
        %v2342 = vld [vmem:[%s871 + $0x34] sm:$0xf]
        %v2343 = vld [vmem:[%s871 + $0x38] sm:$0xf]
        %v2344 = vld [vmem:[%s871 + $0x3c] sm:$0xf]
        %v2345 = vld [vmem:[%s1011] sm:$0x1]
        %v2347 = vlaneseq
        %v2348 = vshrl.u32 %v2347, 7
        %v2349 = vsub.s32 0, %v2348
        %v2350 = vrot.slane %v2345, %v2349
        %v2368 = vunpack.c.l.b16 %v2329
        %v2369 = vunpack.c.l.b16 %v2330
        %v2370 = vunpack.c.l.b16 %v2331
        %v2371 = vunpack.c.l.b16 %v2332
        %v2372 = vunpack.c.l.b16 %v2333
        %v2373 = vunpack.c.l.b16 %v2334
        %v2374 = vunpack.c.l.b16 %v2335
        %v2375 = vunpack.c.l.b16 %v2336
        %v2376 = vunpack.c.l.b16 %v2337
        %v2377 = vunpack.c.l.b16 %v2338
        %v2378 = vunpack.c.l.b16 %v2339
        %v2379 = vunpack.c.l.b16 %v2340
        %v2380 = vunpack.c.l.b16 %v2341
        %v2381 = vunpack.c.l.b16 %v2342
        %v2382 = vunpack.c.l.b16 %v2343
        %v2383 = vunpack.c.l.b16 %v2344
        %v2384 = vpack.c.b16 %v2369, %v2368
        %v2385 = vpack.c.b16 %v2371, %v2370
        %v2386 = vpack.c.b16 %v2373, %v2372
        %v2387 = vpack.c.b16 %v2375, %v2374
        %v2388 = vpack.c.b16 %v2377, %v2376
        %v2389 = vpack.c.b16 %v2379, %v2378
        %v2390 = vpack.c.b16 %v2381, %v2380
        %v2391 = vpack.c.b16 %v2383, %v2382
        %2400 = vmatprep.subr.bf16.mxu0 0
        %2401 = vmatpush1.bf16.msra.mxu0 %v2391
        %2402 = vmatprep.subr.bf16.mxu0 0
        %2403 = vmatpush1.bf16.msra.mxu0 %v2390
        %2404 = vmatprep.subr.bf16.mxu0 0
        %2405 = vmatpush1.bf16.msra.mxu0 %v2389
        %2406 = vmatprep.subr.bf16.mxu0 0
        %2407 = vmatpush1.bf16.msra.mxu0 %v2388
        %2408 = vmatprep.subr.bf16.mxu0 0
        %2409 = vmatpush1.bf16.msra.mxu0 %v2387
        %2410 = vmatprep.subr.bf16.mxu0 0
        %2411 = vmatpush1.bf16.msra.mxu0 %v2386
        %2412 = vmatprep.subr.bf16.mxu0 0
        %2413 = vmatpush1.bf16.msra.mxu0 %v2385
        %2414 = vmatprep.subr.bf16.mxu0 0
        %2415 = vmatpush1.bf16.msra.mxu0 %v2384
        %2416 = vmatprep.subr.bf16.mxu0 0
        %2417 = vmatpush2.bf16.msra.mxu0 0
        %2418 = vmatprep.subr.bf16.mxu0 0
        %2419 = vmatpush2.bf16.msra.mxu0 0
        %2420 = vmatprep.subr.bf16.mxu0 0
        %2421 = vmatpush2.bf16.msra.mxu0 0
        %2422 = vmatprep.subr.bf16.mxu0 0
        %2423 = vmatpush2.bf16.msra.mxu0 0
        %2424 = vmatprep.subr.bf16.mxu0 0
        %2425 = vmatpush2.bf16.msra.mxu0 0
        %2426 = vmatprep.subr.bf16.mxu0 0
        %2427 = vmatpush2.bf16.msra.mxu0 0
        %2428 = vmatprep.subr.bf16.mxu0 0
        %2429 = vmatpush2.bf16.msra.mxu0 0
        %2430 = vmatprep.subr.bf16.mxu0 0
        %2431 = vmatpush2.bf16.msra.mxu0 0
        %2432 = vmatprep.mubr.bf16.mxu0 0
        %2433 = vmatmul.mubr.bf16.gmra.mxu0 %v2328
        %v2434 = vpop.f32.mrf.mxu0
        %v2435 = vadd.f32 %v2350, %v2434
        %v2436 = vpop.f32.mrf.mxu0
        %v2437 = vpop.f32.mrf.mxu0
        %v2438 = vadd.f32 %v2350, %v2437
        %v2439 = vpop.f32.mrf.mxu0
        %2440 = vdwg.mxu0
        %v2441 = vadd.f32 %v1047, %v2435
        %v2442 = vadd.f32 %v1048, %v2438
        %v2443 = vld [vmem:[%s1014] sm:$0x1]
        %v2444 = vld [vmem:[%s1017] sm:$0x1]
        %2445 = vadd.xlane.f32.xlu0 %v2441
        %v2446 = vpop.xlane.xlu0 %2445
        %2447 = vadd.xlane.f32.xlu0 %v2442
        %v2448 = vpop.xlane.xlu0 %2447
        %v2449 = vrcp.pop 128.0
        %v2450 = vmul.f32 %v2446, %v2449
        %v2451 = vmul.f32 %v2448, %v2449
        %v2452 = vsub.f32 %v2441, %v2450
        %v2453 = vsub.f32 %v2442, %v2451
        %v2454 = vmul.f32 %v2452, %v2452
        %v2455 = vmul.f32 %v2453, %v2453
        %2456 = vadd.xlane.f32.xlu0 %v2454
        %v2457 = vpop.xlane.xlu0 %2456
        %2458 = vadd.xlane.f32.xlu0 %v2455
        %v2459 = vpop.xlane.xlu0 %2458
        %v2460 = vmul.f32 %v2457, %v2449
        %v2461 = vmul.f32 %v2459, %v2449
        %v2462 = vadd.f32 %v2460, 1e-05
        %v2463 = vadd.f32 %v2461, 1e-05
        %v2464 = vrsqrt.pop %v2462
        %v2465 = vrsqrt.pop %v2463
        %v2466 = vmul.f32 %v2452, %v2464
        %v2467 = vmul.f32 %v2453, %v2465
        %v2469 = vlaneseq
        %v2470 = vshrl.u32 %v2469, 7
        %v2471 = vsub.s32 0, %v2470
        %v2472 = vrot.slane %v2443, %v2471
        %v2474 = vmul.f32 %v2466, %v2472
        %v2475 = vmul.f32 %v2467, %v2472
        %v2477 = vlaneseq
        %v2478 = vshrl.u32 %v2477, 7
        %v2479 = vsub.s32 0, %v2478
        %v2480 = vrot.slane %v2444, %v2479
        %v2482 = vadd.f32 %v2474, %v2480
        %v2483 = vadd.f32 %v2475, %v2480
        %v2484 = vpack.c.bf16 %v2483, %v2482
        %v2485 = vld [vmem:[%s1022] sm:$0xff]
        %v2486 = vld [vmem:[%s1022 + $0x8] sm:$0xff]
        %v2487 = vld [vmem:[%s1022 + $0x10] sm:$0xff]
        %v2488 = vld [vmem:[%s1022 + $0x18] sm:$0xff]
        %v2489 = vld [vmem:[%s1022 + $0x20] sm:$0xff]
        %v2490 = vld [vmem:[%s1022 + $0x28] sm:$0xff]
        %v2491 = vld [vmem:[%s1022 + $0x30] sm:$0xff]
        %v2492 = vld [vmem:[%s1022 + $0x38] sm:$0xff]
        %v2493 = vld [vmem:[%s1022 + $0x40] sm:$0xff]
        %v2494 = vld [vmem:[%s1022 + $0x48] sm:$0xff]
        %v2495 = vld [vmem:[%s1022 + $0x50] sm:$0xff]
        %v2496 = vld [vmem:[%s1022 + $0x58] sm:$0xff]
        %v2497 = vld [vmem:[%s1022 + $0x60] sm:$0xff]
        %v2498 = vld [vmem:[%s1022 + $0x68] sm:$0xff]
        %v2499 = vld [vmem:[%s1022 + $0x70] sm:$0xff]
        %v2500 = vld [vmem:[%s1022 + $0x78] sm:$0xff]
        %v2501 = vld [vmem:[%s1026] sm:$0x3]
        %v2503 = vlaneseq
        %v2504 = vshrl.u32 %v2503, 7
        %v2505 = vsub.s32 0, %v2504
        %v2506 = vrot.slane %v2501, %v2505
        %v2507 = vlaneseq
        %v2508 = vshrl.u32 %v2507, 7
        %v2509 = vsub.s32 1, %v2508
        %v2510 = vrot.slane %v2501, %v2509
        %v2529 = vunpack.c.l.b16 %v2485
        %v2530 = vunpack.c.h.b16 %v2485
        %v2531 = vunpack.c.l.b16 %v2486
        %v2532 = vunpack.c.h.b16 %v2486
        %v2533 = vunpack.c.l.b16 %v2487
        %v2534 = vunpack.c.h.b16 %v2487
        %v2535 = vunpack.c.l.b16 %v2488
        %v2536 = vunpack.c.h.b16 %v2488
        %v2537 = vunpack.c.l.b16 %v2489
        %v2538 = vunpack.c.h.b16 %v2489
        %v2539 = vunpack.c.l.b16 %v2490
        %v2540 = vunpack.c.h.b16 %v2490
        %v2541 = vunpack.c.l.b16 %v2491
        %v2542 = vunpack.c.h.b16 %v2491
        %v2543 = vunpack.c.l.b16 %v2492
        %v2544 = vunpack.c.h.b16 %v2492
        %v2545 = vunpack.c.l.b16 %v2493
        %v2546 = vunpack.c.h.b16 %v2493
        %v2547 = vunpack.c.l.b16 %v2494
        %v2548 = vunpack.c.h.b16 %v2494
        %v2549 = vunpack.c.l.b16 %v2495
        %v2550 = vunpack.c.h.b16 %v2495
        %v2551 = vunpack.c.l.b16 %v2496
        %v2552 = vunpack.c.h.b16 %v2496
        %v2553 = vunpack.c.l.b16 %v2497
        %v2554 = vunpack.c.h.b16 %v2497
        %v2555 = vunpack.c.l.b16 %v2498
        %v2556 = vunpack.c.h.b16 %v2498
        %v2557 = vunpack.c.l.b16 %v2499
        %v2558 = vunpack.c.h.b16 %v2499
        %v2559 = vunpack.c.l.b16 %v2500
        %v2560 = vunpack.c.h.b16 %v2500
        %v2561 = vpack.c.b16 %v2531, %v2529
        %v2562 = vpack.c.b16 %v2532, %v2530
        %v2563 = vpack.c.b16 %v2535, %v2533
        %v2564 = vpack.c.b16 %v2536, %v2534
        %v2565 = vpack.c.b16 %v2539, %v2537
        %v2566 = vpack.c.b16 %v2540, %v2538
        %v2567 = vpack.c.b16 %v2543, %v2541
        %v2568 = vpack.c.b16 %v2544, %v2542
        %v2569 = vpack.c.b16 %v2547, %v2545
        %v2570 = vpack.c.b16 %v2548, %v2546
        %v2571 = vpack.c.b16 %v2551, %v2549
        %v2572 = vpack.c.b16 %v2552, %v2550
        %v2573 = vpack.c.b16 %v2555, %v2553
        %v2574 = vpack.c.b16 %v2556, %v2554
        %v2575 = vpack.c.b16 %v2559, %v2557
        %v2576 = vpack.c.b16 %v2560, %v2558
        %2593 = vmatprep.subr.bf16.mxu0 %v2576
        %2594 = vmatpush1.bf16.msra.mxu0 %v2575
        %2595 = vmatprep.subr.bf16.mxu0 %v2574
        %2596 = vmatpush1.bf16.msra.mxu0 %v2573
        %2597 = vmatprep.subr.bf16.mxu0 %v2572
        %2598 = vmatpush1.bf16.msra.mxu0 %v2571
        %2599 = vmatprep.subr.bf16.mxu0 %v2570
        %2600 = vmatpush1.bf16.msra.mxu0 %v2569
        %2601 = vmatprep.subr.bf16.mxu0 %v2568
        %2602 = vmatpush1.bf16.msra.mxu0 %v2567
        %2603 = vmatprep.subr.bf16.mxu0 %v2566
        %2604 = vmatpush1.bf16.msra.mxu0 %v2565
        %2605 = vmatprep.subr.bf16.mxu0 %v2564
        %2606 = vmatpush1.bf16.msra.mxu0 %v2563
        %2607 = vmatprep.subr.bf16.mxu0 %v2562
        %2608 = vmatpush1.bf16.msra.mxu0 %v2561
        %2609 = vmatprep.subr.bf16.mxu0 0
        %2610 = vmatpush2.bf16.msra.mxu0 0
        %2611 = vmatprep.subr.bf16.mxu0 0
        %2612 = vmatpush2.bf16.msra.mxu0 0
        %2613 = vmatprep.subr.bf16.mxu0 0
        %2614 = vmatpush2.bf16.msra.mxu0 0
        %2615 = vmatprep.subr.bf16.mxu0 0
        %2616 = vmatpush2.bf16.msra.mxu0 0
        %2617 = vmatprep.subr.bf16.mxu0 0
        %2618 = vmatpush2.bf16.msra.mxu0 0
        %2619 = vmatprep.subr.bf16.mxu0 0
        %2620 = vmatpush2.bf16.msra.mxu0 0
        %2621 = vmatprep.subr.bf16.mxu0 0
        %2622 = vmatpush2.bf16.msra.mxu0 0
        %2623 = vmatprep.subr.bf16.mxu0 0
        %2624 = vmatpush2.bf16.msra.mxu0 0
        %2625 = vmatprep.mubr.bf16.mxu0 0
        %2626 = vmatmul.mubr.bf16.gmra.mxu0 %v2484
        %v2627 = vpop.f32.mrf.mxu0
        %v2628 = vadd.f32 %v2506, %v2627
        %v2629 = vpop.f32.mrf.mxu0
        %v2630 = vadd.f32 %v2510, %v2629
        %v2631 = vpop.f32.mrf.mxu0
        %v2632 = vadd.f32 %v2506, %v2631
        %v2633 = vpop.f32.mrf.mxu0
        %v2634 = vadd.f32 %v2510, %v2633
        %2635 = vdwg.mxu0
        %v2636 = vmul.f32 %v2628, 0.5
        %v2637 = vmul.f32 %v2630, 0.5
        %v2638 = vmul.f32 %v2632, 0.5
        %v2639 = vmul.f32 %v2634, 0.5
        %v2640 = vmul.f32 %v2628, 0.044715
        %v2641 = vmul.f32 %v2630, 0.044715
        %v2642 = vmul.f32 %v2632, 0.044715
        %v2643 = vmul.f32 %v2634, 0.044715
        %v2644 = vmul.f32 %v2640, %v2628
        %v2645 = vmul.f32 %v2641, %v2630
        %v2646 = vmul.f32 %v2642, %v2632
        %v2647 = vmul.f32 %v2643, %v2634
        %v2648 = vmul.f32 %v2644, %v2628
        %v2649 = vmul.f32 %v2645, %v2630
        %v2650 = vmul.f32 %v2646, %v2632
        %v2651 = vmul.f32 %v2647, %v2634
        %v2652 = vadd.f32 %v2628, %v2648
        %v2653 = vadd.f32 %v2630, %v2649
        %v2654 = vadd.f32 %v2632, %v2650
        %v2655 = vadd.f32 %v2634, %v2651
        %v2656 = vmul.f32 %v2652, 0.7978846
        %v2657 = vmul.f32 %v2653, 0.7978846
        %v2658 = vmul.f32 %v2654, 0.7978846
        %v2659 = vmul.f32 %v2655, 0.7978846
        %v2660 = vtanh.pop %v2656
        %v2661 = vtanh.pop %v2657
        %v2662 = vtanh.pop %v2658
        %v2663 = vtanh.pop %v2659
        %v2664 = vadd.f32 %v2660, 1.0
        %v2665 = vadd.f32 %v2661, 1.0
        %v2666 = vadd.f32 %v2662, 1.0
        %v2667 = vadd.f32 %v2663, 1.0
        %v2668 = vmul.f32 %v2636, %v2664
        %v2669 = vmul.f32 %v2637, %v2665
        %v2670 = vmul.f32 %v2638, %v2666
        %v2671 = vmul.f32 %v2639, %v2667
        %v2672 = vpack.c.bf16 %v2670, %v2668
        %v2673 = vpack.c.bf16 %v2671, %v2669
        %v2674 = vld [vmem:[%s880] sm:$0xf]
        %v2675 = vld [vmem:[%s880 + $0x4] sm:$0xf]
        %v2676 = vld [vmem:[%s880 + $0x8] sm:$0xf]
        %v2677 = vld [vmem:[%s880 + $0xc] sm:$0xf]
        %v2678 = vld [vmem:[%s880 + $0x10] sm:$0xf]
        %v2679 = vld [vmem:[%s880 + $0x14] sm:$0xf]
        %v2680 = vld [vmem:[%s880 + $0x18] sm:$0xf]
        %v2681 = vld [vmem:[%s880 + $0x1c] sm:$0xf]
        %v2682 = vld [vmem:[%s880 + $0x20] sm:$0xf]
        %v2683 = vld [vmem:[%s880 + $0x24] sm:$0xf]
        %v2684 = vld [vmem:[%s880 + $0x28] sm:$0xf]
        %v2685 = vld [vmem:[%s880 + $0x2c] sm:$0xf]
        %v2686 = vld [vmem:[%s880 + $0x30] sm:$0xf]
        %v2687 = vld [vmem:[%s880 + $0x34] sm:$0xf]
        %v2688 = vld [vmem:[%s880 + $0x38] sm:$0xf]
        %v2689 = vld [vmem:[%s880 + $0x3c] sm:$0xf]
        %v2690 = vld [vmem:[%s880 + $0x40] sm:$0xf]
        %v2691 = vld [vmem:[%s880 + $0x44] sm:$0xf]
        %v2692 = vld [vmem:[%s880 + $0x48] sm:$0xf]
        %v2693 = vld [vmem:[%s880 + $0x4c] sm:$0xf]
        %v2694 = vld [vmem:[%s880 + $0x50] sm:$0xf]
        %v2695 = vld [vmem:[%s880 + $0x54] sm:$0xf]
        %v2696 = vld [vmem:[%s880 + $0x58] sm:$0xf]
        %v2697 = vld [vmem:[%s880 + $0x5c] sm:$0xf]
        %v2698 = vld [vmem:[%s880 + $0x60] sm:$0xf]
        %v2699 = vld [vmem:[%s880 + $0x64] sm:$0xf]
        %v2700 = vld [vmem:[%s880 + $0x68] sm:$0xf]
        %v2701 = vld [vmem:[%s880 + $0x6c] sm:$0xf]
        %v2702 = vld [vmem:[%s880 + $0x70] sm:$0xf]
        %v2703 = vld [vmem:[%s880 + $0x74] sm:$0xf]
        %v2704 = vld [vmem:[%s880 + $0x78] sm:$0xf]
        %v2705 = vld [vmem:[%s880 + $0x7c] sm:$0xf]
        %v2706 = vld [vmem:[%s1029] sm:$0x1]
        %v2708 = vlaneseq
        %v2709 = vshrl.u32 %v2708, 7
        %v2710 = vsub.s32 0, %v2709
        %v2711 = vrot.slane %v2706, %v2710
        %v2745 = vunpack.c.l.b16 %v2674
        %v2746 = vunpack.c.l.b16 %v2675
        %v2747 = vunpack.c.l.b16 %v2676
        %v2748 = vunpack.c.l.b16 %v2677
        %v2749 = vunpack.c.l.b16 %v2678
        %v2750 = vunpack.c.l.b16 %v2679
        %v2751 = vunpack.c.l.b16 %v2680
        %v2752 = vunpack.c.l.b16 %v2681
        %v2753 = vunpack.c.l.b16 %v2682
        %v2754 = vunpack.c.l.b16 %v2683
        %v2755 = vunpack.c.l.b16 %v2684
        %v2756 = vunpack.c.l.b16 %v2685
        %v2757 = vunpack.c.l.b16 %v2686
        %v2758 = vunpack.c.l.b16 %v2687
        %v2759 = vunpack.c.l.b16 %v2688
        %v2760 = vunpack.c.l.b16 %v2689
        %v2761 = vunpack.c.l.b16 %v2690
        %v2762 = vunpack.c.l.b16 %v2691
        %v2763 = vunpack.c.l.b16 %v2692
        %v2764 = vunpack.c.l.b16 %v2693
        %v2765 = vunpack.c.l.b16 %v2694
        %v2766 = vunpack.c.l.b16 %v2695
        %v2767 = vunpack.c.l.b16 %v2696
        %v2768 = vunpack.c.l.b16 %v2697
        %v2769 = vunpack.c.l.b16 %v2698
        %v2770 = vunpack.c.l.b16 %v2699
        %v2771 = vunpack.c.l.b16 %v2700
        %v2772 = vunpack.c.l.b16 %v2701
        %v2773 = vunpack.c.l.b16 %v2702
        %v2774 = vunpack.c.l.b16 %v2703
        %v2775 = vunpack.c.l.b16 %v2704
        %v2776 = vunpack.c.l.b16 %v2705
        %v2777 = vpack.c.b16 %v2746, %v2745
        %v2778 = vpack.c.b16 %v2748, %v2747
        %v2779 = vpack.c.b16 %v2750, %v2749
        %v2780 = vpack.c.b16 %v2752, %v2751
        %v2781 = vpack.c.b16 %v2754, %v2753
        %v2782 = vpack.c.b16 %v2756, %v2755
        %v2783 = vpack.c.b16 %v2758, %v2757
        %v2784 = vpack.c.b16 %v2760, %v2759
        %v2785 = vpack.c.b16 %v2762, %v2761
        %v2786 = vpack.c.b16 %v2764, %v2763
        %v2787 = vpack.c.b16 %v2766, %v2765
        %v2788 = vpack.c.b16 %v2768, %v2767
        %v2789 = vpack.c.b16 %v2770, %v2769
        %v2790 = vpack.c.b16 %v2772, %v2771
        %v2791 = vpack.c.b16 %v2774, %v2773
        %v2792 = vpack.c.b16 %v2776, %v2775
        %2809 = vmatprep.subr.bf16.mxu0 0
        %2810 = vmatpush1.bf16.msra.mxu0 %v2784
        %2811 = vmatprep.subr.bf16.mxu0 0
        %2812 = vmatpush1.bf16.msra.mxu0 %v2783
        %2813 = vmatprep.subr.bf16.mxu0 0
        %2814 = vmatpush1.bf16.msra.mxu0 %v2782
        %2815 = vmatprep.subr.bf16.mxu0 0
        %2816 = vmatpush1.bf16.msra.mxu0 %v2781
        %2817 = vmatprep.subr.bf16.mxu0 0
        %2818 = vmatpush1.bf16.msra.mxu0 %v2780
        %2819 = vmatprep.subr.bf16.mxu0 0
        %2820 = vmatpush1.bf16.msra.mxu0 %v2779
        %2821 = vmatprep.subr.bf16.mxu0 0
        %2822 = vmatpush1.bf16.msra.mxu0 %v2778
        %2823 = vmatprep.subr.bf16.mxu0 0
        %2824 = vmatpush1.bf16.msra.mxu0 %v2777
        %2825 = vmatprep.subr.bf16.mxu0 0
        %2826 = vmatpush2.bf16.msra.mxu0 %v2792
        %2827 = vmatprep.subr.bf16.mxu0 0
        %2828 = vmatpush2.bf16.msra.mxu0 %v2791
        %2829 = vmatprep.subr.bf16.mxu0 0
        %2830 = vmatpush2.bf16.msra.mxu0 %v2790
        %2831 = vmatprep.subr.bf16.mxu0 0
        %2832 = vmatpush2.bf16.msra.mxu0 %v2789
        %2833 = vmatprep.subr.bf16.mxu0 0
        %2834 = vmatpush2.bf16.msra.mxu0 %v2788
        %2835 = vmatprep.subr.bf16.mxu0 0
        %2836 = vmatpush2.bf16.msra.mxu0 %v2787
        %2837 = vmatprep.subr.bf16.mxu0 0
        %2838 = vmatpush2.bf16.msra.mxu0 %v2786
        %2839 = vmatprep.subr.bf16.mxu0 0
        %2840 = vmatpush2.bf16.msra.mxu0 %v2785
        %2841 = vmatprep.mubr.bf16.mxu0 %v2673
        %2842 = vmatmul.mubr.bf16.gmra.mxu0 %v2672
        %v2843 = vpop.f32.mrf.mxu0
        %v2844 = vadd.f32 %v2711, %v2843
        %v2845 = vpop.f32.mrf.mxu0
        %v2846 = vpop.f32.mrf.mxu0
        %v2847 = vadd.f32 %v2711, %v2846
        %v2848 = vpop.f32.mrf.mxu0
        %2849 = vdwg.mxu0
        %v2850 = vadd.f32 %v2482, %v2844
        %v2851 = vadd.f32 %v2483, %v2847
        %v2852 = vld [vmem:[%s1032] sm:$0x1]
        %v2853 = vld [vmem:[%s1035] sm:$0x1]
        %2854 = vadd.xlane.f32.xlu0 %v2850
        %v2855 = vpop.xlane.xlu0 %2854
        %2856 = vadd.xlane.f32.xlu0 %v2851
        %v2857 = vpop.xlane.xlu0 %2856
        %v2858 = vmul.f32 %v2855, %v2449
        %v2859 = vmul.f32 %v2857, %v2449
        %v2860 = vsub.f32 %v2850, %v2858
        %v2861 = vsub.f32 %v2851, %v2859
        %v2862 = vmul.f32 %v2860, %v2860
        %v2863 = vmul.f32 %v2861, %v2861
        %2864 = vadd.xlane.f32.xlu0 %v2862
        %v2865 = vpop.xlane.xlu0 %2864
        %2866 = vadd.xlane.f32.xlu0 %v2863
        %v2867 = vpop.xlane.xlu0 %2866
        %v2868 = vmul.f32 %v2865, %v2449
        %v2869 = vmul.f32 %v2867, %v2449
        %v2870 = vadd.f32 %v2868, 1e-05
        %v2871 = vadd.f32 %v2869, 1e-05
        %v2872 = vrsqrt.pop %v2870
        %v2873 = vrsqrt.pop %v2871
        %v2874 = vmul.f32 %v2860, %v2872
        %v2875 = vmul.f32 %v2861, %v2873
        %v2877 = vlaneseq
        %v2878 = vshrl.u32 %v2877, 7
        %v2879 = vsub.s32 0, %v2878
        %v2880 = vrot.slane %v2852, %v2879
        %v2882 = vmul.f32 %v2874, %v2880
        %v2883 = vmul.f32 %v2875, %v2880
        %v2885 = vlaneseq
        %v2886 = vshrl.u32 %v2885, 7
        %v2887 = vsub.s32 0, %v2886
        %v2888 = vrot.slane %v2853, %v2887
        %v2890 = vadd.f32 %v2882, %v2888
        %v2891 = vadd.f32 %v2883, %v2888
        %v2892 = vpack.c.bf16 %v2891, %v2890
        %v2894 = vunpack.c.l.b16 %v2892
        %v2895 = vunpack.c.h.b16 %v2892
        %v2896 = vpack.c.b16 %v2894, %v2894
        %v2897 = vpack.c.b16 %v2895, %v2895
        %2900 = vst [vmem:[#allocation2] sm:$0xf] %v2896
        %2901 = vst [vmem:[#allocation2 + $0x4] sm:$0xf] %v2897
        %p2902 = scmp.eq.s32.totalorder %s44, 1
        // Predicated region
        $region141: #{roberta_class_forward.1} parent=107 // pred_check
          %p2903 = pneg %p2902
        $region142: #{roberta_class_forward.1} parent=107 // pred_check_branch
          %2905 = sbr.rel (%p2903) target = $region144
        $region143: #{roberta_class_forward.1} parent=107 // pred_region
          %v2906 = vpack.c.bf16 %v2890, %v2890
          %v2907 = vpack.c.bf16 %v2891, %v2891
          %v2908 = vld [vmem:[#allocation12] sm:$0xf]
          %v2909 = vld [vmem:[#allocation12 + $0x4] sm:$0xf]
          %v2910 = vld [vmem:[#allocation12 + $0x8] sm:$0xf]
          %v2911 = vld [vmem:[#allocation12 + $0xc] sm:$0xf]
          %v2912 = vld [vmem:[#allocation12 + $0x10] sm:$0xf]
          %v2913 = vld [vmem:[#allocation12 + $0x14] sm:$0xf]
          %v2914 = vld [vmem:[#allocation12 + $0x18] sm:$0xf]
          %v2915 = vld [vmem:[#allocation12 + $0x1c] sm:$0xf]
          %v2916 = vld [vmem:[#allocation12 + $0x20] sm:$0xf]
          %v2917 = vld [vmem:[#allocation12 + $0x24] sm:$0xf]
          %v2918 = vld [vmem:[#allocation12 + $0x28] sm:$0xf]
          %v2919 = vld [vmem:[#allocation12 + $0x2c] sm:$0xf]
          %v2920 = vld [vmem:[#allocation12 + $0x30] sm:$0xf]
          %v2921 = vld [vmem:[#allocation12 + $0x34] sm:$0xf]
          %v2922 = vld [vmem:[#allocation12 + $0x38] sm:$0xf]
          %v2923 = vld [vmem:[#allocation12 + $0x3c] sm:$0xf]
          %v2924 = vld [vmem:[%s19] sm:$0x1]
          %v2926 = vlaneseq
          %v2927 = vshrl.u32 %v2926, 7
          %v2928 = vsub.s32 0, %v2927
          %v2929 = vrot.slane %v2924, %v2928
          %v2933 = vunpack.c.l.b16 %v2906
          %v2934 = vunpack.c.l.b16 %v2907
          %v2935 = vrot.slane %v2934, 7
          %vm2936 = vcmask 1041409
          %v2937 = vsel %vm2936, %v2935, %v2933
          %v2938 = vpack.c.b16 %v2937, %v2937
          %v2956 = vunpack.c.l.b16 %v2908
          %v2957 = vunpack.c.l.b16 %v2909
          %v2958 = vunpack.c.l.b16 %v2910
          %v2959 = vunpack.c.l.b16 %v2911
          %v2960 = vunpack.c.l.b16 %v2912
          %v2961 = vunpack.c.l.b16 %v2913
          %v2962 = vunpack.c.l.b16 %v2914
          %v2963 = vunpack.c.l.b16 %v2915
          %v2964 = vunpack.c.l.b16 %v2916
          %v2965 = vunpack.c.l.b16 %v2917
          %v2966 = vunpack.c.l.b16 %v2918
          %v2967 = vunpack.c.l.b16 %v2919
          %v2968 = vunpack.c.l.b16 %v2920
          %v2969 = vunpack.c.l.b16 %v2921
          %v2970 = vunpack.c.l.b16 %v2922
          %v2971 = vunpack.c.l.b16 %v2923
          %v2972 = vpack.c.b16 %v2957, %v2956
          %v2973 = vpack.c.b16 %v2959, %v2958
          %v2974 = vpack.c.b16 %v2961, %v2960
          %v2975 = vpack.c.b16 %v2963, %v2962
          %v2976 = vpack.c.b16 %v2965, %v2964
          %v2977 = vpack.c.b16 %v2967, %v2966
          %v2978 = vpack.c.b16 %v2969, %v2968
          %v2979 = vpack.c.b16 %v2971, %v2970
          %2988 = vmatprep.subr.bf16.mxu0 0
          %2989 = vmatpush1.bf16.msra.mxu0 %v2979
          %2990 = vmatprep.subr.bf16.mxu0 0
          %2991 = vmatpush1.bf16.msra.mxu0 %v2978
          %2992 = vmatprep.subr.bf16.mxu0 0
          %2993 = vmatpush1.bf16.msra.mxu0 %v2977
          %2994 = vmatprep.subr.bf16.mxu0 0
          %2995 = vmatpush1.bf16.msra.mxu0 %v2976
          %2996 = vmatprep.subr.bf16.mxu0 0
          %2997 = vmatpush1.bf16.msra.mxu0 %v2975
          %2998 = vmatprep.subr.bf16.mxu0 0
          %2999 = vmatpush1.bf16.msra.mxu0 %v2974
          %3000 = vmatprep.subr.bf16.mxu0 0
          %3001 = vmatpush1.bf16.msra.mxu0 %v2973
          %3002 = vmatprep.subr.bf16.mxu0 0
          %3003 = vmatpush1.bf16.msra.mxu0 %v2972
          %3004 = vmatprep.subr.bf16.mxu0 0
          %3005 = vmatpush2.bf16.msra.mxu0 0
          %3006 = vmatprep.subr.bf16.mxu0 0
          %3007 = vmatpush2.bf16.msra.mxu0 0
          %3008 = vmatprep.subr.bf16.mxu0 0
          %3009 = vmatpush2.bf16.msra.mxu0 0
          %3010 = vmatprep.subr.bf16.mxu0 0
          %3011 = vmatpush2.bf16.msra.mxu0 0
          %3012 = vmatprep.subr.bf16.mxu0 0
          %3013 = vmatpush2.bf16.msra.mxu0 0
          %3014 = vmatprep.subr.bf16.mxu0 0
          %3015 = vmatpush2.bf16.msra.mxu0 0
          %3016 = vmatprep.subr.bf16.mxu0 0
          %3017 = vmatpush2.bf16.msra.mxu0 0
          %3018 = vmatprep.subr.bf16.mxu0 0
          %3019 = vmatpush2.bf16.msra.mxu0 0
          %3020 = vmatprep.mubr.bf16.mxu0 0
          %3021 = vmatmul.mubr.bf16.gmra.mxu0 %v2938
          %v3022 = vpop.f32.mrf.mxu0
          %v3023 = vadd.f32 %v2929, %v3022
          %v3024 = vpop.f32.mrf.mxu0
          %v3025 = vpop.f32.mrf.mxu0
          %v3026 = vpop.f32.mrf.mxu0
          %3027 = vdwg.mxu0
          %v3028 = vmax.f32 %v3023, 0.0
          %v3029 = vpack.c.bf16 %v3028, %v3028
          %v3030 = vld [vmem:[#allocation14] sm:$0xf]
          %v3031 = vld [vmem:[#allocation14 + $0x4] sm:$0xf]
          %v3032 = vld [vmem:[#allocation14 + $0x8] sm:$0xf]
          %v3033 = vld [vmem:[#allocation14 + $0xc] sm:$0xf]
          %v3034 = vld [vmem:[#allocation14 + $0x10] sm:$0xf]
          %v3035 = vld [vmem:[#allocation14 + $0x14] sm:$0xf]
          %v3036 = vld [vmem:[#allocation14 + $0x18] sm:$0xf]
          %v3037 = vld [vmem:[#allocation14 + $0x1c] sm:$0xf]
          %v3038 = vld [vmem:[#allocation14 + $0x20] sm:$0xf]
          %v3039 = vld [vmem:[#allocation14 + $0x24] sm:$0xf]
          %v3040 = vld [vmem:[#allocation14 + $0x28] sm:$0xf]
          %v3041 = vld [vmem:[#allocation14 + $0x2c] sm:$0xf]
          %v3042 = vld [vmem:[#allocation14 + $0x30] sm:$0xf]
          %v3043 = vld [vmem:[#allocation14 + $0x34] sm:$0xf]
          %v3044 = vld [vmem:[#allocation14 + $0x38] sm:$0xf]
          %v3045 = vld [vmem:[#allocation14 + $0x3c] sm:$0xf]
          %v3046 = vld [vmem:[%s21] sm:$0x1]
          %v3048 = vlaneseq
          %v3049 = vshrl.u32 %v3048, 7
          %v3050 = vsub.s32 0, %v3049
          %v3051 = vrot.slane %v3046, %v3050
          %v3069 = vunpack.c.l.b16 %v3030
          %v3070 = vunpack.c.l.b16 %v3031
          %v3071 = vunpack.c.l.b16 %v3032
          %v3072 = vunpack.c.l.b16 %v3033
          %v3073 = vunpack.c.l.b16 %v3034
          %v3074 = vunpack.c.l.b16 %v3035
          %v3075 = vunpack.c.l.b16 %v3036
          %v3076 = vunpack.c.l.b16 %v3037
          %v3077 = vunpack.c.l.b16 %v3038
          %v3078 = vunpack.c.l.b16 %v3039
          %v3079 = vunpack.c.l.b16 %v3040
          %v3080 = vunpack.c.l.b16 %v3041
          %v3081 = vunpack.c.l.b16 %v3042
          %v3082 = vunpack.c.l.b16 %v3043
          %v3083 = vunpack.c.l.b16 %v3044
          %v3084 = vunpack.c.l.b16 %v3045
          %v3085 = vpack.c.b16 %v3070, %v3069
          %v3086 = vpack.c.b16 %v3072, %v3071
          %v3087 = vpack.c.b16 %v3074, %v3073
          %v3088 = vpack.c.b16 %v3076, %v3075
          %v3089 = vpack.c.b16 %v3078, %v3077
          %v3090 = vpack.c.b16 %v3080, %v3079
          %v3091 = vpack.c.b16 %v3082, %v3081
          %v3092 = vpack.c.b16 %v3084, %v3083
          %3101 = vmatprep.subr.bf16.mxu0 0
          %3102 = vmatpush1.bf16.msra.mxu0 %v3092
          %3103 = vmatprep.subr.bf16.mxu0 0
          %3104 = vmatpush1.bf16.msra.mxu0 %v3091
          %3105 = vmatprep.subr.bf16.mxu0 0
          %3106 = vmatpush1.bf16.msra.mxu0 %v3090
          %3107 = vmatprep.subr.bf16.mxu0 0
          %3108 = vmatpush1.bf16.msra.mxu0 %v3089
          %3109 = vmatprep.subr.bf16.mxu0 0
          %3110 = vmatpush1.bf16.msra.mxu0 %v3088
          %3111 = vmatprep.subr.bf16.mxu0 0
          %3112 = vmatpush1.bf16.msra.mxu0 %v3087
          %3113 = vmatprep.subr.bf16.mxu0 0
          %3114 = vmatpush1.bf16.msra.mxu0 %v3086
          %3115 = vmatprep.subr.bf16.mxu0 0
          %3116 = vmatpush1.bf16.msra.mxu0 %v3085
          %3117 = vmatprep.subr.bf16.mxu0 0
          %3118 = vmatpush2.bf16.msra.mxu0 0
          %3119 = vmatprep.subr.bf16.mxu0 0
          %3120 = vmatpush2.bf16.msra.mxu0 0
          %3121 = vmatprep.subr.bf16.mxu0 0
          %3122 = vmatpush2.bf16.msra.mxu0 0
          %3123 = vmatprep.subr.bf16.mxu0 0
          %3124 = vmatpush2.bf16.msra.mxu0 0
          %3125 = vmatprep.subr.bf16.mxu0 0
          %3126 = vmatpush2.bf16.msra.mxu0 0
          %3127 = vmatprep.subr.bf16.mxu0 0
          %3128 = vmatpush2.bf16.msra.mxu0 0
          %3129 = vmatprep.subr.bf16.mxu0 0
          %3130 = vmatpush2.bf16.msra.mxu0 0
          %3131 = vmatprep.subr.bf16.mxu0 0
          %3132 = vmatpush2.bf16.msra.mxu0 0
          %3133 = vmatprep.mubr.bf16.mxu0 0
          %3134 = vmatmul.mubr.bf16.gmra.mxu0 %v3029
          %v3135 = vpop.f32.mrf.mxu0
          %v3136 = vadd.f32 %v3051, %v3135
          %v3137 = vpop.f32.mrf.mxu0
          %v3138 = vpop.f32.mrf.mxu0
          %v3139 = vpop.f32.mrf.mxu0
          %3140 = vdwg.mxu0
          %3141 = vst [vmem:[#allocation15] sm:$0x3] %v3136
        $region144: #{roberta_class_forward.1} parent=107 // pred_fallthru
          _
        // Predicated region
        $region145: #{roberta_class_forward.1} parent=107 // pred_check
          %p3142 = pneg %p599
        $region146: #{roberta_class_forward.1} parent=107 // pred_check_branch
          %3144 = sbr.rel (%p3142) target = $region148
        $region147: #{roberta_class_forward.1} parent=107 // pred_region
          %s3146 = ssub.s32 32, 32
          %3147 = vsyncadd [#allocation5], %s3146
          %s3149 = sshll.u32 [#allocation15], 4
          %s3150 = int_to_ptr.vmem [resolvable:$true] %s3149
          %3152 = dma.vmem_to_hbm [thread:$0]  %s3150, 32, %s22, [#allocation5]
        $region148: #{roberta_class_forward.1} parent=107 // pred_fallthru
          _
        // Predicated region
        $region149: #{roberta_class_forward.1} parent=107 // pred_check
          %p3153 = pneg %p599
        $region150: #{roberta_class_forward.1} parent=107 // pred_check_branch
          %3155 = sbr.rel (%p3153) target = $region152
        $region151: #{roberta_class_forward.1} parent=107 // pred_region
          %3156 = dma.done [#allocation5], 32
        $region152: #{roberta_class_forward.1} parent=107 // pred_fallthru
          _
      $region108: #{roberta_class_forward.1} parent=5 // pred_fallthru
        _
      %p3157 = scmp.le.s32.totalorder 2, %s39
      // Predicated region
      $region153: #{roberta_class_forward.1} parent=5 // pred_check
        %p3158 = pneg %p3157
      $region154: #{roberta_class_forward.1} parent=5 // pred_check_branch
        %3160 = sbr.rel (%p3158) target = $region156
      $region155: #{roberta_class_forward.1} parent=5 // pred_region
        %s3161 = ssub.s32 %s39, 2
      $region156: #{roberta_class_forward.1} parent=5 // pred_fallthru
        _
    $region6: #{roberta_class_forward.1} parent=1 // loop_footer
      %s43 = sadd.s32 1, %s39
    $region7: #{roberta_class_forward.1} parent=1 // loop_footer_branch
      %38 = sbr.rel target = $region3
    $region8: #{roberta_class_forward.1} parent=1 // loop_exit
      _
    %3162 = vsyncpa [#allocation4], 1
    %s3163 = scalar_lea.sflag [#allocation4], 1
    %3164 = vsyncpa %s3163, 1
    %3165 = vsyncpa [#allocation7], 1
    %s3166 = scalar_lea.sflag [#allocation7], 1
    %3167 = vsyncpa %s3166, 1
    %3168 = vsyncpa [#allocation10], 1
    %s3169 = scalar_lea.sflag [#allocation10], 1
    %3170 = vsyncpa %s3169, 1
    %3171 = vsyncpa [#allocation13], 1
    %3172 = vsyncpa [#allocation5], 1
    %s3173 = scalar_lea.sflag [#allocation5], 1
    %3174 = vsyncpa %s3173, 1

</llo_original>
